<compile_context>
chip_gen: v5e
topology: v5e:2x2
jax: 0.10.0
libtpu: 0.0.40
codegen_flags: <defaults>
</compile_context>

<pallas_src>
import math

import numpy as np
import jax
import jax.numpy as jnp
from jax.experimental import pallas as pl
from jax.experimental.pallas import tpu as pltpu

# ------------------------------- dimensions ---------------------------------
B, S = 2, 8          # batch, sequence
H = 32               # hidden size
I = 128              # intermediate size (4*H)
R = 16               # rank kept by the SVD decomposition (dense_u in-features)
NH, DH = 4, 8        # heads, head dim (NH*DH == H)
NUM_LAYERS = 2       # encoder layers kept after the split point
LABELS = 3
LN_EPS = 1e-12       # BERT LayerNorm eps
SQRT_2 = math.sqrt(2.0)
ATT_SCALE = 1.0 / math.sqrt(DH)


# --------------------------- in-kernel helpers -------------------------------
def _erf(x):
    # Abramowitz & Stegun 7.1.26 (|err| < 1.5e-7 => ~f32-exact).  Avoids relying
    # on an erf lowering inside Mosaic; only exp / mul / add / div.
    a1, a2, a3, a4, a5 = 0.254829592, -0.284496736, 1.421413741, -1.453152027, 1.061405429
    p = 0.3275911
    sgn = jnp.where(x < 0.0, -1.0, 1.0)
    ax = jnp.abs(x)
    t = 1.0 / (1.0 + p * ax)
    poly = ((((a5 * t + a4) * t + a3) * t + a2) * t + a1) * t
    return sgn * (1.0 - poly * jnp.exp(-ax * ax))


def _gelu(x):
    # exact (erf-based) GELU == torch.nn.functional.gelu default == BERT act fn
    return 0.5 * x * (1.0 + _erf(x / SQRT_2))


def _layernorm(x, g, b):
    mu = jnp.mean(x, axis=-1, keepdims=True)
    var = jnp.mean((x - mu) ** 2, axis=-1, keepdims=True)
    return (x - mu) * jax.lax.rsqrt(var + LN_EPS) * g + b


def _softmax_rows(s):
    s = s - jnp.max(s, axis=-1, keepdims=True)
    p = jnp.exp(s)
    # approx reciprocal -> EUP slot (free next to the exp), replaces a VALU divide
    return p * pl.reciprocal(jnp.sum(p, axis=-1, keepdims=True), approx=True)


# --------------------------------- kernel ------------------------------------
def fused_bert_back_kernel(
        x_ref, m_ref,
        uw_ref, ub_ref, ow_ref, ob_ref, g0_ref, b0_ref,          # front (split-layer tail)
        wq_ref, bq_ref, wk_ref, bk_ref, wv_ref, bv_ref,          # per-layer, stacked (L,...)
        wao_ref, bao_ref, g1_ref, b1_ref,
        wi_ref, bi_ref, wo_ref, bo_ref, g2_ref, b2_ref,
        wp_ref, bp_ref, wc_ref, bc_ref,                          # pooler + fc_prediction
        o_ref):
    # ---- front: dense_u -> gelu -> output.dense -> LayerNorm (NO residual,
    #      matching the decomposed module which LayerNorms the dense output only).
    x = x_ref[...]                                                    # (B*S, R)
    hmid = _gelu(jnp.dot(x, uw_ref[...], preferred_element_type=jnp.float32) + ub_ref[...])
    h = _layernorm(
        jnp.dot(hmid, ow_ref[...], preferred_element_type=jnp.float32) + ob_ref[...],
        g0_ref[...], b0_ref[...])                                     # (B*S, H)
    # TODO(synk): output.dropout / attention-probs dropout / pooler dropout are
    # identity in eval mode and omitted.

    # extended_attention_mask = (1 - mask) * -10000, broadcast over heads/queries
    ext_mask = (1.0 - m_ref[...]) * -10000.0                          # (B, S)

    for l in range(NUM_LAYERS):                                       # static unroll (L=2)
        wq, bq = wq_ref[l], bq_ref[l]
        wk, bk = wk_ref[l], bk_ref[l]
        wv, bv = wv_ref[l], bv_ref[l]
        wao, bao = wao_ref[l], bao_ref[l]
        g1, b1 = g1_ref[l], b1_ref[l]
        wi, bi = wi_ref[l], bi_ref[l]
        wo, bo = wo_ref[l], bo_ref[l]
        g2, b2 = g2_ref[l], b2_ref[l]

        # QKV on the full (B*S, H) slab -> batch folded into the MXU M dim.
        q = jnp.dot(h, wq, preferred_element_type=jnp.float32) + bq   # (B*S, H)
        k = jnp.dot(h, wk, preferred_element_type=jnp.float32) + bk
        v = jnp.dot(h, wv, preferred_element_type=jnp.float32) + bv

        # Per-head attention, batched over B via a single einsum per head.
        # Each head's context is projected through its slice of the attention
        # output weight and accumulated (no concat, output dense fused in).
        acc = None
        for hd in range(NH):                                          # static (NH=4)
            lo = hd * DH
            qh = q[:, lo:lo + DH].reshape(B, S, DH)
            kh = k[:, lo:lo + DH].reshape(B, S, DH)
            vh = v[:, lo:lo + DH].reshape(B, S, DH)
            s = jnp.einsum('bqd,bkd->bqk', qh, kh,
                           preferred_element_type=jnp.float32) * ATT_SCALE
            s = s + ext_mask[:, None, :]                              # (B, S, S)
            p = _softmax_rows(s)
            ctx = jnp.einsum('bqk,bkd->bqd', p, vh,
                             preferred_element_type=jnp.float32)      # (B, S, DH)
            part = jnp.dot(ctx.reshape(B * S, DH), wao[lo:lo + DH, :],
                           preferred_element_type=jnp.float32)        # (B*S, H)
            acc = part if acc is None else acc + part
        attn = acc + bao

        x1 = _layernorm(attn + h, g1, b1)                             # add & norm
        inter = _gelu(jnp.dot(x1, wi, preferred_element_type=jnp.float32) + bi)
        h = _layernorm(jnp.dot(inter, wo, preferred_element_type=jnp.float32) + bo + x1,
                       g2, b2)                                        # (B*S, H)

    # ---- head: BertPooler (dense + tanh on CLS token) + fc_prediction ----
    cls = h.reshape(B, S, H)[:, 0, :]                                 # (B, H)
    pooled = jnp.tanh(
        jnp.dot(cls, wp_ref[...], preferred_element_type=jnp.float32) + bp_ref[...])
    o_ref[...] = jnp.dot(pooled, wc_ref[...],
                         preferred_element_type=jnp.float32) + bc_ref[...]   # (B, LABELS)


# -------------------------------- wrapper -------------------------------------
def bert_back_forward(hidden_states, attention_mask, params, stacked):
    """Single fused pallas_call for the whole back half of the model."""
    x2d = hidden_states.reshape(B * S, R)
    args = [x2d, attention_mask,
            params['u_w'], params['u_b'], params['out_w'], params['out_b'],
            params['ln_g'], params['ln_b']]
    args += [stacked[k] for k in ('wq', 'bq', 'wk', 'bk', 'wv', 'bv',
                                  'wao', 'bao', 'g1', 'b1',
                                  'wi', 'bi', 'wo', 'bo', 'g2', 'b2')]
    args += [params['pool_w'], params['pool_b'], params['fc_w'], params['fc_b']]
    return pl.pallas_call(
        fused_bert_back_kernel,
        out_shape=jax.ShapeDtypeStruct((B, LABELS), jnp.float32),
    )(*args)


# --------------------------- deterministic params -----------------------------
def init_params(key):
    keys = jax.random.split(key, 64)
    it = iter(keys)

    def nrm(shape):
        return 0.02 * jax.random.normal(next(it), shape, jnp.float32)

    # split layer's intermediate dense (torch layout (out=I, in=H)) -> SVD -> U[:, :R]
    w_int = nrm((I, H))
    b_int = nrm((I,))
    u = np.linalg.svd(np.asarray(w_int), full_matrices=True)[0]   # (I, I)
    u_w_torch = jnp.asarray(u[:, :R], jnp.float32)                # Linear(R -> I) weight

    w_out, b_out = nrm((H, I)), nrm((H,))

    params = dict(
        u_w=u_w_torch.T,                       # (R, I)
        u_b=b_int.reshape(1, I),
        out_w=w_out.T,                         # (I, H)
        out_b=b_out.reshape(1, H),
        ln_g=jnp.ones((1, H), jnp.float32),
        ln_b=jnp.zeros((1, H), jnp.float32),
        pool_w=nrm((H, H)).T, pool_b=nrm((H,)).reshape(1, H),
        fc_w=nrm((LABELS, H)).T, fc_b=nrm((LABELS,)).reshape(1, LABELS),
    )

    layer_params = []
    for _ in range(NUM_LAYERS):
        layer_params.append(dict(
            wq=nrm((H, H)).T, bq=nrm((H,)).reshape(1, H),
            wk=nrm((H, H)).T, bk=nrm((H,)).reshape(1, H),
            wv=nrm((H, H)).T, bv=nrm((H,)).reshape(1, H),
            wao=nrm((H, H)).T, bao=nrm((H,)).reshape(1, H),
            g1=jnp.ones((1, H), jnp.float32), b1=jnp.zeros((1, H), jnp.float32),
            wi=nrm((I, H)).T, bi=nrm((I,)).reshape(1, I),
            wo=nrm((H, I)).T, bo=nrm((H,)).reshape(1, H),
            g2=jnp.ones((1, H), jnp.float32), b2=jnp.zeros((1, H), jnp.float32),
        ))

    # stack per-layer weights into (NUM_LAYERS, ...) arrays for the fused kernel
    stacked = {k: jnp.stack([lp[k] for lp in layer_params], axis=0)
               for k in layer_params[0]}
    return params, stacked


# ---------------------------------- main --------------------------------------
if __name__ == "__main__":
    key = jax.random.PRNGKey(0)
    kp, kx = jax.random.split(key)
    params, stacked = init_params(kp)

    # inputs: low-rank hidden states from the "front" half + padding mask
    hidden_states = jax.random.normal(kx, (B, S, R), jnp.float32)
    attention_mask = jnp.concatenate(
        [jnp.ones((B, S - 2), jnp.float32),
         jnp.stack([jnp.ones((2,), jnp.float32),     # batch 0: no padding
                    jnp.zeros((2,), jnp.float32)])], # batch 1: last 2 tokens padded
        axis=1)

    prediction = bert_back_forward(hidden_states, attention_mask, params, stacked)
    jax.block_until_ready(prediction)
    assert prediction.shape == (B, LABELS) and prediction.dtype == jnp.float32
    print("KERNEL_OK")
</pallas_src>

<mosaic_0001>
module attributes {stable_mosaic.version = 11 : i64} {
  func.func @fused_bert_back_kernel(%arg0: memref<16x16xf32, #tpu.memory_space<vmem>>, %arg1: memref<2x8xf32, #tpu.memory_space<vmem>>, %arg2: memref<16x128xf32, #tpu.memory_space<vmem>>, %arg3: memref<1x128xf32, #tpu.memory_space<vmem>>, %arg4: memref<128x32xf32, #tpu.memory_space<vmem>>, %arg5: memref<1x32xf32, #tpu.memory_space<vmem>>, %arg6: memref<1x32xf32, #tpu.memory_space<vmem>>, %arg7: memref<1x32xf32, #tpu.memory_space<vmem>>, %arg8: memref<2x32x32xf32, #tpu.memory_space<vmem>>, %arg9: memref<2x1x32xf32, #tpu.memory_space<vmem>>, %arg10: memref<2x32x32xf32, #tpu.memory_space<vmem>>, %arg11: memref<2x1x32xf32, #tpu.memory_space<vmem>>, %arg12: memref<2x32x32xf32, #tpu.memory_space<vmem>>, %arg13: memref<2x1x32xf32, #tpu.memory_space<vmem>>, %arg14: memref<2x32x32xf32, #tpu.memory_space<vmem>>, %arg15: memref<2x1x32xf32, #tpu.memory_space<vmem>>, %arg16: memref<2x1x32xf32, #tpu.memory_space<vmem>>, %arg17: memref<2x1x32xf32, #tpu.memory_space<vmem>>, %arg18: memref<2x32x128xf32, #tpu.memory_space<vmem>>, %arg19: memref<2x1x128xf32, #tpu.memory_space<vmem>>, %arg20: memref<2x128x32xf32, #tpu.memory_space<vmem>>, %arg21: memref<2x1x32xf32, #tpu.memory_space<vmem>>, %arg22: memref<2x1x32xf32, #tpu.memory_space<vmem>>, %arg23: memref<2x1x32xf32, #tpu.memory_space<vmem>>, %arg24: memref<32x32xf32, #tpu.memory_space<vmem>>, %arg25: memref<1x32xf32, #tpu.memory_space<vmem>>, %arg26: memref<32x3xf32, #tpu.memory_space<vmem>>, %arg27: memref<1x3xf32, #tpu.memory_space<vmem>>, %arg28: memref<2x3xf32, #tpu.memory_space<vmem>>) attributes {dimension_semantics = [], scalar_prefetch = 0 : i64, scratch_operands = 0 : i64, tpu.core_type = #tpu.core_type<tc>} {
    %c0 = arith.constant 0 : index
    %c0_0 = arith.constant 0 : index
    %0 = vector.load %arg0[%c0, %c0_0] : memref<16x16xf32, #tpu.memory_space<vmem>>, vector<16x16xf32>
    %c0_1 = arith.constant 0 : index
    %c0_2 = arith.constant 0 : index
    %1 = vector.load %arg2[%c0_1, %c0_2] : memref<16x128xf32, #tpu.memory_space<vmem>>, vector<16x128xf32>
    %cst = arith.constant dense<0.000000e+00> : vector<16x128xf32>
    %2 = tpu.matmul %0, %1, %cst {dimension_numbers = #tpu.dot_dimension_numbers<[1], [0], [0], [1], [0, 0, 1, 1], [], []>} : vector<16x16xf32>, vector<16x128xf32>, vector<16x128xf32> -> vector<16x128xf32>
    %c0_3 = arith.constant 0 : index
    %c0_4 = arith.constant 0 : index
    %3 = vector.load %arg3[%c0_3, %c0_4] : memref<1x128xf32, #tpu.memory_space<vmem>>, vector<1x128xf32>
    %4 = vector.broadcast %3 : vector<1x128xf32> to vector<16x128xf32>
    %5 = arith.addf %2, %4 : vector<16x128xf32>
    %cst_5 = arith.constant 5.000000e-01 : f32
    %6 = vector.broadcast %cst_5 : f32 to vector<16x128xf32>
    %7 = arith.mulf %6, %5 : vector<16x128xf32>
    %cst_6 = arith.constant 1.41421354 : f32
    %8 = vector.broadcast %cst_6 : f32 to vector<16x128xf32>
    %9 = arith.divf %5, %8 : vector<16x128xf32>
    %cst_7 = arith.constant 0.000000e+00 : f32
    %10 = vector.broadcast %cst_7 : f32 to vector<16x128xf32>
    %11 = arith.cmpf olt, %9, %10 : vector<16x128xf32>
    %cst_8 = arith.constant -1.000000e+00 : f32
    %cst_9 = arith.constant 1.000000e+00 : f32
    %12 = vector.broadcast %cst_8 : f32 to vector<16x128xf32>
    %13 = vector.broadcast %cst_9 : f32 to vector<16x128xf32>
    %14 = arith.select %11, %12, %13 : vector<16x128xi1>, vector<16x128xf32>
    %15 = math.absf %9 : vector<16x128xf32>
    %cst_10 = arith.constant 0.327591091 : f32
    %16 = vector.broadcast %cst_10 : f32 to vector<16x128xf32>
    %17 = arith.mulf %16, %15 : vector<16x128xf32>
    %cst_11 = arith.constant 1.000000e+00 : f32
    %18 = vector.broadcast %cst_11 : f32 to vector<16x128xf32>
    %19 = arith.addf %18, %17 : vector<16x128xf32>
    %cst_12 = arith.constant 1.000000e+00 : f32
    %20 = vector.broadcast %cst_12 : f32 to vector<16x128xf32>
    %21 = arith.divf %20, %19 : vector<16x128xf32>
    %cst_13 = arith.constant 1.06140542 : f32
    %22 = vector.broadcast %cst_13 : f32 to vector<16x128xf32>
    %23 = arith.mulf %22, %21 : vector<16x128xf32>
    %cst_14 = arith.constant -1.45315206 : f32
    %24 = vector.broadcast %cst_14 : f32 to vector<16x128xf32>
    %25 = arith.addf %23, %24 : vector<16x128xf32>
    %26 = arith.mulf %25, %21 : vector<16x128xf32>
    %cst_15 = arith.constant 1.42141378 : f32
    %27 = vector.broadcast %cst_15 : f32 to vector<16x128xf32>
    %28 = arith.addf %26, %27 : vector<16x128xf32>
    %29 = arith.mulf %28, %21 : vector<16x128xf32>
    %cst_16 = arith.constant -0.284496725 : f32
    %30 = vector.broadcast %cst_16 : f32 to vector<16x128xf32>
    %31 = arith.addf %29, %30 : vector<16x128xf32>
    %32 = arith.mulf %31, %21 : vector<16x128xf32>
    %cst_17 = arith.constant 0.254829586 : f32
    %33 = vector.broadcast %cst_17 : f32 to vector<16x128xf32>
    %34 = arith.addf %32, %33 : vector<16x128xf32>
    %35 = arith.mulf %34, %21 : vector<16x128xf32>
    %cst_18 = arith.constant 0.000000e+00 : f32
    %36 = vector.broadcast %cst_18 : f32 to vector<16x128xf32>
    %37 = arith.subf %36, %15 : vector<16x128xf32>
    %38 = arith.mulf %37, %15 : vector<16x128xf32>
    %39 = math.exp %38 : vector<16x128xf32>
    %40 = arith.mulf %35, %39 : vector<16x128xf32>
    %cst_19 = arith.constant 1.000000e+00 : f32
    %41 = vector.broadcast %cst_19 : f32 to vector<16x128xf32>
    %42 = arith.subf %41, %40 : vector<16x128xf32>
    %43 = arith.mulf %14, %42 : vector<16x128xf32>
    %cst_20 = arith.constant 1.000000e+00 : f32
    %44 = vector.broadcast %cst_20 : f32 to vector<16x128xf32>
    %45 = arith.addf %44, %43 : vector<16x128xf32>
    %46 = arith.mulf %7, %45 : vector<16x128xf32>
    %c0_21 = arith.constant 0 : index
    %c0_22 = arith.constant 0 : index
    %47 = vector.load %arg4[%c0_21, %c0_22] : memref<128x32xf32, #tpu.memory_space<vmem>>, vector<128x32xf32>
    %cst_23 = arith.constant dense<0.000000e+00> : vector<16x32xf32>
    %48 = tpu.matmul %46, %47, %cst_23 {dimension_numbers = #tpu.dot_dimension_numbers<[1], [0], [0], [1], [0, 0, 1, 1], [], []>} : vector<16x128xf32>, vector<128x32xf32>, vector<16x32xf32> -> vector<16x32xf32>
    %c0_24 = arith.constant 0 : index
    %c0_25 = arith.constant 0 : index
    %49 = vector.load %arg5[%c0_24, %c0_25] : memref<1x32xf32, #tpu.memory_space<vmem>>, vector<1x32xf32>
    %50 = vector.broadcast %49 : vector<1x32xf32> to vector<16x32xf32>
    %51 = arith.addf %48, %50 : vector<16x32xf32>
    %c0_26 = arith.constant 0 : index
    %c0_27 = arith.constant 0 : index
    %52 = vector.load %arg6[%c0_26, %c0_27] : memref<1x32xf32, #tpu.memory_space<vmem>>, vector<1x32xf32>
    %c0_28 = arith.constant 0 : index
    %c0_29 = arith.constant 0 : index
    %53 = vector.load %arg7[%c0_28, %c0_29] : memref<1x32xf32, #tpu.memory_space<vmem>>, vector<1x32xf32>
    %cst_30 = arith.constant dense<0.000000e+00> : vector<16xf32>
    %54 = vector.multi_reduction <add>, %51, %cst_30 [1] : vector<16x32xf32> to vector<16xf32>
    %55 = vector.shape_cast %54 : vector<16xf32> to vector<16x1xf32>
    %cst_31 = arith.constant 3.200000e+01 : f32
    %56 = vector.broadcast %cst_31 : f32 to vector<16x1xf32>
    %57 = arith.divf %55, %56 : vector<16x1xf32>
    %58 = vector.broadcast %57 : vector<16x1xf32> to vector<16x32xf32>
    %59 = arith.subf %51, %58 : vector<16x32xf32>
    %60 = arith.mulf %59, %59 : vector<16x32xf32>
    %cst_32 = arith.constant dense<0.000000e+00> : vector<16xf32>
    %61 = vector.multi_reduction <add>, %60, %cst_32 [1] : vector<16x32xf32> to vector<16xf32>
    %62 = vector.shape_cast %61 : vector<16xf32> to vector<16x1xf32>
    %cst_33 = arith.constant 3.200000e+01 : f32
    %63 = vector.broadcast %cst_33 : f32 to vector<16x1xf32>
    %64 = arith.divf %62, %63 : vector<16x1xf32>
    %65 = vector.broadcast %57 : vector<16x1xf32> to vector<16x32xf32>
    %66 = arith.subf %51, %65 : vector<16x32xf32>
    %cst_34 = arith.constant 9.99999996E-13 : f32
    %67 = vector.broadcast %cst_34 : f32 to vector<16x1xf32>
    %68 = arith.addf %64, %67 : vector<16x1xf32>
    %69 = math.rsqrt %68 : vector<16x1xf32>
    %70 = vector.broadcast %69 : vector<16x1xf32> to vector<16x32xf32>
    %71 = arith.mulf %66, %70 : vector<16x32xf32>
    %72 = vector.broadcast %52 : vector<1x32xf32> to vector<16x32xf32>
    %73 = arith.mulf %71, %72 : vector<16x32xf32>
    %74 = vector.broadcast %53 : vector<1x32xf32> to vector<16x32xf32>
    %75 = arith.addf %73, %74 : vector<16x32xf32>
    %c0_35 = arith.constant 0 : index
    %c0_36 = arith.constant 0 : index
    %76 = vector.load %arg1[%c0_35, %c0_36] : memref<2x8xf32, #tpu.memory_space<vmem>>, vector<2x8xf32>
    %cst_37 = arith.constant 1.000000e+00 : f32
    %77 = vector.broadcast %cst_37 : f32 to vector<2x8xf32>
    %78 = arith.subf %77, %76 : vector<2x8xf32>
    %cst_38 = arith.constant -1.000000e+04 : f32
    %79 = vector.broadcast %cst_38 : f32 to vector<2x8xf32>
    %80 = arith.mulf %78, %79 : vector<2x8xf32>
    %c0_39 = arith.constant 0 : index
    %c0_40 = arith.constant 0 : index
    %c0_41 = arith.constant 0 : index
    %81 = vector.load %arg8[%c0_39, %c0_40, %c0_41] : memref<2x32x32xf32, #tpu.memory_space<vmem>>, vector<1x32x32xf32>
    %82 = vector.shape_cast %81 : vector<1x32x32xf32> to vector<32x32xf32>
    %c0_42 = arith.constant 0 : index
    %c0_43 = arith.constant 0 : index
    %c0_44 = arith.constant 0 : index
    %83 = vector.load %arg9[%c0_42, %c0_43, %c0_44] : memref<2x1x32xf32, #tpu.memory_space<vmem>>, vector<1x1x32xf32>
    %84 = vector.shape_cast %83 : vector<1x1x32xf32> to vector<1x32xf32>
    %c0_45 = arith.constant 0 : index
    %c0_46 = arith.constant 0 : index
    %c0_47 = arith.constant 0 : index
    %85 = vector.load %arg10[%c0_45, %c0_46, %c0_47] : memref<2x32x32xf32, #tpu.memory_space<vmem>>, vector<1x32x32xf32>
    %86 = vector.shape_cast %85 : vector<1x32x32xf32> to vector<32x32xf32>
    %c0_48 = arith.constant 0 : index
    %c0_49 = arith.constant 0 : index
    %c0_50 = arith.constant 0 : index
    %87 = vector.load %arg11[%c0_48, %c0_49, %c0_50] : memref<2x1x32xf32, #tpu.memory_space<vmem>>, vector<1x1x32xf32>
    %88 = vector.shape_cast %87 : vector<1x1x32xf32> to vector<1x32xf32>
    %c0_51 = arith.constant 0 : index
    %c0_52 = arith.constant 0 : index
    %c0_53 = arith.constant 0 : index
    %89 = vector.load %arg12[%c0_51, %c0_52, %c0_53] : memref<2x32x32xf32, #tpu.memory_space<vmem>>, vector<1x32x32xf32>
    %90 = vector.shape_cast %89 : vector<1x32x32xf32> to vector<32x32xf32>
    %c0_54 = arith.constant 0 : index
    %c0_55 = arith.constant 0 : index
    %c0_56 = arith.constant 0 : index
    %91 = vector.load %arg13[%c0_54, %c0_55, %c0_56] : memref<2x1x32xf32, #tpu.memory_space<vmem>>, vector<1x1x32xf32>
    %92 = vector.shape_cast %91 : vector<1x1x32xf32> to vector<1x32xf32>
    %c0_57 = arith.constant 0 : index
    %c0_58 = arith.constant 0 : index
    %c0_59 = arith.constant 0 : index
    %93 = vector.load %arg14[%c0_57, %c0_58, %c0_59] : memref<2x32x32xf32, #tpu.memory_space<vmem>>, vector<1x32x32xf32>
    %94 = vector.shape_cast %93 : vector<1x32x32xf32> to vector<32x32xf32>
    %c0_60 = arith.constant 0 : index
    %c0_61 = arith.constant 0 : index
    %c0_62 = arith.constant 0 : index
    %95 = vector.load %arg15[%c0_60, %c0_61, %c0_62] : memref<2x1x32xf32, #tpu.memory_space<vmem>>, vector<1x1x32xf32>
    %96 = vector.shape_cast %95 : vector<1x1x32xf32> to vector<1x32xf32>
    %c0_63 = arith.constant 0 : index
    %c0_64 = arith.constant 0 : index
    %c0_65 = arith.constant 0 : index
    %97 = vector.load %arg16[%c0_63, %c0_64, %c0_65] : memref<2x1x32xf32, #tpu.memory_space<vmem>>, vector<1x1x32xf32>
    %98 = vector.shape_cast %97 : vector<1x1x32xf32> to vector<1x32xf32>
    %c0_66 = arith.constant 0 : index
    %c0_67 = arith.constant 0 : index
    %c0_68 = arith.constant 0 : index
    %99 = vector.load %arg17[%c0_66, %c0_67, %c0_68] : memref<2x1x32xf32, #tpu.memory_space<vmem>>, vector<1x1x32xf32>
    %100 = vector.shape_cast %99 : vector<1x1x32xf32> to vector<1x32xf32>
    %c0_69 = arith.constant 0 : index
    %c0_70 = arith.constant 0 : index
    %c0_71 = arith.constant 0 : index
    %101 = vector.load %arg18[%c0_69, %c0_70, %c0_71] : memref<2x32x128xf32, #tpu.memory_space<vmem>>, vector<1x32x128xf32>
    %102 = vector.shape_cast %101 : vector<1x32x128xf32> to vector<32x128xf32>
    %c0_72 = arith.constant 0 : index
    %c0_73 = arith.constant 0 : index
    %c0_74 = arith.constant 0 : index
    %103 = vector.load %arg19[%c0_72, %c0_73, %c0_74] : memref<2x1x128xf32, #tpu.memory_space<vmem>>, vector<1x1x128xf32>
    %104 = vector.shape_cast %103 : vector<1x1x128xf32> to vector<1x128xf32>
    %c0_75 = arith.constant 0 : index
    %c0_76 = arith.constant 0 : index
    %c0_77 = arith.constant 0 : index
    %105 = vector.load %arg20[%c0_75, %c0_76, %c0_77] : memref<2x128x32xf32, #tpu.memory_space<vmem>>, vector<1x128x32xf32>
    %106 = vector.shape_cast %105 : vector<1x128x32xf32> to vector<128x32xf32>
    %c0_78 = arith.constant 0 : index
    %c0_79 = arith.constant 0 : index
    %c0_80 = arith.constant 0 : index
    %107 = vector.load %arg21[%c0_78, %c0_79, %c0_80] : memref<2x1x32xf32, #tpu.memory_space<vmem>>, vector<1x1x32xf32>
    %108 = vector.shape_cast %107 : vector<1x1x32xf32> to vector<1x32xf32>
    %c0_81 = arith.constant 0 : index
    %c0_82 = arith.constant 0 : index
    %c0_83 = arith.constant 0 : index
    %109 = vector.load %arg22[%c0_81, %c0_82, %c0_83] : memref<2x1x32xf32, #tpu.memory_space<vmem>>, vector<1x1x32xf32>
    %110 = vector.shape_cast %109 : vector<1x1x32xf32> to vector<1x32xf32>
    %c0_84 = arith.constant 0 : index
    %c0_85 = arith.constant 0 : index
    %c0_86 = arith.constant 0 : index
    %111 = vector.load %arg23[%c0_84, %c0_85, %c0_86] : memref<2x1x32xf32, #tpu.memory_space<vmem>>, vector<1x1x32xf32>
    %112 = vector.shape_cast %111 : vector<1x1x32xf32> to vector<1x32xf32>
    %cst_87 = arith.constant dense<0.000000e+00> : vector<16x32xf32>
    %113 = tpu.matmul %75, %82, %cst_87 {dimension_numbers = #tpu.dot_dimension_numbers<[1], [0], [0], [1], [0, 0, 1, 1], [], []>} : vector<16x32xf32>, vector<32x32xf32>, vector<16x32xf32> -> vector<16x32xf32>
    %114 = vector.broadcast %84 : vector<1x32xf32> to vector<16x32xf32>
    %115 = arith.addf %113, %114 : vector<16x32xf32>
    %cst_88 = arith.constant dense<0.000000e+00> : vector<16x32xf32>
    %116 = tpu.matmul %75, %86, %cst_88 {dimension_numbers = #tpu.dot_dimension_numbers<[1], [0], [0], [1], [0, 0, 1, 1], [], []>} : vector<16x32xf32>, vector<32x32xf32>, vector<16x32xf32> -> vector<16x32xf32>
    %117 = vector.broadcast %88 : vector<1x32xf32> to vector<16x32xf32>
    %118 = arith.addf %116, %117 : vector<16x32xf32>
    %cst_89 = arith.constant dense<0.000000e+00> : vector<16x32xf32>
    %119 = tpu.matmul %75, %90, %cst_89 {dimension_numbers = #tpu.dot_dimension_numbers<[1], [0], [0], [1], [0, 0, 1, 1], [], []>} : vector<16x32xf32>, vector<32x32xf32>, vector<16x32xf32> -> vector<16x32xf32>
    %120 = vector.broadcast %92 : vector<1x32xf32> to vector<16x32xf32>
    %121 = arith.addf %119, %120 : vector<16x32xf32>
    %122 = vector.extract_strided_slice %115 {offsets = [0, 0], sizes = [16, 8], strides = [1, 1]} : vector<16x32xf32> to vector<16x8xf32>
    %123 = vector.shape_cast %122 : vector<16x8xf32> to vector<2x8x8xf32>
    %124 = vector.extract_strided_slice %118 {offsets = [0, 0], sizes = [16, 8], strides = [1, 1]} : vector<16x32xf32> to vector<16x8xf32>
    %125 = vector.shape_cast %124 : vector<16x8xf32> to vector<2x8x8xf32>
    %126 = vector.extract_strided_slice %121 {offsets = [0, 0], sizes = [16, 8], strides = [1, 1]} : vector<16x32xf32> to vector<16x8xf32>
    %127 = vector.shape_cast %126 : vector<16x8xf32> to vector<2x8x8xf32>
    "tpu.trace_start"() <{level = 10 : i32, message = "bqd,bkd->bqk"}> : () -> ()
    %cst_90 = arith.constant dense<0.000000e+00> : vector<2x8x8xf32>
    %128 = tpu.matmul %123, %125, %cst_90 {dimension_numbers = #tpu.dot_dimension_numbers<[2], [2], [1], [1], [0, 0, 0, 1, 1, 1], [0], [0]>} : vector<2x8x8xf32>, vector<2x8x8xf32>, vector<2x8x8xf32> -> vector<2x8x8xf32>
    "tpu.trace_stop"() : () -> ()
    %cst_91 = arith.constant 0.353553385 : f32
    %129 = vector.broadcast %cst_91 : f32 to vector<2x8x8xf32>
    %130 = arith.mulf %128, %129 : vector<2x8x8xf32>
    %131 = vector.shape_cast %80 : vector<2x8xf32> to vector<2x1x8xf32>
    %132 = vector.broadcast %131 : vector<2x1x8xf32> to vector<2x8x8xf32>
    %133 = arith.addf %130, %132 : vector<2x8x8xf32>
    %cst_92 = arith.constant dense<0xFF800000> : vector<2x8xf32>
    %134 = vector.multi_reduction <maximumf>, %133, %cst_92 [2] : vector<2x8x8xf32> to vector<2x8xf32>
    %135 = vector.shape_cast %134 : vector<2x8xf32> to vector<2x8x1xf32>
    %136 = vector.broadcast %135 : vector<2x8x1xf32> to vector<2x8x8xf32>
    %137 = arith.subf %133, %136 : vector<2x8x8xf32>
    %138 = math.exp %137 : vector<2x8x8xf32>
    %cst_93 = arith.constant dense<0.000000e+00> : vector<2x8xf32>
    %139 = vector.multi_reduction <add>, %138, %cst_93 [2] : vector<2x8x8xf32> to vector<2x8xf32>
    %140 = vector.shape_cast %139 : vector<2x8xf32> to vector<2x8x1xf32>
    %141 = tpu.reciprocal %140 {approx = true} : vector<2x8x1xf32> -> vector<2x8x1xf32>
    %142 = vector.broadcast %141 : vector<2x8x1xf32> to vector<2x8x8xf32>
    %143 = arith.mulf %138, %142 : vector<2x8x8xf32>
    "tpu.trace_start"() <{level = 10 : i32, message = "bqk,bkd->bqd"}> : () -> ()
    %cst_94 = arith.constant dense<0.000000e+00> : vector<2x8x8xf32>
    %144 = tpu.matmul %143, %127, %cst_94 {dimension_numbers = #tpu.dot_dimension_numbers<[2], [1], [1], [2], [0, 0, 0, 1, 1, 2], [0], [0]>} : vector<2x8x8xf32>, vector<2x8x8xf32>, vector<2x8x8xf32> -> vector<2x8x8xf32>
    "tpu.trace_stop"() : () -> ()
    %145 = vector.shape_cast %144 : vector<2x8x8xf32> to vector<16x8xf32>
    %146 = vector.extract_strided_slice %94 {offsets = [0, 0], sizes = [8, 32], strides = [1, 1]} : vector<32x32xf32> to vector<8x32xf32>
    %cst_95 = arith.constant dense<0.000000e+00> : vector<16x32xf32>
    %147 = tpu.matmul %145, %146, %cst_95 {dimension_numbers = #tpu.dot_dimension_numbers<[1], [0], [0], [1], [0, 0, 1, 1], [], []>} : vector<16x8xf32>, vector<8x32xf32>, vector<16x32xf32> -> vector<16x32xf32>
    %148 = vector.extract_strided_slice %115 {offsets = [0, 8], sizes = [16, 8], strides = [1, 1]} : vector<16x32xf32> to vector<16x8xf32>
    %149 = vector.shape_cast %148 : vector<16x8xf32> to vector<2x8x8xf32>
    %150 = vector.extract_strided_slice %118 {offsets = [0, 8], sizes = [16, 8], strides = [1, 1]} : vector<16x32xf32> to vector<16x8xf32>
    %151 = vector.shape_cast %150 : vector<16x8xf32> to vector<2x8x8xf32>
    %152 = vector.extract_strided_slice %121 {offsets = [0, 8], sizes = [16, 8], strides = [1, 1]} : vector<16x32xf32> to vector<16x8xf32>
    %153 = vector.shape_cast %152 : vector<16x8xf32> to vector<2x8x8xf32>
    "tpu.trace_start"() <{level = 10 : i32, message = "bqd,bkd->bqk"}> : () -> ()
    %cst_96 = arith.constant dense<0.000000e+00> : vector<2x8x8xf32>
    %154 = tpu.matmul %149, %151, %cst_96 {dimension_numbers = #tpu.dot_dimension_numbers<[2], [2], [1], [1], [0, 0, 0, 1, 1, 1], [0], [0]>} : vector<2x8x8xf32>, vector<2x8x8xf32>, vector<2x8x8xf32> -> vector<2x8x8xf32>
    "tpu.trace_stop"() : () -> ()
    %cst_97 = arith.constant 0.353553385 : f32
    %155 = vector.broadcast %cst_97 : f32 to vector<2x8x8xf32>
    %156 = arith.mulf %154, %155 : vector<2x8x8xf32>
    %157 = vector.shape_cast %80 : vector<2x8xf32> to vector<2x1x8xf32>
    %158 = vector.broadcast %157 : vector<2x1x8xf32> to vector<2x8x8xf32>
    %159 = arith.addf %156, %158 : vector<2x8x8xf32>
    %cst_98 = arith.constant dense<0xFF800000> : vector<2x8xf32>
    %160 = vector.multi_reduction <maximumf>, %159, %cst_98 [2] : vector<2x8x8xf32> to vector<2x8xf32>
    %161 = vector.shape_cast %160 : vector<2x8xf32> to vector<2x8x1xf32>
    %162 = vector.broadcast %161 : vector<2x8x1xf32> to vector<2x8x8xf32>
    %163 = arith.subf %159, %162 : vector<2x8x8xf32>
    %164 = math.exp %163 : vector<2x8x8xf32>
    %cst_99 = arith.constant dense<0.000000e+00> : vector<2x8xf32>
    %165 = vector.multi_reduction <add>, %164, %cst_99 [2] : vector<2x8x8xf32> to vector<2x8xf32>
    %166 = vector.shape_cast %165 : vector<2x8xf32> to vector<2x8x1xf32>
    %167 = tpu.reciprocal %166 {approx = true} : vector<2x8x1xf32> -> vector<2x8x1xf32>
    %168 = vector.broadcast %167 : vector<2x8x1xf32> to vector<2x8x8xf32>
    %169 = arith.mulf %164, %168 : vector<2x8x8xf32>
    "tpu.trace_start"() <{level = 10 : i32, message = "bqk,bkd->bqd"}> : () -> ()
    %cst_100 = arith.constant dense<0.000000e+00> : vector<2x8x8xf32>
    %170 = tpu.matmul %169, %153, %cst_100 {dimension_numbers = #tpu.dot_dimension_numbers<[2], [1], [1], [2], [0, 0, 0, 1, 1, 2], [0], [0]>} : vector<2x8x8xf32>, vector<2x8x8xf32>, vector<2x8x8xf32> -> vector<2x8x8xf32>
    "tpu.trace_stop"() : () -> ()
    %171 = vector.shape_cast %170 : vector<2x8x8xf32> to vector<16x8xf32>
    %172 = vector.extract_strided_slice %94 {offsets = [8, 0], sizes = [8, 32], strides = [1, 1]} : vector<32x32xf32> to vector<8x32xf32>
    %cst_101 = arith.constant dense<0.000000e+00> : vector<16x32xf32>
    %173 = tpu.matmul %171, %172, %cst_101 {dimension_numbers = #tpu.dot_dimension_numbers<[1], [0], [0], [1], [0, 0, 1, 1], [], []>} : vector<16x8xf32>, vector<8x32xf32>, vector<16x32xf32> -> vector<16x32xf32>
    %174 = arith.addf %147, %173 : vector<16x32xf32>
    %175 = vector.extract_strided_slice %115 {offsets = [0, 16], sizes = [16, 8], strides = [1, 1]} : vector<16x32xf32> to vector<16x8xf32>
    %176 = vector.shape_cast %175 : vector<16x8xf32> to vector<2x8x8xf32>
    %177 = vector.extract_strided_slice %118 {offsets = [0, 16], sizes = [16, 8], strides = [1, 1]} : vector<16x32xf32> to vector<16x8xf32>
    %178 = vector.shape_cast %177 : vector<16x8xf32> to vector<2x8x8xf32>
    %179 = vector.extract_strided_slice %121 {offsets = [0, 16], sizes = [16, 8], strides = [1, 1]} : vector<16x32xf32> to vector<16x8xf32>
    %180 = vector.shape_cast %179 : vector<16x8xf32> to vector<2x8x8xf32>
    "tpu.trace_start"() <{level = 10 : i32, message = "bqd,bkd->bqk"}> : () -> ()
    %cst_102 = arith.constant dense<0.000000e+00> : vector<2x8x8xf32>
    %181 = tpu.matmul %176, %178, %cst_102 {dimension_numbers = #tpu.dot_dimension_numbers<[2], [2], [1], [1], [0, 0, 0, 1, 1, 1], [0], [0]>} : vector<2x8x8xf32>, vector<2x8x8xf32>, vector<2x8x8xf32> -> vector<2x8x8xf32>
    "tpu.trace_stop"() : () -> ()
    %cst_103 = arith.constant 0.353553385 : f32
    %182 = vector.broadcast %cst_103 : f32 to vector<2x8x8xf32>
    %183 = arith.mulf %181, %182 : vector<2x8x8xf32>
    %184 = vector.shape_cast %80 : vector<2x8xf32> to vector<2x1x8xf32>
    %185 = vector.broadcast %184 : vector<2x1x8xf32> to vector<2x8x8xf32>
    %186 = arith.addf %183, %185 : vector<2x8x8xf32>
    %cst_104 = arith.constant dense<0xFF800000> : vector<2x8xf32>
    %187 = vector.multi_reduction <maximumf>, %186, %cst_104 [2] : vector<2x8x8xf32> to vector<2x8xf32>
    %188 = vector.shape_cast %187 : vector<2x8xf32> to vector<2x8x1xf32>
    %189 = vector.broadcast %188 : vector<2x8x1xf32> to vector<2x8x8xf32>
    %190 = arith.subf %186, %189 : vector<2x8x8xf32>
    %191 = math.exp %190 : vector<2x8x8xf32>
    %cst_105 = arith.constant dense<0.000000e+00> : vector<2x8xf32>
    %192 = vector.multi_reduction <add>, %191, %cst_105 [2] : vector<2x8x8xf32> to vector<2x8xf32>
    %193 = vector.shape_cast %192 : vector<2x8xf32> to vector<2x8x1xf32>
    %194 = tpu.reciprocal %193 {approx = true} : vector<2x8x1xf32> -> vector<2x8x1xf32>
    %195 = vector.broadcast %194 : vector<2x8x1xf32> to vector<2x8x8xf32>
    %196 = arith.mulf %191, %195 : vector<2x8x8xf32>
    "tpu.trace_start"() <{level = 10 : i32, message = "bqk,bkd->bqd"}> : () -> ()
    %cst_106 = arith.constant dense<0.000000e+00> : vector<2x8x8xf32>
    %197 = tpu.matmul %196, %180, %cst_106 {dimension_numbers = #tpu.dot_dimension_numbers<[2], [1], [1], [2], [0, 0, 0, 1, 1, 2], [0], [0]>} : vector<2x8x8xf32>, vector<2x8x8xf32>, vector<2x8x8xf32> -> vector<2x8x8xf32>
    "tpu.trace_stop"() : () -> ()
    %198 = vector.shape_cast %197 : vector<2x8x8xf32> to vector<16x8xf32>
    %199 = vector.extract_strided_slice %94 {offsets = [16, 0], sizes = [8, 32], strides = [1, 1]} : vector<32x32xf32> to vector<8x32xf32>
    %cst_107 = arith.constant dense<0.000000e+00> : vector<16x32xf32>
    %200 = tpu.matmul %198, %199, %cst_107 {dimension_numbers = #tpu.dot_dimension_numbers<[1], [0], [0], [1], [0, 0, 1, 1], [], []>} : vector<16x8xf32>, vector<8x32xf32>, vector<16x32xf32> -> vector<16x32xf32>
    %201 = arith.addf %174, %200 : vector<16x32xf32>
    %202 = vector.extract_strided_slice %115 {offsets = [0, 24], sizes = [16, 8], strides = [1, 1]} : vector<16x32xf32> to vector<16x8xf32>
    %203 = vector.shape_cast %202 : vector<16x8xf32> to vector<2x8x8xf32>
    %204 = vector.extract_strided_slice %118 {offsets = [0, 24], sizes = [16, 8], strides = [1, 1]} : vector<16x32xf32> to vector<16x8xf32>
    %205 = vector.shape_cast %204 : vector<16x8xf32> to vector<2x8x8xf32>
    %206 = vector.extract_strided_slice %121 {offsets = [0, 24], sizes = [16, 8], strides = [1, 1]} : vector<16x32xf32> to vector<16x8xf32>
    %207 = vector.shape_cast %206 : vector<16x8xf32> to vector<2x8x8xf32>
    "tpu.trace_start"() <{level = 10 : i32, message = "bqd,bkd->bqk"}> : () -> ()
    %cst_108 = arith.constant dense<0.000000e+00> : vector<2x8x8xf32>
    %208 = tpu.matmul %203, %205, %cst_108 {dimension_numbers = #tpu.dot_dimension_numbers<[2], [2], [1], [1], [0, 0, 0, 1, 1, 1], [0], [0]>} : vector<2x8x8xf32>, vector<2x8x8xf32>, vector<2x8x8xf32> -> vector<2x8x8xf32>
    "tpu.trace_stop"() : () -> ()
    %cst_109 = arith.constant 0.353553385 : f32
    %209 = vector.broadcast %cst_109 : f32 to vector<2x8x8xf32>
    %210 = arith.mulf %208, %209 : vector<2x8x8xf32>
    %211 = vector.shape_cast %80 : vector<2x8xf32> to vector<2x1x8xf32>
    %212 = vector.broadcast %211 : vector<2x1x8xf32> to vector<2x8x8xf32>
    %213 = arith.addf %210, %212 : vector<2x8x8xf32>
    %cst_110 = arith.constant dense<0xFF800000> : vector<2x8xf32>
    %214 = vector.multi_reduction <maximumf>, %213, %cst_110 [2] : vector<2x8x8xf32> to vector<2x8xf32>
    %215 = vector.shape_cast %214 : vector<2x8xf32> to vector<2x8x1xf32>
    %216 = vector.broadcast %215 : vector<2x8x1xf32> to vector<2x8x8xf32>
    %217 = arith.subf %213, %216 : vector<2x8x8xf32>
    %218 = math.exp %217 : vector<2x8x8xf32>
    %cst_111 = arith.constant dense<0.000000e+00> : vector<2x8xf32>
    %219 = vector.multi_reduction <add>, %218, %cst_111 [2] : vector<2x8x8xf32> to vector<2x8xf32>
    %220 = vector.shape_cast %219 : vector<2x8xf32> to vector<2x8x1xf32>
    %221 = tpu.reciprocal %220 {approx = true} : vector<2x8x1xf32> -> vector<2x8x1xf32>
    %222 = vector.broadcast %221 : vector<2x8x1xf32> to vector<2x8x8xf32>
    %223 = arith.mulf %218, %222 : vector<2x8x8xf32>
    "tpu.trace_start"() <{level = 10 : i32, message = "bqk,bkd->bqd"}> : () -> ()
    %cst_112 = arith.constant dense<0.000000e+00> : vector<2x8x8xf32>
    %224 = tpu.matmul %223, %207, %cst_112 {dimension_numbers = #tpu.dot_dimension_numbers<[2], [1], [1], [2], [0, 0, 0, 1, 1, 2], [0], [0]>} : vector<2x8x8xf32>, vector<2x8x8xf32>, vector<2x8x8xf32> -> vector<2x8x8xf32>
    "tpu.trace_stop"() : () -> ()
    %225 = vector.shape_cast %224 : vector<2x8x8xf32> to vector<16x8xf32>
    %226 = vector.extract_strided_slice %94 {offsets = [24, 0], sizes = [8, 32], strides = [1, 1]} : vector<32x32xf32> to vector<8x32xf32>
    %cst_113 = arith.constant dense<0.000000e+00> : vector<16x32xf32>
    %227 = tpu.matmul %225, %226, %cst_113 {dimension_numbers = #tpu.dot_dimension_numbers<[1], [0], [0], [1], [0, 0, 1, 1], [], []>} : vector<16x8xf32>, vector<8x32xf32>, vector<16x32xf32> -> vector<16x32xf32>
    %228 = arith.addf %201, %227 : vector<16x32xf32>
    %229 = vector.broadcast %96 : vector<1x32xf32> to vector<16x32xf32>
    %230 = arith.addf %228, %229 : vector<16x32xf32>
    %231 = arith.addf %230, %75 : vector<16x32xf32>
    %cst_114 = arith.constant dense<0.000000e+00> : vector<16xf32>
    %232 = vector.multi_reduction <add>, %231, %cst_114 [1] : vector<16x32xf32> to vector<16xf32>
    %233 = vector.shape_cast %232 : vector<16xf32> to vector<16x1xf32>
    %cst_115 = arith.constant 3.200000e+01 : f32
    %234 = vector.broadcast %cst_115 : f32 to vector<16x1xf32>
    %235 = arith.divf %233, %234 : vector<16x1xf32>
    %236 = vector.broadcast %235 : vector<16x1xf32> to vector<16x32xf32>
    %237 = arith.subf %231, %236 : vector<16x32xf32>
    %238 = arith.mulf %237, %237 : vector<16x32xf32>
    %cst_116 = arith.constant dense<0.000000e+00> : vector<16xf32>
    %239 = vector.multi_reduction <add>, %238, %cst_116 [1] : vector<16x32xf32> to vector<16xf32>
    %240 = vector.shape_cast %239 : vector<16xf32> to vector<16x1xf32>
    %cst_117 = arith.constant 3.200000e+01 : f32
    %241 = vector.broadcast %cst_117 : f32 to vector<16x1xf32>
    %242 = arith.divf %240, %241 : vector<16x1xf32>
    %243 = vector.broadcast %235 : vector<16x1xf32> to vector<16x32xf32>
    %244 = arith.subf %231, %243 : vector<16x32xf32>
    %cst_118 = arith.constant 9.99999996E-13 : f32
    %245 = vector.broadcast %cst_118 : f32 to vector<16x1xf32>
    %246 = arith.addf %242, %245 : vector<16x1xf32>
    %247 = math.rsqrt %246 : vector<16x1xf32>
    %248 = vector.broadcast %247 : vector<16x1xf32> to vector<16x32xf32>
    %249 = arith.mulf %244, %248 : vector<16x32xf32>
    %250 = vector.broadcast %98 : vector<1x32xf32> to vector<16x32xf32>
    %251 = arith.mulf %249, %250 : vector<16x32xf32>
    %252 = vector.broadcast %100 : vector<1x32xf32> to vector<16x32xf32>
    %253 = arith.addf %251, %252 : vector<16x32xf32>
    %cst_119 = arith.constant dense<0.000000e+00> : vector<16x128xf32>
    %254 = tpu.matmul %253, %102, %cst_119 {dimension_numbers = #tpu.dot_dimension_numbers<[1], [0], [0], [1], [0, 0, 1, 1], [], []>} : vector<16x32xf32>, vector<32x128xf32>, vector<16x128xf32> -> vector<16x128xf32>
    %255 = vector.broadcast %104 : vector<1x128xf32> to vector<16x128xf32>
    %256 = arith.addf %254, %255 : vector<16x128xf32>
    %cst_120 = arith.constant 5.000000e-01 : f32
    %257 = vector.broadcast %cst_120 : f32 to vector<16x128xf32>
    %258 = arith.mulf %257, %256 : vector<16x128xf32>
    %cst_121 = arith.constant 1.41421354 : f32
    %259 = vector.broadcast %cst_121 : f32 to vector<16x128xf32>
    %260 = arith.divf %256, %259 : vector<16x128xf32>
    %cst_122 = arith.constant 0.000000e+00 : f32
    %261 = vector.broadcast %cst_122 : f32 to vector<16x128xf32>
    %262 = arith.cmpf olt, %260, %261 : vector<16x128xf32>
    %cst_123 = arith.constant -1.000000e+00 : f32
    %cst_124 = arith.constant 1.000000e+00 : f32
    %263 = vector.broadcast %cst_123 : f32 to vector<16x128xf32>
    %264 = vector.broadcast %cst_124 : f32 to vector<16x128xf32>
    %265 = arith.select %262, %263, %264 : vector<16x128xi1>, vector<16x128xf32>
    %266 = math.absf %260 : vector<16x128xf32>
    %cst_125 = arith.constant 0.327591091 : f32
    %267 = vector.broadcast %cst_125 : f32 to vector<16x128xf32>
    %268 = arith.mulf %267, %266 : vector<16x128xf32>
    %cst_126 = arith.constant 1.000000e+00 : f32
    %269 = vector.broadcast %cst_126 : f32 to vector<16x128xf32>
    %270 = arith.addf %269, %268 : vector<16x128xf32>
    %cst_127 = arith.constant 1.000000e+00 : f32
    %271 = vector.broadcast %cst_127 : f32 to vector<16x128xf32>
    %272 = arith.divf %271, %270 : vector<16x128xf32>
    %cst_128 = arith.constant 1.06140542 : f32
    %273 = vector.broadcast %cst_128 : f32 to vector<16x128xf32>
    %274 = arith.mulf %273, %272 : vector<16x128xf32>
    %cst_129 = arith.constant -1.45315206 : f32
    %275 = vector.broadcast %cst_129 : f32 to vector<16x128xf32>
    %276 = arith.addf %274, %275 : vector<16x128xf32>
    %277 = arith.mulf %276, %272 : vector<16x128xf32>
    %cst_130 = arith.constant 1.42141378 : f32
    %278 = vector.broadcast %cst_130 : f32 to vector<16x128xf32>
    %279 = arith.addf %277, %278 : vector<16x128xf32>
    %280 = arith.mulf %279, %272 : vector<16x128xf32>
    %cst_131 = arith.constant -0.284496725 : f32
    %281 = vector.broadcast %cst_131 : f32 to vector<16x128xf32>
    %282 = arith.addf %280, %281 : vector<16x128xf32>
    %283 = arith.mulf %282, %272 : vector<16x128xf32>
    %cst_132 = arith.constant 0.254829586 : f32
    %284 = vector.broadcast %cst_132 : f32 to vector<16x128xf32>
    %285 = arith.addf %283, %284 : vector<16x128xf32>
    %286 = arith.mulf %285, %272 : vector<16x128xf32>
    %cst_133 = arith.constant 0.000000e+00 : f32
    %287 = vector.broadcast %cst_133 : f32 to vector<16x128xf32>
    %288 = arith.subf %287, %266 : vector<16x128xf32>
    %289 = arith.mulf %288, %266 : vector<16x128xf32>
    %290 = math.exp %289 : vector<16x128xf32>
    %291 = arith.mulf %286, %290 : vector<16x128xf32>
    %cst_134 = arith.constant 1.000000e+00 : f32
    %292 = vector.broadcast %cst_134 : f32 to vector<16x128xf32>
    %293 = arith.subf %292, %291 : vector<16x128xf32>
    %294 = arith.mulf %265, %293 : vector<16x128xf32>
    %cst_135 = arith.constant 1.000000e+00 : f32
    %295 = vector.broadcast %cst_135 : f32 to vector<16x128xf32>
    %296 = arith.addf %295, %294 : vector<16x128xf32>
    %297 = arith.mulf %258, %296 : vector<16x128xf32>
    %cst_136 = arith.constant dense<0.000000e+00> : vector<16x32xf32>
    %298 = tpu.matmul %297, %106, %cst_136 {dimension_numbers = #tpu.dot_dimension_numbers<[1], [0], [0], [1], [0, 0, 1, 1], [], []>} : vector<16x128xf32>, vector<128x32xf32>, vector<16x32xf32> -> vector<16x32xf32>
    %299 = vector.broadcast %108 : vector<1x32xf32> to vector<16x32xf32>
    %300 = arith.addf %298, %299 : vector<16x32xf32>
    %301 = arith.addf %300, %253 : vector<16x32xf32>
    %cst_137 = arith.constant dense<0.000000e+00> : vector<16xf32>
    %302 = vector.multi_reduction <add>, %301, %cst_137 [1] : vector<16x32xf32> to vector<16xf32>
    %303 = vector.shape_cast %302 : vector<16xf32> to vector<16x1xf32>
    %cst_138 = arith.constant 3.200000e+01 : f32
    %304 = vector.broadcast %cst_138 : f32 to vector<16x1xf32>
    %305 = arith.divf %303, %304 : vector<16x1xf32>
    %306 = vector.broadcast %305 : vector<16x1xf32> to vector<16x32xf32>
    %307 = arith.subf %301, %306 : vector<16x32xf32>
    %308 = arith.mulf %307, %307 : vector<16x32xf32>
    %cst_139 = arith.constant dense<0.000000e+00> : vector<16xf32>
    %309 = vector.multi_reduction <add>, %308, %cst_139 [1] : vector<16x32xf32> to vector<16xf32>
    %310 = vector.shape_cast %309 : vector<16xf32> to vector<16x1xf32>
    %cst_140 = arith.constant 3.200000e+01 : f32
    %311 = vector.broadcast %cst_140 : f32 to vector<16x1xf32>
    %312 = arith.divf %310, %311 : vector<16x1xf32>
    %313 = vector.broadcast %305 : vector<16x1xf32> to vector<16x32xf32>
    %314 = arith.subf %301, %313 : vector<16x32xf32>
    %cst_141 = arith.constant 9.99999996E-13 : f32
    %315 = vector.broadcast %cst_141 : f32 to vector<16x1xf32>
    %316 = arith.addf %312, %315 : vector<16x1xf32>
    %317 = math.rsqrt %316 : vector<16x1xf32>
    %318 = vector.broadcast %317 : vector<16x1xf32> to vector<16x32xf32>
    %319 = arith.mulf %314, %318 : vector<16x32xf32>
    %320 = vector.broadcast %110 : vector<1x32xf32> to vector<16x32xf32>
    %321 = arith.mulf %319, %320 : vector<16x32xf32>
    %322 = vector.broadcast %112 : vector<1x32xf32> to vector<16x32xf32>
    %323 = arith.addf %321, %322 : vector<16x32xf32>
    %c1 = arith.constant 1 : index
    %c0_142 = arith.constant 0 : index
    %c0_143 = arith.constant 0 : index
    %324 = vector.load %arg8[%c1, %c0_142, %c0_143] : memref<2x32x32xf32, #tpu.memory_space<vmem>>, vector<1x32x32xf32>
    %325 = vector.shape_cast %324 : vector<1x32x32xf32> to vector<32x32xf32>
    %c1_144 = arith.constant 1 : index
    %c0_145 = arith.constant 0 : index
    %c0_146 = arith.constant 0 : index
    %326 = vector.load %arg9[%c1_144, %c0_145, %c0_146] : memref<2x1x32xf32, #tpu.memory_space<vmem>>, vector<1x1x32xf32>
    %327 = vector.shape_cast %326 : vector<1x1x32xf32> to vector<1x32xf32>
    %c1_147 = arith.constant 1 : index
    %c0_148 = arith.constant 0 : index
    %c0_149 = arith.constant 0 : index
    %328 = vector.load %arg10[%c1_147, %c0_148, %c0_149] : memref<2x32x32xf32, #tpu.memory_space<vmem>>, vector<1x32x32xf32>
    %329 = vector.shape_cast %328 : vector<1x32x32xf32> to vector<32x32xf32>
    %c1_150 = arith.constant 1 : index
    %c0_151 = arith.constant 0 : index
    %c0_152 = arith.constant 0 : index
    %330 = vector.load %arg11[%c1_150, %c0_151, %c0_152] : memref<2x1x32xf32, #tpu.memory_space<vmem>>, vector<1x1x32xf32>
    %331 = vector.shape_cast %330 : vector<1x1x32xf32> to vector<1x32xf32>
    %c1_153 = arith.constant 1 : index
    %c0_154 = arith.constant 0 : index
    %c0_155 = arith.constant 0 : index
    %332 = vector.load %arg12[%c1_153, %c0_154, %c0_155] : memref<2x32x32xf32, #tpu.memory_space<vmem>>, vector<1x32x32xf32>
    %333 = vector.shape_cast %332 : vector<1x32x32xf32> to vector<32x32xf32>
    %c1_156 = arith.constant 1 : index
    %c0_157 = arith.constant 0 : index
    %c0_158 = arith.constant 0 : index
    %334 = vector.load %arg13[%c1_156, %c0_157, %c0_158] : memref<2x1x32xf32, #tpu.memory_space<vmem>>, vector<1x1x32xf32>
    %335 = vector.shape_cast %334 : vector<1x1x32xf32> to vector<1x32xf32>
    %c1_159 = arith.constant 1 : index
    %c0_160 = arith.constant 0 : index
    %c0_161 = arith.constant 0 : index
    %336 = vector.load %arg14[%c1_159, %c0_160, %c0_161] : memref<2x32x32xf32, #tpu.memory_space<vmem>>, vector<1x32x32xf32>
    %337 = vector.shape_cast %336 : vector<1x32x32xf32> to vector<32x32xf32>
    %c1_162 = arith.constant 1 : index
    %c0_163 = arith.constant 0 : index
    %c0_164 = arith.constant 0 : index
    %338 = vector.load %arg15[%c1_162, %c0_163, %c0_164] : memref<2x1x32xf32, #tpu.memory_space<vmem>>, vector<1x1x32xf32>
    %339 = vector.shape_cast %338 : vector<1x1x32xf32> to vector<1x32xf32>
    %c1_165 = arith.constant 1 : index
    %c0_166 = arith.constant 0 : index
    %c0_167 = arith.constant 0 : index
    %340 = vector.load %arg16[%c1_165, %c0_166, %c0_167] : memref<2x1x32xf32, #tpu.memory_space<vmem>>, vector<1x1x32xf32>
    %341 = vector.shape_cast %340 : vector<1x1x32xf32> to vector<1x32xf32>
    %c1_168 = arith.constant 1 : index
    %c0_169 = arith.constant 0 : index
    %c0_170 = arith.constant 0 : index
    %342 = vector.load %arg17[%c1_168, %c0_169, %c0_170] : memref<2x1x32xf32, #tpu.memory_space<vmem>>, vector<1x1x32xf32>
    %343 = vector.shape_cast %342 : vector<1x1x32xf32> to vector<1x32xf32>
    %c1_171 = arith.constant 1 : index
    %c0_172 = arith.constant 0 : index
    %c0_173 = arith.constant 0 : index
    %344 = vector.load %arg18[%c1_171, %c0_172, %c0_173] : memref<2x32x128xf32, #tpu.memory_space<vmem>>, vector<1x32x128xf32>
    %345 = vector.shape_cast %344 : vector<1x32x128xf32> to vector<32x128xf32>
    %c1_174 = arith.constant 1 : index
    %c0_175 = arith.constant 0 : index
    %c0_176 = arith.constant 0 : index
    %346 = vector.load %arg19[%c1_174, %c0_175, %c0_176] : memref<2x1x128xf32, #tpu.memory_space<vmem>>, vector<1x1x128xf32>
    %347 = vector.shape_cast %346 : vector<1x1x128xf32> to vector<1x128xf32>
    %c1_177 = arith.constant 1 : index
    %c0_178 = arith.constant 0 : index
    %c0_179 = arith.constant 0 : index
    %348 = vector.load %arg20[%c1_177, %c0_178, %c0_179] : memref<2x128x32xf32, #tpu.memory_space<vmem>>, vector<1x128x32xf32>
    %349 = vector.shape_cast %348 : vector<1x128x32xf32> to vector<128x32xf32>
    %c1_180 = arith.constant 1 : index
    %c0_181 = arith.constant 0 : index
    %c0_182 = arith.constant 0 : index
    %350 = vector.load %arg21[%c1_180, %c0_181, %c0_182] : memref<2x1x32xf32, #tpu.memory_space<vmem>>, vector<1x1x32xf32>
    %351 = vector.shape_cast %350 : vector<1x1x32xf32> to vector<1x32xf32>
    %c1_183 = arith.constant 1 : index
    %c0_184 = arith.constant 0 : index
    %c0_185 = arith.constant 0 : index
    %352 = vector.load %arg22[%c1_183, %c0_184, %c0_185] : memref<2x1x32xf32, #tpu.memory_space<vmem>>, vector<1x1x32xf32>
    %353 = vector.shape_cast %352 : vector<1x1x32xf32> to vector<1x32xf32>
    %c1_186 = arith.constant 1 : index
    %c0_187 = arith.constant 0 : index
    %c0_188 = arith.constant 0 : index
    %354 = vector.load %arg23[%c1_186, %c0_187, %c0_188] : memref<2x1x32xf32, #tpu.memory_space<vmem>>, vector<1x1x32xf32>
    %355 = vector.shape_cast %354 : vector<1x1x32xf32> to vector<1x32xf32>
    %cst_189 = arith.constant dense<0.000000e+00> : vector<16x32xf32>
    %356 = tpu.matmul %323, %325, %cst_189 {dimension_numbers = #tpu.dot_dimension_numbers<[1], [0], [0], [1], [0, 0, 1, 1], [], []>} : vector<16x32xf32>, vector<32x32xf32>, vector<16x32xf32> -> vector<16x32xf32>
    %357 = vector.broadcast %327 : vector<1x32xf32> to vector<16x32xf32>
    %358 = arith.addf %356, %357 : vector<16x32xf32>
    %cst_190 = arith.constant dense<0.000000e+00> : vector<16x32xf32>
    %359 = tpu.matmul %323, %329, %cst_190 {dimension_numbers = #tpu.dot_dimension_numbers<[1], [0], [0], [1], [0, 0, 1, 1], [], []>} : vector<16x32xf32>, vector<32x32xf32>, vector<16x32xf32> -> vector<16x32xf32>
    %360 = vector.broadcast %331 : vector<1x32xf32> to vector<16x32xf32>
    %361 = arith.addf %359, %360 : vector<16x32xf32>
    %cst_191 = arith.constant dense<0.000000e+00> : vector<16x32xf32>
    %362 = tpu.matmul %323, %333, %cst_191 {dimension_numbers = #tpu.dot_dimension_numbers<[1], [0], [0], [1], [0, 0, 1, 1], [], []>} : vector<16x32xf32>, vector<32x32xf32>, vector<16x32xf32> -> vector<16x32xf32>
    %363 = vector.broadcast %335 : vector<1x32xf32> to vector<16x32xf32>
    %364 = arith.addf %362, %363 : vector<16x32xf32>
    %365 = vector.extract_strided_slice %358 {offsets = [0, 0], sizes = [16, 8], strides = [1, 1]} : vector<16x32xf32> to vector<16x8xf32>
    %366 = vector.shape_cast %365 : vector<16x8xf32> to vector<2x8x8xf32>
    %367 = vector.extract_strided_slice %361 {offsets = [0, 0], sizes = [16, 8], strides = [1, 1]} : vector<16x32xf32> to vector<16x8xf32>
    %368 = vector.shape_cast %367 : vector<16x8xf32> to vector<2x8x8xf32>
    %369 = vector.extract_strided_slice %364 {offsets = [0, 0], sizes = [16, 8], strides = [1, 1]} : vector<16x32xf32> to vector<16x8xf32>
    %370 = vector.shape_cast %369 : vector<16x8xf32> to vector<2x8x8xf32>
    "tpu.trace_start"() <{level = 10 : i32, message = "bqd,bkd->bqk"}> : () -> ()
    %cst_192 = arith.constant dense<0.000000e+00> : vector<2x8x8xf32>
    %371 = tpu.matmul %366, %368, %cst_192 {dimension_numbers = #tpu.dot_dimension_numbers<[2], [2], [1], [1], [0, 0, 0, 1, 1, 1], [0], [0]>} : vector<2x8x8xf32>, vector<2x8x8xf32>, vector<2x8x8xf32> -> vector<2x8x8xf32>
    "tpu.trace_stop"() : () -> ()
    %cst_193 = arith.constant 0.353553385 : f32
    %372 = vector.broadcast %cst_193 : f32 to vector<2x8x8xf32>
    %373 = arith.mulf %371, %372 : vector<2x8x8xf32>
    %374 = vector.shape_cast %80 : vector<2x8xf32> to vector<2x1x8xf32>
    %375 = vector.broadcast %374 : vector<2x1x8xf32> to vector<2x8x8xf32>
    %376 = arith.addf %373, %375 : vector<2x8x8xf32>
    %cst_194 = arith.constant dense<0xFF800000> : vector<2x8xf32>
    %377 = vector.multi_reduction <maximumf>, %376, %cst_194 [2] : vector<2x8x8xf32> to vector<2x8xf32>
    %378 = vector.shape_cast %377 : vector<2x8xf32> to vector<2x8x1xf32>
    %379 = vector.broadcast %378 : vector<2x8x1xf32> to vector<2x8x8xf32>
    %380 = arith.subf %376, %379 : vector<2x8x8xf32>
    %381 = math.exp %380 : vector<2x8x8xf32>
    %cst_195 = arith.constant dense<0.000000e+00> : vector<2x8xf32>
    %382 = vector.multi_reduction <add>, %381, %cst_195 [2] : vector<2x8x8xf32> to vector<2x8xf32>
    %383 = vector.shape_cast %382 : vector<2x8xf32> to vector<2x8x1xf32>
    %384 = tpu.reciprocal %383 {approx = true} : vector<2x8x1xf32> -> vector<2x8x1xf32>
    %385 = vector.broadcast %384 : vector<2x8x1xf32> to vector<2x8x8xf32>
    %386 = arith.mulf %381, %385 : vector<2x8x8xf32>
    "tpu.trace_start"() <{level = 10 : i32, message = "bqk,bkd->bqd"}> : () -> ()
    %cst_196 = arith.constant dense<0.000000e+00> : vector<2x8x8xf32>
    %387 = tpu.matmul %386, %370, %cst_196 {dimension_numbers = #tpu.dot_dimension_numbers<[2], [1], [1], [2], [0, 0, 0, 1, 1, 2], [0], [0]>} : vector<2x8x8xf32>, vector<2x8x8xf32>, vector<2x8x8xf32> -> vector<2x8x8xf32>
    "tpu.trace_stop"() : () -> ()
    %388 = vector.shape_cast %387 : vector<2x8x8xf32> to vector<16x8xf32>
    %389 = vector.extract_strided_slice %337 {offsets = [0, 0], sizes = [8, 32], strides = [1, 1]} : vector<32x32xf32> to vector<8x32xf32>
    %cst_197 = arith.constant dense<0.000000e+00> : vector<16x32xf32>
    %390 = tpu.matmul %388, %389, %cst_197 {dimension_numbers = #tpu.dot_dimension_numbers<[1], [0], [0], [1], [0, 0, 1, 1], [], []>} : vector<16x8xf32>, vector<8x32xf32>, vector<16x32xf32> -> vector<16x32xf32>
    %391 = vector.extract_strided_slice %358 {offsets = [0, 8], sizes = [16, 8], strides = [1, 1]} : vector<16x32xf32> to vector<16x8xf32>
    %392 = vector.shape_cast %391 : vector<16x8xf32> to vector<2x8x8xf32>
    %393 = vector.extract_strided_slice %361 {offsets = [0, 8], sizes = [16, 8], strides = [1, 1]} : vector<16x32xf32> to vector<16x8xf32>
    %394 = vector.shape_cast %393 : vector<16x8xf32> to vector<2x8x8xf32>
    %395 = vector.extract_strided_slice %364 {offsets = [0, 8], sizes = [16, 8], strides = [1, 1]} : vector<16x32xf32> to vector<16x8xf32>
    %396 = vector.shape_cast %395 : vector<16x8xf32> to vector<2x8x8xf32>
    "tpu.trace_start"() <{level = 10 : i32, message = "bqd,bkd->bqk"}> : () -> ()
    %cst_198 = arith.constant dense<0.000000e+00> : vector<2x8x8xf32>
    %397 = tpu.matmul %392, %394, %cst_198 {dimension_numbers = #tpu.dot_dimension_numbers<[2], [2], [1], [1], [0, 0, 0, 1, 1, 1], [0], [0]>} : vector<2x8x8xf32>, vector<2x8x8xf32>, vector<2x8x8xf32> -> vector<2x8x8xf32>
    "tpu.trace_stop"() : () -> ()
    %cst_199 = arith.constant 0.353553385 : f32
    %398 = vector.broadcast %cst_199 : f32 to vector<2x8x8xf32>
    %399 = arith.mulf %397, %398 : vector<2x8x8xf32>
    %400 = vector.shape_cast %80 : vector<2x8xf32> to vector<2x1x8xf32>
    %401 = vector.broadcast %400 : vector<2x1x8xf32> to vector<2x8x8xf32>
    %402 = arith.addf %399, %401 : vector<2x8x8xf32>
    %cst_200 = arith.constant dense<0xFF800000> : vector<2x8xf32>
    %403 = vector.multi_reduction <maximumf>, %402, %cst_200 [2] : vector<2x8x8xf32> to vector<2x8xf32>
    %404 = vector.shape_cast %403 : vector<2x8xf32> to vector<2x8x1xf32>
    %405 = vector.broadcast %404 : vector<2x8x1xf32> to vector<2x8x8xf32>
    %406 = arith.subf %402, %405 : vector<2x8x8xf32>
    %407 = math.exp %406 : vector<2x8x8xf32>
    %cst_201 = arith.constant dense<0.000000e+00> : vector<2x8xf32>
    %408 = vector.multi_reduction <add>, %407, %cst_201 [2] : vector<2x8x8xf32> to vector<2x8xf32>
    %409 = vector.shape_cast %408 : vector<2x8xf32> to vector<2x8x1xf32>
    %410 = tpu.reciprocal %409 {approx = true} : vector<2x8x1xf32> -> vector<2x8x1xf32>
    %411 = vector.broadcast %410 : vector<2x8x1xf32> to vector<2x8x8xf32>
    %412 = arith.mulf %407, %411 : vector<2x8x8xf32>
    "tpu.trace_start"() <{level = 10 : i32, message = "bqk,bkd->bqd"}> : () -> ()
    %cst_202 = arith.constant dense<0.000000e+00> : vector<2x8x8xf32>
    %413 = tpu.matmul %412, %396, %cst_202 {dimension_numbers = #tpu.dot_dimension_numbers<[2], [1], [1], [2], [0, 0, 0, 1, 1, 2], [0], [0]>} : vector<2x8x8xf32>, vector<2x8x8xf32>, vector<2x8x8xf32> -> vector<2x8x8xf32>
    "tpu.trace_stop"() : () -> ()
    %414 = vector.shape_cast %413 : vector<2x8x8xf32> to vector<16x8xf32>
    %415 = vector.extract_strided_slice %337 {offsets = [8, 0], sizes = [8, 32], strides = [1, 1]} : vector<32x32xf32> to vector<8x32xf32>
    %cst_203 = arith.constant dense<0.000000e+00> : vector<16x32xf32>
    %416 = tpu.matmul %414, %415, %cst_203 {dimension_numbers = #tpu.dot_dimension_numbers<[1], [0], [0], [1], [0, 0, 1, 1], [], []>} : vector<16x8xf32>, vector<8x32xf32>, vector<16x32xf32> -> vector<16x32xf32>
    %417 = arith.addf %390, %416 : vector<16x32xf32>
    %418 = vector.extract_strided_slice %358 {offsets = [0, 16], sizes = [16, 8], strides = [1, 1]} : vector<16x32xf32> to vector<16x8xf32>
    %419 = vector.shape_cast %418 : vector<16x8xf32> to vector<2x8x8xf32>
    %420 = vector.extract_strided_slice %361 {offsets = [0, 16], sizes = [16, 8], strides = [1, 1]} : vector<16x32xf32> to vector<16x8xf32>
    %421 = vector.shape_cast %420 : vector<16x8xf32> to vector<2x8x8xf32>
    %422 = vector.extract_strided_slice %364 {offsets = [0, 16], sizes = [16, 8], strides = [1, 1]} : vector<16x32xf32> to vector<16x8xf32>
    %423 = vector.shape_cast %422 : vector<16x8xf32> to vector<2x8x8xf32>
    "tpu.trace_start"() <{level = 10 : i32, message = "bqd,bkd->bqk"}> : () -> ()
    %cst_204 = arith.constant dense<0.000000e+00> : vector<2x8x8xf32>
    %424 = tpu.matmul %419, %421, %cst_204 {dimension_numbers = #tpu.dot_dimension_numbers<[2], [2], [1], [1], [0, 0, 0, 1, 1, 1], [0], [0]>} : vector<2x8x8xf32>, vector<2x8x8xf32>, vector<2x8x8xf32> -> vector<2x8x8xf32>
    "tpu.trace_stop"() : () -> ()
    %cst_205 = arith.constant 0.353553385 : f32
    %425 = vector.broadcast %cst_205 : f32 to vector<2x8x8xf32>
    %426 = arith.mulf %424, %425 : vector<2x8x8xf32>
    %427 = vector.shape_cast %80 : vector<2x8xf32> to vector<2x1x8xf32>
    %428 = vector.broadcast %427 : vector<2x1x8xf32> to vector<2x8x8xf32>
    %429 = arith.addf %426, %428 : vector<2x8x8xf32>
    %cst_206 = arith.constant dense<0xFF800000> : vector<2x8xf32>
    %430 = vector.multi_reduction <maximumf>, %429, %cst_206 [2] : vector<2x8x8xf32> to vector<2x8xf32>
    %431 = vector.shape_cast %430 : vector<2x8xf32> to vector<2x8x1xf32>
    %432 = vector.broadcast %431 : vector<2x8x1xf32> to vector<2x8x8xf32>
    %433 = arith.subf %429, %432 : vector<2x8x8xf32>
    %434 = math.exp %433 : vector<2x8x8xf32>
    %cst_207 = arith.constant dense<0.000000e+00> : vector<2x8xf32>
    %435 = vector.multi_reduction <add>, %434, %cst_207 [2] : vector<2x8x8xf32> to vector<2x8xf32>
    %436 = vector.shape_cast %435 : vector<2x8xf32> to vector<2x8x1xf32>
    %437 = tpu.reciprocal %436 {approx = true} : vector<2x8x1xf32> -> vector<2x8x1xf32>
    %438 = vector.broadcast %437 : vector<2x8x1xf32> to vector<2x8x8xf32>
    %439 = arith.mulf %434, %438 : vector<2x8x8xf32>
    "tpu.trace_start"() <{level = 10 : i32, message = "bqk,bkd->bqd"}> : () -> ()
    %cst_208 = arith.constant dense<0.000000e+00> : vector<2x8x8xf32>
    %440 = tpu.matmul %439, %423, %cst_208 {dimension_numbers = #tpu.dot_dimension_numbers<[2], [1], [1], [2], [0, 0, 0, 1, 1, 2], [0], [0]>} : vector<2x8x8xf32>, vector<2x8x8xf32>, vector<2x8x8xf32> -> vector<2x8x8xf32>
    "tpu.trace_stop"() : () -> ()
    %441 = vector.shape_cast %440 : vector<2x8x8xf32> to vector<16x8xf32>
    %442 = vector.extract_strided_slice %337 {offsets = [16, 0], sizes = [8, 32], strides = [1, 1]} : vector<32x32xf32> to vector<8x32xf32>
    %cst_209 = arith.constant dense<0.000000e+00> : vector<16x32xf32>
    %443 = tpu.matmul %441, %442, %cst_209 {dimension_numbers = #tpu.dot_dimension_numbers<[1], [0], [0], [1], [0, 0, 1, 1], [], []>} : vector<16x8xf32>, vector<8x32xf32>, vector<16x32xf32> -> vector<16x32xf32>
    %444 = arith.addf %417, %443 : vector<16x32xf32>
    %445 = vector.extract_strided_slice %358 {offsets = [0, 24], sizes = [16, 8], strides = [1, 1]} : vector<16x32xf32> to vector<16x8xf32>
    %446 = vector.shape_cast %445 : vector<16x8xf32> to vector<2x8x8xf32>
    %447 = vector.extract_strided_slice %361 {offsets = [0, 24], sizes = [16, 8], strides = [1, 1]} : vector<16x32xf32> to vector<16x8xf32>
    %448 = vector.shape_cast %447 : vector<16x8xf32> to vector<2x8x8xf32>
    %449 = vector.extract_strided_slice %364 {offsets = [0, 24], sizes = [16, 8], strides = [1, 1]} : vector<16x32xf32> to vector<16x8xf32>
    %450 = vector.shape_cast %449 : vector<16x8xf32> to vector<2x8x8xf32>
    "tpu.trace_start"() <{level = 10 : i32, message = "bqd,bkd->bqk"}> : () -> ()
    %cst_210 = arith.constant dense<0.000000e+00> : vector<2x8x8xf32>
    %451 = tpu.matmul %446, %448, %cst_210 {dimension_numbers = #tpu.dot_dimension_numbers<[2], [2], [1], [1], [0, 0, 0, 1, 1, 1], [0], [0]>} : vector<2x8x8xf32>, vector<2x8x8xf32>, vector<2x8x8xf32> -> vector<2x8x8xf32>
    "tpu.trace_stop"() : () -> ()
    %cst_211 = arith.constant 0.353553385 : f32
    %452 = vector.broadcast %cst_211 : f32 to vector<2x8x8xf32>
    %453 = arith.mulf %451, %452 : vector<2x8x8xf32>
    %454 = vector.shape_cast %80 : vector<2x8xf32> to vector<2x1x8xf32>
    %455 = vector.broadcast %454 : vector<2x1x8xf32> to vector<2x8x8xf32>
    %456 = arith.addf %453, %455 : vector<2x8x8xf32>
    %cst_212 = arith.constant dense<0xFF800000> : vector<2x8xf32>
    %457 = vector.multi_reduction <maximumf>, %456, %cst_212 [2] : vector<2x8x8xf32> to vector<2x8xf32>
    %458 = vector.shape_cast %457 : vector<2x8xf32> to vector<2x8x1xf32>
    %459 = vector.broadcast %458 : vector<2x8x1xf32> to vector<2x8x8xf32>
    %460 = arith.subf %456, %459 : vector<2x8x8xf32>
    %461 = math.exp %460 : vector<2x8x8xf32>
    %cst_213 = arith.constant dense<0.000000e+00> : vector<2x8xf32>
    %462 = vector.multi_reduction <add>, %461, %cst_213 [2] : vector<2x8x8xf32> to vector<2x8xf32>
    %463 = vector.shape_cast %462 : vector<2x8xf32> to vector<2x8x1xf32>
    %464 = tpu.reciprocal %463 {approx = true} : vector<2x8x1xf32> -> vector<2x8x1xf32>
    %465 = vector.broadcast %464 : vector<2x8x1xf32> to vector<2x8x8xf32>
    %466 = arith.mulf %461, %465 : vector<2x8x8xf32>
    "tpu.trace_start"() <{level = 10 : i32, message = "bqk,bkd->bqd"}> : () -> ()
    %cst_214 = arith.constant dense<0.000000e+00> : vector<2x8x8xf32>
    %467 = tpu.matmul %466, %450, %cst_214 {dimension_numbers = #tpu.dot_dimension_numbers<[2], [1], [1], [2], [0, 0, 0, 1, 1, 2], [0], [0]>} : vector<2x8x8xf32>, vector<2x8x8xf32>, vector<2x8x8xf32> -> vector<2x8x8xf32>
    "tpu.trace_stop"() : () -> ()
    %468 = vector.shape_cast %467 : vector<2x8x8xf32> to vector<16x8xf32>
    %469 = vector.extract_strided_slice %337 {offsets = [24, 0], sizes = [8, 32], strides = [1, 1]} : vector<32x32xf32> to vector<8x32xf32>
    %cst_215 = arith.constant dense<0.000000e+00> : vector<16x32xf32>
    %470 = tpu.matmul %468, %469, %cst_215 {dimension_numbers = #tpu.dot_dimension_numbers<[1], [0], [0], [1], [0, 0, 1, 1], [], []>} : vector<16x8xf32>, vector<8x32xf32>, vector<16x32xf32> -> vector<16x32xf32>
    %471 = arith.addf %444, %470 : vector<16x32xf32>
    %472 = vector.broadcast %339 : vector<1x32xf32> to vector<16x32xf32>
    %473 = arith.addf %471, %472 : vector<16x32xf32>
    %474 = arith.addf %473, %323 : vector<16x32xf32>
    %cst_216 = arith.constant dense<0.000000e+00> : vector<16xf32>
    %475 = vector.multi_reduction <add>, %474, %cst_216 [1] : vector<16x32xf32> to vector<16xf32>
    %476 = vector.shape_cast %475 : vector<16xf32> to vector<16x1xf32>
    %cst_217 = arith.constant 3.200000e+01 : f32
    %477 = vector.broadcast %cst_217 : f32 to vector<16x1xf32>
    %478 = arith.divf %476, %477 : vector<16x1xf32>
    %479 = vector.broadcast %478 : vector<16x1xf32> to vector<16x32xf32>
    %480 = arith.subf %474, %479 : vector<16x32xf32>
    %481 = arith.mulf %480, %480 : vector<16x32xf32>
    %cst_218 = arith.constant dense<0.000000e+00> : vector<16xf32>
    %482 = vector.multi_reduction <add>, %481, %cst_218 [1] : vector<16x32xf32> to vector<16xf32>
    %483 = vector.shape_cast %482 : vector<16xf32> to vector<16x1xf32>
    %cst_219 = arith.constant 3.200000e+01 : f32
    %484 = vector.broadcast %cst_219 : f32 to vector<16x1xf32>
    %485 = arith.divf %483, %484 : vector<16x1xf32>
    %486 = vector.broadcast %478 : vector<16x1xf32> to vector<16x32xf32>
    %487 = arith.subf %474, %486 : vector<16x32xf32>
    %cst_220 = arith.constant 9.99999996E-13 : f32
    %488 = vector.broadcast %cst_220 : f32 to vector<16x1xf32>
    %489 = arith.addf %485, %488 : vector<16x1xf32>
    %490 = math.rsqrt %489 : vector<16x1xf32>
    %491 = vector.broadcast %490 : vector<16x1xf32> to vector<16x32xf32>
    %492 = arith.mulf %487, %491 : vector<16x32xf32>
    %493 = vector.broadcast %341 : vector<1x32xf32> to vector<16x32xf32>
    %494 = arith.mulf %492, %493 : vector<16x32xf32>
    %495 = vector.broadcast %343 : vector<1x32xf32> to vector<16x32xf32>
    %496 = arith.addf %494, %495 : vector<16x32xf32>
    %cst_221 = arith.constant dense<0.000000e+00> : vector<16x128xf32>
    %497 = tpu.matmul %496, %345, %cst_221 {dimension_numbers = #tpu.dot_dimension_numbers<[1], [0], [0], [1], [0, 0, 1, 1], [], []>} : vector<16x32xf32>, vector<32x128xf32>, vector<16x128xf32> -> vector<16x128xf32>
    %498 = vector.broadcast %347 : vector<1x128xf32> to vector<16x128xf32>
    %499 = arith.addf %497, %498 : vector<16x128xf32>
    %cst_222 = arith.constant 5.000000e-01 : f32
    %500 = vector.broadcast %cst_222 : f32 to vector<16x128xf32>
    %501 = arith.mulf %500, %499 : vector<16x128xf32>
    %cst_223 = arith.constant 1.41421354 : f32
    %502 = vector.broadcast %cst_223 : f32 to vector<16x128xf32>
    %503 = arith.divf %499, %502 : vector<16x128xf32>
    %cst_224 = arith.constant 0.000000e+00 : f32
    %504 = vector.broadcast %cst_224 : f32 to vector<16x128xf32>
    %505 = arith.cmpf olt, %503, %504 : vector<16x128xf32>
    %cst_225 = arith.constant -1.000000e+00 : f32
    %cst_226 = arith.constant 1.000000e+00 : f32
    %506 = vector.broadcast %cst_225 : f32 to vector<16x128xf32>
    %507 = vector.broadcast %cst_226 : f32 to vector<16x128xf32>
    %508 = arith.select %505, %506, %507 : vector<16x128xi1>, vector<16x128xf32>
    %509 = math.absf %503 : vector<16x128xf32>
    %cst_227 = arith.constant 0.327591091 : f32
    %510 = vector.broadcast %cst_227 : f32 to vector<16x128xf32>
    %511 = arith.mulf %510, %509 : vector<16x128xf32>
    %cst_228 = arith.constant 1.000000e+00 : f32
    %512 = vector.broadcast %cst_228 : f32 to vector<16x128xf32>
    %513 = arith.addf %512, %511 : vector<16x128xf32>
    %cst_229 = arith.constant 1.000000e+00 : f32
    %514 = vector.broadcast %cst_229 : f32 to vector<16x128xf32>
    %515 = arith.divf %514, %513 : vector<16x128xf32>
    %cst_230 = arith.constant 1.06140542 : f32
    %516 = vector.broadcast %cst_230 : f32 to vector<16x128xf32>
    %517 = arith.mulf %516, %515 : vector<16x128xf32>
    %cst_231 = arith.constant -1.45315206 : f32
    %518 = vector.broadcast %cst_231 : f32 to vector<16x128xf32>
    %519 = arith.addf %517, %518 : vector<16x128xf32>
    %520 = arith.mulf %519, %515 : vector<16x128xf32>
    %cst_232 = arith.constant 1.42141378 : f32
    %521 = vector.broadcast %cst_232 : f32 to vector<16x128xf32>
    %522 = arith.addf %520, %521 : vector<16x128xf32>
    %523 = arith.mulf %522, %515 : vector<16x128xf32>
    %cst_233 = arith.constant -0.284496725 : f32
    %524 = vector.broadcast %cst_233 : f32 to vector<16x128xf32>
    %525 = arith.addf %523, %524 : vector<16x128xf32>
    %526 = arith.mulf %525, %515 : vector<16x128xf32>
    %cst_234 = arith.constant 0.254829586 : f32
    %527 = vector.broadcast %cst_234 : f32 to vector<16x128xf32>
    %528 = arith.addf %526, %527 : vector<16x128xf32>
    %529 = arith.mulf %528, %515 : vector<16x128xf32>
    %cst_235 = arith.constant 0.000000e+00 : f32
    %530 = vector.broadcast %cst_235 : f32 to vector<16x128xf32>
    %531 = arith.subf %530, %509 : vector<16x128xf32>
    %532 = arith.mulf %531, %509 : vector<16x128xf32>
    %533 = math.exp %532 : vector<16x128xf32>
    %534 = arith.mulf %529, %533 : vector<16x128xf32>
    %cst_236 = arith.constant 1.000000e+00 : f32
    %535 = vector.broadcast %cst_236 : f32 to vector<16x128xf32>
    %536 = arith.subf %535, %534 : vector<16x128xf32>
    %537 = arith.mulf %508, %536 : vector<16x128xf32>
    %cst_237 = arith.constant 1.000000e+00 : f32
    %538 = vector.broadcast %cst_237 : f32 to vector<16x128xf32>
    %539 = arith.addf %538, %537 : vector<16x128xf32>
    %540 = arith.mulf %501, %539 : vector<16x128xf32>
    %cst_238 = arith.constant dense<0.000000e+00> : vector<16x32xf32>
    %541 = tpu.matmul %540, %349, %cst_238 {dimension_numbers = #tpu.dot_dimension_numbers<[1], [0], [0], [1], [0, 0, 1, 1], [], []>} : vector<16x128xf32>, vector<128x32xf32>, vector<16x32xf32> -> vector<16x32xf32>
    %542 = vector.broadcast %351 : vector<1x32xf32> to vector<16x32xf32>
    %543 = arith.addf %541, %542 : vector<16x32xf32>
    %544 = arith.addf %543, %496 : vector<16x32xf32>
    %cst_239 = arith.constant dense<0.000000e+00> : vector<16xf32>
    %545 = vector.multi_reduction <add>, %544, %cst_239 [1] : vector<16x32xf32> to vector<16xf32>
    %546 = vector.shape_cast %545 : vector<16xf32> to vector<16x1xf32>
    %cst_240 = arith.constant 3.200000e+01 : f32
    %547 = vector.broadcast %cst_240 : f32 to vector<16x1xf32>
    %548 = arith.divf %546, %547 : vector<16x1xf32>
    %549 = vector.broadcast %548 : vector<16x1xf32> to vector<16x32xf32>
    %550 = arith.subf %544, %549 : vector<16x32xf32>
    %551 = arith.mulf %550, %550 : vector<16x32xf32>
    %cst_241 = arith.constant dense<0.000000e+00> : vector<16xf32>
    %552 = vector.multi_reduction <add>, %551, %cst_241 [1] : vector<16x32xf32> to vector<16xf32>
    %553 = vector.shape_cast %552 : vector<16xf32> to vector<16x1xf32>
    %cst_242 = arith.constant 3.200000e+01 : f32
    %554 = vector.broadcast %cst_242 : f32 to vector<16x1xf32>
    %555 = arith.divf %553, %554 : vector<16x1xf32>
    %556 = vector.broadcast %548 : vector<16x1xf32> to vector<16x32xf32>
    %557 = arith.subf %544, %556 : vector<16x32xf32>
    %cst_243 = arith.constant 9.99999996E-13 : f32
    %558 = vector.broadcast %cst_243 : f32 to vector<16x1xf32>
    %559 = arith.addf %555, %558 : vector<16x1xf32>
    %560 = math.rsqrt %559 : vector<16x1xf32>
    %561 = vector.broadcast %560 : vector<16x1xf32> to vector<16x32xf32>
    %562 = arith.mulf %557, %561 : vector<16x32xf32>
    %563 = vector.broadcast %353 : vector<1x32xf32> to vector<16x32xf32>
    %564 = arith.mulf %562, %563 : vector<16x32xf32>
    %565 = vector.broadcast %355 : vector<1x32xf32> to vector<16x32xf32>
    %566 = arith.addf %564, %565 : vector<16x32xf32>
    %567 = vector.shape_cast %566 : vector<16x32xf32> to vector<2x8x32xf32>
    %568 = vector.extract_strided_slice %567 {offsets = [0, 0, 0], sizes = [2, 1, 32], strides = [1, 1, 1]} : vector<2x8x32xf32> to vector<2x1x32xf32>
    %569 = vector.shape_cast %568 : vector<2x1x32xf32> to vector<2x32xf32>
    %c0_244 = arith.constant 0 : index
    %c0_245 = arith.constant 0 : index
    %570 = vector.load %arg24[%c0_244, %c0_245] : memref<32x32xf32, #tpu.memory_space<vmem>>, vector<32x32xf32>
    %cst_246 = arith.constant dense<0.000000e+00> : vector<2x32xf32>
    %571 = tpu.matmul %569, %570, %cst_246 {dimension_numbers = #tpu.dot_dimension_numbers<[1], [0], [0], [1], [0, 0, 1, 1], [], []>} : vector<2x32xf32>, vector<32x32xf32>, vector<2x32xf32> -> vector<2x32xf32>
    %c0_247 = arith.constant 0 : index
    %c0_248 = arith.constant 0 : index
    %572 = vector.load %arg25[%c0_247, %c0_248] : memref<1x32xf32, #tpu.memory_space<vmem>>, vector<1x32xf32>
    %573 = vector.broadcast %572 : vector<1x32xf32> to vector<2x32xf32>
    %574 = arith.addf %571, %573 : vector<2x32xf32>
    %575 = math.tanh %574 : vector<2x32xf32>
    %c0_249 = arith.constant 0 : index
    %c0_250 = arith.constant 0 : index
    %576 = vector.load %arg26[%c0_249, %c0_250] : memref<32x3xf32, #tpu.memory_space<vmem>>, vector<32x3xf32>
    %cst_251 = arith.constant dense<0.000000e+00> : vector<2x3xf32>
    %577 = tpu.matmul %575, %576, %cst_251 {dimension_numbers = #tpu.dot_dimension_numbers<[1], [0], [0], [1], [0, 0, 1, 1], [], []>} : vector<2x32xf32>, vector<32x3xf32>, vector<2x3xf32> -> vector<2x3xf32>
    %c0_252 = arith.constant 0 : index
    %c0_253 = arith.constant 0 : index
    %578 = vector.load %arg27[%c0_252, %c0_253] : memref<1x3xf32, #tpu.memory_space<vmem>>, vector<1x3xf32>
    %579 = vector.broadcast %578 : vector<1x3xf32> to vector<2x3xf32>
    %580 = arith.addf %577, %579 : vector<2x3xf32>
    %c0_254 = arith.constant 0 : index
    %c0_255 = arith.constant 0 : index
    %581 = vector.load %arg28[%c0_254, %c0_255] : memref<2x3xf32, #tpu.memory_space<vmem>>, vector<2x3xf32>
    tpu.vector_store %arg28[%c0_254, %c0_255], %580 {strides = array<i32>} : memref<2x3xf32, #tpu.memory_space<vmem>>, vector<2x3xf32>,
    return
  }
}

</mosaic_0001>

<llo_original>
// kernel: tpu_custom_call.1
$region0: #{tpu_custom_call.1}
  #allocation0 [shape = 'u32[]', space=smem, size = 0x4, offset = 0x4, fixed_abs, tag = 'smem constant byte address 0x4 - core index']
  #allocation1 [shape = 'u32[72,128]{1,0:T(1,128)}', space=vmem, size = 0x9000, scoped, tag = 'internal scratch']
  %s0 = inlined_call_operand.vmem [shape: f32[16,16], index: 0, kind: input, shape index: {}]
  %s1 = inlined_call_operand.vmem [shape: f32[2,8], index: 1, kind: input, shape index: {}]
  %s2 = inlined_call_operand.vmem [shape: f32[16,128], index: 2, kind: input, shape index: {}]
  %s3 = inlined_call_operand.vmem [shape: f32[1,128], index: 3, kind: input, shape index: {}]
  %s4 = inlined_call_operand.vmem [shape: f32[128,32], index: 4, kind: input, shape index: {}]
  %s5 = inlined_call_operand.vmem [shape: f32[1,32], index: 5, kind: input, shape index: {}]
  %s6 = inlined_call_operand.vmem [shape: f32[1,32], index: 6, kind: input, shape index: {}]
  %s7 = inlined_call_operand.vmem [shape: f32[1,32], index: 7, kind: input, shape index: {}]
  %s8 = inlined_call_operand.vmem [shape: f32[2,32,32], index: 8, kind: input, shape index: {}]
  %s9 = inlined_call_operand.vmem [shape: f32[2,1,32], index: 9, kind: input, shape index: {}]
  %s10 = inlined_call_operand.vmem [shape: f32[2,32,32], index: 10, kind: input, shape index: {}]
  %s11 = inlined_call_operand.vmem [shape: f32[2,1,32], index: 11, kind: input, shape index: {}]
  %s12 = inlined_call_operand.vmem [shape: f32[2,32,32], index: 12, kind: input, shape index: {}]
  %s13 = inlined_call_operand.vmem [shape: f32[2,1,32], index: 13, kind: input, shape index: {}]
  %s14 = inlined_call_operand.vmem [shape: f32[2,32,32], index: 14, kind: input, shape index: {}]
  %s15 = inlined_call_operand.vmem [shape: f32[2,1,32], index: 15, kind: input, shape index: {}]
  %s16 = inlined_call_operand.vmem [shape: f32[2,1,32], index: 16, kind: input, shape index: {}]
  %s17 = inlined_call_operand.vmem [shape: f32[2,1,32], index: 17, kind: input, shape index: {}]
  %s18 = inlined_call_operand.vmem [shape: f32[2,32,128], index: 18, kind: input, shape index: {}]
  %s19 = inlined_call_operand.vmem [shape: f32[2,1,128], index: 19, kind: input, shape index: {}]
  %s20 = inlined_call_operand.vmem [shape: f32[2,128,32], index: 20, kind: input, shape index: {}]
  %s21 = inlined_call_operand.vmem [shape: f32[2,1,32], index: 21, kind: input, shape index: {}]
  %s22 = inlined_call_operand.vmem [shape: f32[2,1,32], index: 22, kind: input, shape index: {}]
  %s23 = inlined_call_operand.vmem [shape: f32[2,1,32], index: 23, kind: input, shape index: {}]
  %s24 = inlined_call_operand.vmem [shape: f32[32,32], index: 24, kind: input, shape index: {}]
  %s25 = inlined_call_operand.vmem [shape: f32[1,32], index: 25, kind: input, shape index: {}]
  %s26 = inlined_call_operand.vmem [shape: f32[32,3], index: 26, kind: input, shape index: {}]
  %s27 = inlined_call_operand.vmem [shape: f32[1,3], index: 27, kind: input, shape index: {}]
  %s28 = inlined_call_operand.hbm [shape: f32[2,3], index: 28, kind: output, shape index: {}]
  %s29 = sld [smem:[#allocation0]]
  $region122: #{tpu_custom_call.1} parent=0
    _
  %s31 = ssub.s32 1, %s29
  %s32 = scalar_select 0, %s31, %s29
  $region1: #{tpu_custom_call.1} parent=0
    #allocation2 [shape = 'u8[1024]{0}', space=vmem, size = 0x400, scoped, tag = 'output window, operand 0, single buffered']
    #allocation3 [shape = 's32[1]{0}', space=sflag, size = 0x4, scoped, tag = 'scoped memory for tpu_custom_call.1']
    %33 = vsyncpa [#allocation3], 0
    // Predicated region
    $region2: #{tpu_custom_call.1} parent=1 // pred_check
      _
    $region3: #{tpu_custom_call.1} parent=1 // pred_check_branch
      %35 = sbr.rel (0) target = $region5
    $region4: #{tpu_custom_call.1} parent=1 // pred_region
      _
    $region5: #{tpu_custom_call.1} parent=1 // pred_fallthru
      _
    // Predicated region
    $region6: #{tpu_custom_call.1} parent=1 // pred_check
      _
    $region7: #{tpu_custom_call.1} parent=1 // pred_check_branch
      %37 = sbr.rel (0) target = $region9
    $region8: #{tpu_custom_call.1} parent=1 // pred_region
      _
    $region9: #{tpu_custom_call.1} parent=1 // pred_fallthru
      _
    // Predicated region
    $region10: #{tpu_custom_call.1} parent=1 // pred_check
      _
    $region11: #{tpu_custom_call.1} parent=1 // pred_check_branch
      %39 = sbr.rel (0) target = $region13
    $region12: #{tpu_custom_call.1} parent=1 // pred_region
      _
    $region13: #{tpu_custom_call.1} parent=1 // pred_fallthru
      _
    // Predicated region
    $region14: #{tpu_custom_call.1} parent=1 // pred_check
      _
    $region15: #{tpu_custom_call.1} parent=1 // pred_check_branch
      %41 = sbr.rel (0) target = $region17
    $region16: #{tpu_custom_call.1} parent=1 // pred_region
      _
    $region17: #{tpu_custom_call.1} parent=1 // pred_fallthru
      _
    // Predicated region
    $region18: #{tpu_custom_call.1} parent=1 // pred_check
      _
    $region19: #{tpu_custom_call.1} parent=1 // pred_check_branch
      %43 = sbr.rel (0) target = $region21
    $region20: #{tpu_custom_call.1} parent=1 // pred_region
      _
    $region21: #{tpu_custom_call.1} parent=1 // pred_fallthru
      _
    // Predicated region
    $region22: #{tpu_custom_call.1} parent=1 // pred_check
      _
    $region23: #{tpu_custom_call.1} parent=1 // pred_check_branch
      %45 = sbr.rel (0) target = $region25
    $region24: #{tpu_custom_call.1} parent=1 // pred_region
      _
    $region25: #{tpu_custom_call.1} parent=1 // pred_fallthru
      _
    // Predicated region
    $region26: #{tpu_custom_call.1} parent=1 // pred_check
      _
    $region27: #{tpu_custom_call.1} parent=1 // pred_check_branch
      %47 = sbr.rel (0) target = $region29
    $region28: #{tpu_custom_call.1} parent=1 // pred_region
      _
    $region29: #{tpu_custom_call.1} parent=1 // pred_fallthru
      _
    // Predicated region
    $region30: #{tpu_custom_call.1} parent=1 // pred_check
      _
    $region31: #{tpu_custom_call.1} parent=1 // pred_check_branch
      %49 = sbr.rel (0) target = $region33
    $region32: #{tpu_custom_call.1} parent=1 // pred_region
      _
    $region33: #{tpu_custom_call.1} parent=1 // pred_fallthru
      _
    // Predicated region
    $region34: #{tpu_custom_call.1} parent=1 // pred_check
      _
    $region35: #{tpu_custom_call.1} parent=1 // pred_check_branch
      %51 = sbr.rel (0) target = $region37
    $region36: #{tpu_custom_call.1} parent=1 // pred_region
      _
    $region37: #{tpu_custom_call.1} parent=1 // pred_fallthru
      _
    // Predicated region
    $region38: #{tpu_custom_call.1} parent=1 // pred_check
      _
    $region39: #{tpu_custom_call.1} parent=1 // pred_check_branch
      %53 = sbr.rel (0) target = $region41
    $region40: #{tpu_custom_call.1} parent=1 // pred_region
      _
    $region41: #{tpu_custom_call.1} parent=1 // pred_fallthru
      _
    // Predicated region
    $region42: #{tpu_custom_call.1} parent=1 // pred_check
      _
    $region43: #{tpu_custom_call.1} parent=1 // pred_check_branch
      %55 = sbr.rel (0) target = $region45
    $region44: #{tpu_custom_call.1} parent=1 // pred_region
      _
    $region45: #{tpu_custom_call.1} parent=1 // pred_fallthru
      _
    // Predicated region
    $region46: #{tpu_custom_call.1} parent=1 // pred_check
      _
    $region47: #{tpu_custom_call.1} parent=1 // pred_check_branch
      %57 = sbr.rel (0) target = $region49
    $region48: #{tpu_custom_call.1} parent=1 // pred_region
      _
    $region49: #{tpu_custom_call.1} parent=1 // pred_fallthru
      _
    // Predicated region
    $region50: #{tpu_custom_call.1} parent=1 // pred_check
      _
    $region51: #{tpu_custom_call.1} parent=1 // pred_check_branch
      %59 = sbr.rel (0) target = $region53
    $region52: #{tpu_custom_call.1} parent=1 // pred_region
      _
    $region53: #{tpu_custom_call.1} parent=1 // pred_fallthru
      _
    // Predicated region
    $region54: #{tpu_custom_call.1} parent=1 // pred_check
      _
    $region55: #{tpu_custom_call.1} parent=1 // pred_check_branch
      %61 = sbr.rel (0) target = $region57
    $region56: #{tpu_custom_call.1} parent=1 // pred_region
      _
    $region57: #{tpu_custom_call.1} parent=1 // pred_fallthru
      _
    // Predicated region
    $region58: #{tpu_custom_call.1} parent=1 // pred_check
      _
    $region59: #{tpu_custom_call.1} parent=1 // pred_check_branch
      %63 = sbr.rel (0) target = $region61
    $region60: #{tpu_custom_call.1} parent=1 // pred_region
      _
    $region61: #{tpu_custom_call.1} parent=1 // pred_fallthru
      _
    // Predicated region
    $region62: #{tpu_custom_call.1} parent=1 // pred_check
      _
    $region63: #{tpu_custom_call.1} parent=1 // pred_check_branch
      %65 = sbr.rel (0) target = $region65
    $region64: #{tpu_custom_call.1} parent=1 // pred_region
      _
    $region65: #{tpu_custom_call.1} parent=1 // pred_fallthru
      _
    // Predicated region
    $region66: #{tpu_custom_call.1} parent=1 // pred_check
      _
    $region67: #{tpu_custom_call.1} parent=1 // pred_check_branch
      %67 = sbr.rel (0) target = $region69
    $region68: #{tpu_custom_call.1} parent=1 // pred_region
      _
    $region69: #{tpu_custom_call.1} parent=1 // pred_fallthru
      _
    // Predicated region
    $region70: #{tpu_custom_call.1} parent=1 // pred_check
      _
    $region71: #{tpu_custom_call.1} parent=1 // pred_check_branch
      %69 = sbr.rel (0) target = $region73
    $region72: #{tpu_custom_call.1} parent=1 // pred_region
      _
    $region73: #{tpu_custom_call.1} parent=1 // pred_fallthru
      _
    // Predicated region
    $region74: #{tpu_custom_call.1} parent=1 // pred_check
      _
    $region75: #{tpu_custom_call.1} parent=1 // pred_check_branch
      %71 = sbr.rel (0) target = $region77
    $region76: #{tpu_custom_call.1} parent=1 // pred_region
      _
    $region77: #{tpu_custom_call.1} parent=1 // pred_fallthru
      _
    // Predicated region
    $region78: #{tpu_custom_call.1} parent=1 // pred_check
      _
    $region79: #{tpu_custom_call.1} parent=1 // pred_check_branch
      %73 = sbr.rel (0) target = $region81
    $region80: #{tpu_custom_call.1} parent=1 // pred_region
      _
    $region81: #{tpu_custom_call.1} parent=1 // pred_fallthru
      _
    // Predicated region
    $region82: #{tpu_custom_call.1} parent=1 // pred_check
      _
    $region83: #{tpu_custom_call.1} parent=1 // pred_check_branch
      %75 = sbr.rel (0) target = $region85
    $region84: #{tpu_custom_call.1} parent=1 // pred_region
      _
    $region85: #{tpu_custom_call.1} parent=1 // pred_fallthru
      _
    // Predicated region
    $region86: #{tpu_custom_call.1} parent=1 // pred_check
      _
    $region87: #{tpu_custom_call.1} parent=1 // pred_check_branch
      %77 = sbr.rel (0) target = $region89
    $region88: #{tpu_custom_call.1} parent=1 // pred_region
      _
    $region89: #{tpu_custom_call.1} parent=1 // pred_fallthru
      _
    // Predicated region
    $region90: #{tpu_custom_call.1} parent=1 // pred_check
      _
    $region91: #{tpu_custom_call.1} parent=1 // pred_check_branch
      %79 = sbr.rel (0) target = $region93
    $region92: #{tpu_custom_call.1} parent=1 // pred_region
      _
    $region93: #{tpu_custom_call.1} parent=1 // pred_fallthru
      _
    // Predicated region
    $region94: #{tpu_custom_call.1} parent=1 // pred_check
      _
    $region95: #{tpu_custom_call.1} parent=1 // pred_check_branch
      %81 = sbr.rel (0) target = $region97
    $region96: #{tpu_custom_call.1} parent=1 // pred_region
      _
    $region97: #{tpu_custom_call.1} parent=1 // pred_fallthru
      _
    // Predicated region
    $region98: #{tpu_custom_call.1} parent=1 // pred_check
      _
    $region99: #{tpu_custom_call.1} parent=1 // pred_check_branch
      %83 = sbr.rel (0) target = $region101
    $region100: #{tpu_custom_call.1} parent=1 // pred_region
      _
    $region101: #{tpu_custom_call.1} parent=1 // pred_fallthru
      _
    // Predicated region
    $region102: #{tpu_custom_call.1} parent=1 // pred_check
      _
    $region103: #{tpu_custom_call.1} parent=1 // pred_check_branch
      %85 = sbr.rel (0) target = $region105
    $region104: #{tpu_custom_call.1} parent=1 // pred_region
      _
    $region105: #{tpu_custom_call.1} parent=1 // pred_fallthru
      _
    // Predicated region
    $region106: #{tpu_custom_call.1} parent=1 // pred_check
      _
    $region107: #{tpu_custom_call.1} parent=1 // pred_check_branch
      %87 = sbr.rel (0) target = $region109
    $region108: #{tpu_custom_call.1} parent=1 // pred_region
      _
    $region109: #{tpu_custom_call.1} parent=1 // pred_fallthru
      _
    // Predicated region
    $region110: #{tpu_custom_call.1} parent=1 // pred_check
      _
    $region111: #{tpu_custom_call.1} parent=1 // pred_check_branch
      %89 = sbr.rel (0) target = $region113
    $region112: #{tpu_custom_call.1} parent=1 // pred_region
      _
    $region113: #{tpu_custom_call.1} parent=1 // pred_fallthru
      _
    %v90 = vld [vmem:[%s0] sm:$0xff]
    %v91 = vld [vmem:[%s0 + $0x8] sm:$0xff]
    %v92 = vld [vmem:[%s2] sm:$0xff]
    %v93 = vld [vmem:[%s2 + $0x8] sm:$0xff]
    %v94 = vld [vmem:[%s3] sm:$0x1]
    %v96 = vperm.slane %v94, 0
    %vm98 = vcmask 130048
    %v100 = vsel %vm98, %v90, 0
    %v103 = vsel %vm98, %v91, 0
    %105 = vmatpush.msra.mxu0 0.0
    %106 = vmatpush.msra.mxu0 0.0
    %107 = vmatpush.msra.mxu0 0.0
    %108 = vmatpush.msra.mxu0 0.0
    %109 = vmatpush.msra.mxu0 0.0
    %110 = vmatpush.msra.mxu0 0.0
    %111 = vmatpush.msra.mxu0 0.0
    %112 = vmatpush.msra.mxu0 0.0
    %113 = vmatpush.msra.mxu0 0.0
    %114 = vmatpush.msra.mxu0 0.0
    %115 = vmatpush.msra.mxu0 0.0
    %116 = vmatpush.msra.mxu0 0.0
    %117 = vmatpush.msra.mxu0 0.0
    %118 = vmatpush.msra.mxu0 0.0
    %119 = vmatpush.msra.mxu0 %v93
    %120 = vmatpush.msra.mxu0 %v92
    %121 = vmatmul.f32.gmra.mxu0 %v100
    %v122 = vpop.f32.mrf.mxu0
    %v123 = vadd.f32 %v96, %v122
    %124 = vmatmul.f32.gmra.mxu0 %v103
    %v125 = vpop.f32.mrf.mxu0
    %v126 = vadd.f32 %v96, %v125
    %127 = vdwg.mxu0
    %v128 = vmul.f32 %v123, 0.5
    %v129 = vmul.f32 %v126, 0.5
    %v130 = vrcp.pop 1.4142135
    %v131 = vmul.f32 1.4142135, %v130
    %v132 = vsub.f32 1.0, %v131
    %v133 = vmul.f32 %v130, %v132
    %v134 = vadd.f32 %v130, %v133
    %vm135 = vweird.f32 %v130
    %v136 = vsel %vm135, %v130, %v134
    %v137 = vmul.f32 %v123, %v136
    %v138 = vmul.f32 %v126, %v136
    %vm139 = vcmp.lt.f32.partialorder %v137, 0.0
    %vm140 = vcmp.lt.f32.partialorder %v138, 0.0
    %v141 = vsel %vm139, -1.0, 1.0
    %v142 = vsel %vm140, -1.0, 1.0
    %v143 = vand.u32 2147483647, %v137
    %v144 = vand.u32 2147483647, %v138
    %v145 = vmul.f32 %v143, 0.3275911
    %v146 = vmul.f32 %v144, 0.3275911
    %v147 = vadd.f32 %v145, 1.0
    %v148 = vadd.f32 %v146, 1.0
    %v149 = vrcp.pop %v147
    %v150 = vmul.f32 %v147, %v149
    %v151 = vsub.f32 1.0, %v150
    %v152 = vmul.f32 %v149, %v151
    %v153 = vadd.f32 %v149, %v152
    %vm154 = vweird.f32 %v147
    %vm155 = vweird.f32 %v149
    %vm156 = vmor %vm154, %vm155
    %v157 = vsel %vm156, %v149, %v153
    %v158 = vand.u32 2147483647, %v147
    %vm159 = vcmp.eq.f32.partialorder %v158, 8.507059e+37
    %v160 = vand.u32 %v147, 2147483648
    %v161 = vor.u32 1.1754944e-38, %v160
    %v162 = vsel %vm159, %v161, %v157
    %v163 = vmul.f32 1.0, %v162
    %v164 = vrcp.pop %v148
    %v165 = vmul.f32 %v148, %v164
    %v166 = vsub.f32 1.0, %v165
    %v167 = vmul.f32 %v164, %v166
    %v168 = vadd.f32 %v164, %v167
    %vm169 = vweird.f32 %v148
    %vm170 = vweird.f32 %v164
    %vm171 = vmor %vm169, %vm170
    %v172 = vsel %vm171, %v164, %v168
    %v173 = vand.u32 2147483647, %v148
    %vm174 = vcmp.eq.f32.partialorder %v173, 8.507059e+37
    %v175 = vand.u32 %v148, 2147483648
    %v176 = vor.u32 1.1754944e-38, %v175
    %v177 = vsel %vm174, %v176, %v172
    %v178 = vmul.f32 1.0, %v177
    %v179 = vmul.f32 %v163, 1.0614054
    %v180 = vmul.f32 %v178, 1.0614054
    %v181 = vadd.f32 %v179, -1.4531521
    %v182 = vadd.f32 %v180, -1.4531521
    %v183 = vmul.f32 %v181, %v163
    %v184 = vmul.f32 %v182, %v178
    %v185 = vadd.f32 %v183, 1.4214138
    %v186 = vadd.f32 %v184, 1.4214138
    %v187 = vmul.f32 %v185, %v163
    %v188 = vmul.f32 %v186, %v178
    %v189 = vadd.f32 %v187, -0.28449672
    %v190 = vadd.f32 %v188, -0.28449672
    %v191 = vmul.f32 %v189, %v163
    %v192 = vmul.f32 %v190, %v178
    %v193 = vadd.f32 %v191, 0.2548296
    %v194 = vadd.f32 %v192, 0.2548296
    %v195 = vmul.f32 %v193, %v163
    %v196 = vmul.f32 %v194, %v178
    %v197 = vsub.f32 0.0, %v143
    %v198 = vsub.f32 0.0, %v144
    %v199 = vmul.f32 %v197, %v143
    %v200 = vmul.f32 %v198, %v144
    %v201 = vmul.f32 %v199, 1.442695
    %v202 = vpow.pop %v201
    %v203 = vmul.f32 %v200, 1.442695
    %v204 = vpow.pop %v203
    %v205 = vmul.f32 %v195, %v202
    %v206 = vmul.f32 %v196, %v204
    %v207 = vsub.f32 1.0, %v205
    %v208 = vsub.f32 1.0, %v206
    %v209 = vmul.f32 %v141, %v207
    %v210 = vmul.f32 %v142, %v208
    %v211 = vadd.f32 %v209, 1.0
    %v212 = vadd.f32 %v210, 1.0
    %v213 = vmul.f32 %v128, %v211
    %v214 = vmul.f32 %v129, %v212
    %v215 = vld [vmem:[%s4] sm:$0xff]
    %v216 = vld [vmem:[%s4 + $0x8] sm:$0xff]
    %v217 = vld [vmem:[%s4 + $0x10] sm:$0xff]
    %v218 = vld [vmem:[%s4 + $0x18] sm:$0xff]
    %v219 = vld [vmem:[%s4 + $0x20] sm:$0xff]
    %v220 = vld [vmem:[%s4 + $0x28] sm:$0xff]
    %v221 = vld [vmem:[%s4 + $0x30] sm:$0xff]
    %v222 = vld [vmem:[%s4 + $0x38] sm:$0xff]
    %v223 = vld [vmem:[%s4 + $0x40] sm:$0xff]
    %v224 = vld [vmem:[%s4 + $0x48] sm:$0xff]
    %v225 = vld [vmem:[%s4 + $0x50] sm:$0xff]
    %v226 = vld [vmem:[%s4 + $0x58] sm:$0xff]
    %v227 = vld [vmem:[%s4 + $0x60] sm:$0xff]
    %v228 = vld [vmem:[%s4 + $0x68] sm:$0xff]
    %v229 = vld [vmem:[%s4 + $0x70] sm:$0xff]
    %v230 = vld [vmem:[%s4 + $0x78] sm:$0xff]
    %v231 = vld [vmem:[%s5] sm:$0x1]
    %v233 = vperm.slane %v231, 0
    %235 = vmatpush.msra.mxu0 %v230
    %236 = vmatpush.msra.mxu0 %v229
    %237 = vmatpush.msra.mxu0 %v228
    %238 = vmatpush.msra.mxu0 %v227
    %239 = vmatpush.msra.mxu0 %v226
    %240 = vmatpush.msra.mxu0 %v225
    %241 = vmatpush.msra.mxu0 %v224
    %242 = vmatpush.msra.mxu0 %v223
    %243 = vmatpush.msra.mxu0 %v222
    %244 = vmatpush.msra.mxu0 %v221
    %245 = vmatpush.msra.mxu0 %v220
    %246 = vmatpush.msra.mxu0 %v219
    %247 = vmatpush.msra.mxu0 %v218
    %248 = vmatpush.msra.mxu0 %v217
    %249 = vmatpush.msra.mxu0 %v216
    %250 = vmatpush.msra.mxu0 %v215
    %251 = vmatmul.f32.gmra.mxu0 %v213
    %v252 = vpop.f32.mrf.mxu0
    %v253 = vadd.f32 %v233, %v252
    %254 = vmatmul.f32.gmra.mxu0 %v214
    %v255 = vpop.f32.mrf.mxu0
    %v256 = vadd.f32 %v233, %v255
    %257 = vdwg.mxu0
    %v258 = vld [vmem:[%s6] sm:$0x1]
    %v259 = vld [vmem:[%s7] sm:$0x1]
    %vm260 = vcmask 261120
    %v261 = vsel %vm260, %v253, 0.0
    %262 = vadd.xlane.f32.xlu0 %v261
    %v263 = vpop.xlane.xlu0 %262
    %v264 = vsel %vm260, %v256, 0.0
    %265 = vadd.xlane.f32.xlu0 %v264
    %v266 = vpop.xlane.xlu0 %265
    %v267 = vrcp.pop 32.0
    %v268 = vmul.f32 32.0, %v267
    %v269 = vsub.f32 1.0, %v268
    %v270 = vmul.f32 %v267, %v269
    %v271 = vadd.f32 %v267, %v270
    %vm272 = vweird.f32 %v267
    %v273 = vsel %vm272, %v267, %v271
    %v274 = vmul.f32 %v263, %v273
    %v275 = vmul.f32 %v266, %v273
    %v276 = vsub.f32 %v253, %v274
    %v277 = vsub.f32 %v256, %v275
    %v278 = vmul.f32 %v276, %v276
    %v279 = vmul.f32 %v277, %v277
    %v280 = vsel %vm260, %v278, 0.0
    %281 = vadd.xlane.f32.xlu0 %v280
    %v282 = vpop.xlane.xlu0 %281
    %v283 = vsel %vm260, %v279, 0.0
    %284 = vadd.xlane.f32.xlu0 %v283
    %v285 = vpop.xlane.xlu0 %284
    %v286 = vmul.f32 %v282, %v273
    %v287 = vmul.f32 %v285, %v273
    %v288 = vadd.f32 %v286, 1e-12
    %v289 = vadd.f32 %v287, 1e-12
    %v290 = vrsqrt.pop %v288
    %v291 = vmul.f32 %v290, %v288
    %v292 = vmul.f32 %v291, %v290
    %v293 = vmul.f32 0.5, %v292
    %v294 = vsub.f32 1.5, %v293
    %v295 = vmul.f32 %v290, %v294
    %vm296 = vweird.f32 %v288
    %vm297 = vweird.f32 %v290
    %vm298 = vmor %vm296, %vm297
    %v299 = vsel %vm298, %v290, %v295
    %v300 = vrsqrt.pop %v289
    %v301 = vmul.f32 %v300, %v289
    %v302 = vmul.f32 %v301, %v300
    %v303 = vmul.f32 0.5, %v302
    %v304 = vsub.f32 1.5, %v303
    %v305 = vmul.f32 %v300, %v304
    %vm306 = vweird.f32 %v289
    %vm307 = vweird.f32 %v300
    %vm308 = vmor %vm306, %vm307
    %v309 = vsel %vm308, %v300, %v305
    %v310 = vmul.f32 %v276, %v299
    %v311 = vmul.f32 %v277, %v309
    %v313 = vperm.slane %v258, 0
    %v315 = vmul.f32 %v310, %v313
    %v316 = vmul.f32 %v311, %v313
    %v318 = vperm.slane %v259, 0
    %v320 = vadd.f32 %v315, %v318
    %v321 = vadd.f32 %v316, %v318
    %v322 = vld [vmem:[%s1] sm:$0x3]
    %v323 = vsub.f32 1.0, %v322
    %v324 = vmul.f32 %v323, -10000.0
    %v325 = vld [vmem:[%s8] sm:$0xff]
    %v326 = vld [vmem:[%s8 + $0x8] sm:$0xff]
    %v327 = vld [vmem:[%s8 + $0x10] sm:$0xff]
    %v328 = vld [vmem:[%s8 + $0x18] sm:$0xff]
    %v329 = vld [vmem:[%s9] sm:$0x1]
    %v330 = vld [vmem:[%s10] sm:$0xff]
    %v331 = vld [vmem:[%s10 + $0x8] sm:$0xff]
    %v332 = vld [vmem:[%s10 + $0x10] sm:$0xff]
    %v333 = vld [vmem:[%s10 + $0x18] sm:$0xff]
    %v334 = vld [vmem:[%s11] sm:$0x1]
    %v335 = vld [vmem:[%s12] sm:$0xff]
    %v336 = vld [vmem:[%s12 + $0x8] sm:$0xff]
    %v337 = vld [vmem:[%s12 + $0x10] sm:$0xff]
    %v338 = vld [vmem:[%s12 + $0x18] sm:$0xff]
    %v339 = vld [vmem:[%s13] sm:$0x1]
    %v340 = vld [vmem:[%s14] sm:$0xff]
    %v341 = vld [vmem:[%s14 + $0x8] sm:$0xff]
    %v342 = vld [vmem:[%s14 + $0x10] sm:$0xff]
    %v343 = vld [vmem:[%s14 + $0x18] sm:$0xff]
    %v344 = vld [vmem:[%s15] sm:$0x1]
    %v345 = vld [vmem:[%s16] sm:$0x1]
    %v346 = vld [vmem:[%s17] sm:$0x1]
    %v347 = vld [vmem:[%s18] sm:$0xff]
    %v348 = vld [vmem:[%s18 + $0x8] sm:$0xff]
    %v349 = vld [vmem:[%s18 + $0x10] sm:$0xff]
    %v350 = vld [vmem:[%s18 + $0x18] sm:$0xff]
    %v351 = vld [vmem:[%s19] sm:$0x1]
    %v352 = vld [vmem:[%s20] sm:$0xff]
    %v353 = vld [vmem:[%s20 + $0x8] sm:$0xff]
    %v354 = vld [vmem:[%s20 + $0x10] sm:$0xff]
    %v355 = vld [vmem:[%s20 + $0x18] sm:$0xff]
    %v356 = vld [vmem:[%s20 + $0x20] sm:$0xff]
    %v357 = vld [vmem:[%s20 + $0x28] sm:$0xff]
    %v358 = vld [vmem:[%s20 + $0x30] sm:$0xff]
    %v359 = vld [vmem:[%s20 + $0x38] sm:$0xff]
    %v360 = vld [vmem:[%s20 + $0x40] sm:$0xff]
    %v361 = vld [vmem:[%s20 + $0x48] sm:$0xff]
    %v362 = vld [vmem:[%s20 + $0x50] sm:$0xff]
    %v363 = vld [vmem:[%s20 + $0x58] sm:$0xff]
    %v364 = vld [vmem:[%s20 + $0x60] sm:$0xff]
    %v365 = vld [vmem:[%s20 + $0x68] sm:$0xff]
    %v366 = vld [vmem:[%s20 + $0x70] sm:$0xff]
    %v367 = vld [vmem:[%s20 + $0x78] sm:$0xff]
    %v368 = vld [vmem:[%s21] sm:$0x1]
    %v369 = vld [vmem:[%s22] sm:$0x1]
    %v370 = vld [vmem:[%s23] sm:$0x1]
    %v372 = vperm.slane %v329, 0
    %v375 = vsel %vm260, %v320, 0
    %v378 = vsel %vm260, %v321, 0
    %380 = vmatpush.msra.mxu0 0.0
    %381 = vmatpush.msra.mxu0 0.0
    %382 = vmatpush.msra.mxu0 0.0
    %383 = vmatpush.msra.mxu0 0.0
    %384 = vmatpush.msra.mxu0 0.0
    %385 = vmatpush.msra.mxu0 0.0
    %386 = vmatpush.msra.mxu0 0.0
    %387 = vmatpush.msra.mxu0 0.0
    %388 = vmatpush.msra.mxu0 0.0
    %389 = vmatpush.msra.mxu0 0.0
    %390 = vmatpush.msra.mxu0 0.0
    %391 = vmatpush.msra.mxu0 0.0
    %392 = vmatpush.msra.mxu0 %v328
    %393 = vmatpush.msra.mxu0 %v327
    %394 = vmatpush.msra.mxu0 %v326
    %395 = vmatpush.msra.mxu0 %v325
    %396 = vmatmul.f32.gmra.mxu0 %v375
    %v397 = vpop.f32.mrf.mxu0
    %v398 = vadd.f32 %v372, %v397
    %399 = vmatmul.f32.gmra.mxu0 %v378
    %v400 = vpop.f32.mrf.mxu0
    %v401 = vadd.f32 %v372, %v400
    %402 = vdwg.mxu0
    %v404 = vperm.slane %v334, 0
    %406 = vmatpush.msra.mxu0 0.0
    %407 = vmatpush.msra.mxu0 0.0
    %408 = vmatpush.msra.mxu0 0.0
    %409 = vmatpush.msra.mxu0 0.0
    %410 = vmatpush.msra.mxu0 0.0
    %411 = vmatpush.msra.mxu0 0.0
    %412 = vmatpush.msra.mxu0 0.0
    %413 = vmatpush.msra.mxu0 0.0
    %414 = vmatpush.msra.mxu0 0.0
    %415 = vmatpush.msra.mxu0 0.0
    %416 = vmatpush.msra.mxu0 0.0
    %417 = vmatpush.msra.mxu0 0.0
    %418 = vmatpush.msra.mxu0 %v333
    %419 = vmatpush.msra.mxu0 %v332
    %420 = vmatpush.msra.mxu0 %v331
    %421 = vmatpush.msra.mxu0 %v330
    %422 = vmatmul.f32.gmra.mxu0 %v375
    %v423 = vpop.f32.mrf.mxu0
    %v424 = vadd.f32 %v404, %v423
    %425 = vmatmul.f32.gmra.mxu0 %v378
    %v426 = vpop.f32.mrf.mxu0
    %v427 = vadd.f32 %v404, %v426
    %428 = vdwg.mxu0
    %v430 = vperm.slane %v339, 0
    %432 = vmatpush.msra.mxu0 0.0
    %433 = vmatpush.msra.mxu0 0.0
    %434 = vmatpush.msra.mxu0 0.0
    %435 = vmatpush.msra.mxu0 0.0
    %436 = vmatpush.msra.mxu0 0.0
    %437 = vmatpush.msra.mxu0 0.0
    %438 = vmatpush.msra.mxu0 0.0
    %439 = vmatpush.msra.mxu0 0.0
    %440 = vmatpush.msra.mxu0 0.0
    %441 = vmatpush.msra.mxu0 0.0
    %442 = vmatpush.msra.mxu0 0.0
    %443 = vmatpush.msra.mxu0 0.0
    %444 = vmatpush.msra.mxu0 %v338
    %445 = vmatpush.msra.mxu0 %v337
    %446 = vmatpush.msra.mxu0 %v336
    %447 = vmatpush.msra.mxu0 %v335
    %448 = vmatmul.f32.gmra.mxu0 %v375
    %v449 = vpop.f32.mrf.mxu0
    %v450 = vadd.f32 %v430, %v449
    %451 = vmatmul.f32.gmra.mxu0 %v378
    %v452 = vpop.f32.mrf.mxu0
    %v453 = vadd.f32 %v430, %v452
    %454 = vdwg.mxu0
    %vm455 = vcmask 64512
    %v457 = vsel %vm455, %v398, 0
    %v460 = vsel %vm455, %v424, 0
    %462 = vmatpush.xpose.msra.mxu0 0.0
    %463 = vmatpush.xpose.msra.mxu0 0.0
    %464 = vmatpush.xpose.msra.mxu0 0.0
    %465 = vmatpush.xpose.msra.mxu0 0.0
    %466 = vmatpush.xpose.msra.mxu0 0.0
    %467 = vmatpush.xpose.msra.mxu0 0.0
    %468 = vmatpush.xpose.msra.mxu0 0.0
    %469 = vmatpush.xpose.msra.mxu0 0.0
    %470 = vmatpush.xpose.msra.mxu0 0.0
    %471 = vmatpush.xpose.msra.mxu0 0.0
    %472 = vmatpush.xpose.msra.mxu0 0.0
    %473 = vmatpush.xpose.msra.mxu0 0.0
    %474 = vmatpush.xpose.msra.mxu0 0.0
    %475 = vmatpush.xpose.msra.mxu0 0.0
    %476 = vmatpush.xpose.msra.mxu0 0.0
    %477 = vmatpush.xpose.msra.mxu0 %v460
    %478 = vmatmul.f32.gmra.mxu0 %v457
    %v479 = vpop.f32.mrf.mxu0
    %v480 = vadd.f32 0.0, %v479
    %481 = vdwg.mxu0
    %v483 = vsel %vm455, %v401, 0
    %v486 = vsel %vm455, %v427, 0
    %488 = vmatpush.xpose.msra.mxu0 0.0
    %489 = vmatpush.xpose.msra.mxu0 0.0
    %490 = vmatpush.xpose.msra.mxu0 0.0
    %491 = vmatpush.xpose.msra.mxu0 0.0
    %492 = vmatpush.xpose.msra.mxu0 0.0
    %493 = vmatpush.xpose.msra.mxu0 0.0
    %494 = vmatpush.xpose.msra.mxu0 0.0
    %495 = vmatpush.xpose.msra.mxu0 0.0
    %496 = vmatpush.xpose.msra.mxu0 0.0
    %497 = vmatpush.xpose.msra.mxu0 0.0
    %498 = vmatpush.xpose.msra.mxu0 0.0
    %499 = vmatpush.xpose.msra.mxu0 0.0
    %500 = vmatpush.xpose.msra.mxu0 0.0
    %501 = vmatpush.xpose.msra.mxu0 0.0
    %502 = vmatpush.xpose.msra.mxu0 0.0
    %503 = vmatpush.xpose.msra.mxu0 %v486
    %504 = vmatmul.f32.gmra.mxu0 %v483
    %v505 = vpop.f32.mrf.mxu0
    %v506 = vadd.f32 0.0, %v505
    %507 = vdwg.mxu0
    %v508 = vmul.f32 %v480, 0.35355338
    %v509 = vmul.f32 %v506, 0.35355338
    %v511 = vrot.slane %v324, 1
    %v512 = vperm.slane %v324, 0
    %v513 = vperm.slane %v511, 0
    %v516 = vadd.f32 %v508, %v512
    %v517 = vadd.f32 %v509, %v513
    %v518 = vsel %vm455, %v516, -inf
    %519 = vmax.xlane.f32.xlu0 %v518
    %v520 = vpop.xlane.xlu0 %519
    %v521 = vsel %vm455, %v517, -inf
    %522 = vmax.xlane.f32.xlu0 %v521
    %v523 = vpop.xlane.xlu0 %522
    %v524 = vsub.f32 %v516, %v520
    %v525 = vsub.f32 %v517, %v523
    %v526 = vmul.f32 %v524, 1.442695
    %v527 = vpow.pop %v526
    %v528 = vmul.f32 %v525, 1.442695
    %v529 = vpow.pop %v528
    %v530 = vsel %vm455, %v527, 0.0
    %531 = vadd.xlane.f32.xlu0 %v530
    %v532 = vpop.xlane.xlu0 %531
    %v533 = vsel %vm455, %v529, 0.0
    %534 = vadd.xlane.f32.xlu0 %v533
    %v535 = vpop.xlane.xlu0 %534
    %v536 = vrcp.pop %v532
    %v537 = vrcp.pop %v535
    %v538 = vmul.f32 %v527, %v536
    %v539 = vmul.f32 %v529, %v537
    %v541 = vsel %vm455, %v538, 0
    %543 = vmatpush.msra.mxu0 0.0
    %544 = vmatpush.msra.mxu0 0.0
    %545 = vmatpush.msra.mxu0 0.0
    %546 = vmatpush.msra.mxu0 0.0
    %547 = vmatpush.msra.mxu0 0.0
    %548 = vmatpush.msra.mxu0 0.0
    %549 = vmatpush.msra.mxu0 0.0
    %550 = vmatpush.msra.mxu0 0.0
    %551 = vmatpush.msra.mxu0 0.0
    %552 = vmatpush.msra.mxu0 0.0
    %553 = vmatpush.msra.mxu0 0.0
    %554 = vmatpush.msra.mxu0 0.0
    %555 = vmatpush.msra.mxu0 0.0
    %556 = vmatpush.msra.mxu0 0.0
    %557 = vmatpush.msra.mxu0 0.0
    %558 = vmatpush.msra.mxu0 %v450
    %559 = vmatmul.f32.gmra.mxu0 %v541
    %v560 = vpop.f32.mrf.mxu0
    %v561 = vadd.f32 0.0, %v560
    %562 = vdwg.mxu0
    %v564 = vsel %vm455, %v539, 0
    %566 = vmatpush.msra.mxu0 0.0
    %567 = vmatpush.msra.mxu0 0.0
    %568 = vmatpush.msra.mxu0 0.0
    %569 = vmatpush.msra.mxu0 0.0
    %570 = vmatpush.msra.mxu0 0.0
    %571 = vmatpush.msra.mxu0 0.0
    %572 = vmatpush.msra.mxu0 0.0
    %573 = vmatpush.msra.mxu0 0.0
    %574 = vmatpush.msra.mxu0 0.0
    %575 = vmatpush.msra.mxu0 0.0
    %576 = vmatpush.msra.mxu0 0.0
    %577 = vmatpush.msra.mxu0 0.0
    %578 = vmatpush.msra.mxu0 0.0
    %579 = vmatpush.msra.mxu0 0.0
    %580 = vmatpush.msra.mxu0 0.0
    %581 = vmatpush.msra.mxu0 %v453
    %582 = vmatmul.f32.gmra.mxu0 %v564
    %v583 = vpop.f32.mrf.mxu0
    %v584 = vadd.f32 0.0, %v583
    %585 = vdwg.mxu0
    %586 = vrot.lane.b32.xlu0 %v398, 120
    %v587 = vpop.permute.xlu0 %586
    %588 = vrot.lane.b32.xlu0 %v424, 120
    %v589 = vpop.permute.xlu0 %588
    %v590 = vsel %vm455, %v587, 0
    %v592 = vsel %vm455, %v589, 0
    %594 = vmatpush.xpose.msra.mxu0 0.0
    %595 = vmatpush.xpose.msra.mxu0 0.0
    %596 = vmatpush.xpose.msra.mxu0 0.0
    %597 = vmatpush.xpose.msra.mxu0 0.0
    %598 = vmatpush.xpose.msra.mxu0 0.0
    %599 = vmatpush.xpose.msra.mxu0 0.0
    %600 = vmatpush.xpose.msra.mxu0 0.0
    %601 = vmatpush.xpose.msra.mxu0 0.0
    %602 = vmatpush.xpose.msra.mxu0 0.0
    %603 = vmatpush.xpose.msra.mxu0 0.0
    %604 = vmatpush.xpose.msra.mxu0 0.0
    %605 = vmatpush.xpose.msra.mxu0 0.0
    %606 = vmatpush.xpose.msra.mxu0 0.0
    %607 = vmatpush.xpose.msra.mxu0 0.0
    %608 = vmatpush.xpose.msra.mxu0 0.0
    %609 = vmatpush.xpose.msra.mxu0 %v592
    %610 = vmatmul.f32.gmra.mxu0 %v590
    %v611 = vpop.f32.mrf.mxu0
    %v612 = vadd.f32 0.0, %v611
    %613 = vdwg.mxu0
    %614 = vrot.lane.b32.xlu0 %v401, 120
    %v615 = vpop.permute.xlu0 %614
    %616 = vrot.lane.b32.xlu0 %v427, 120
    %v617 = vpop.permute.xlu0 %616
    %v618 = vsel %vm455, %v615, 0
    %v620 = vsel %vm455, %v617, 0
    %622 = vmatpush.xpose.msra.mxu0 0.0
    %623 = vmatpush.xpose.msra.mxu0 0.0
    %624 = vmatpush.xpose.msra.mxu0 0.0
    %625 = vmatpush.xpose.msra.mxu0 0.0
    %626 = vmatpush.xpose.msra.mxu0 0.0
    %627 = vmatpush.xpose.msra.mxu0 0.0
    %628 = vmatpush.xpose.msra.mxu0 0.0
    %629 = vmatpush.xpose.msra.mxu0 0.0
    %630 = vmatpush.xpose.msra.mxu0 0.0
    %631 = vmatpush.xpose.msra.mxu0 0.0
    %632 = vmatpush.xpose.msra.mxu0 0.0
    %633 = vmatpush.xpose.msra.mxu0 0.0
    %634 = vmatpush.xpose.msra.mxu0 0.0
    %635 = vmatpush.xpose.msra.mxu0 0.0
    %636 = vmatpush.xpose.msra.mxu0 0.0
    %637 = vmatpush.xpose.msra.mxu0 %v620
    %638 = vmatmul.f32.gmra.mxu0 %v618
    %v639 = vpop.f32.mrf.mxu0
    %v640 = vadd.f32 0.0, %v639
    %641 = vdwg.mxu0
    %v642 = vmul.f32 %v612, 0.35355338
    %v643 = vmul.f32 %v640, 0.35355338
    %v644 = vadd.f32 %v642, %v512
    %v645 = vadd.f32 %v643, %v513
    %v646 = vsel %vm455, %v644, -inf
    %647 = vmax.xlane.f32.xlu0 %v646
    %v648 = vpop.xlane.xlu0 %647
    %v649 = vsel %vm455, %v645, -inf
    %650 = vmax.xlane.f32.xlu0 %v649
    %v651 = vpop.xlane.xlu0 %650
    %v652 = vsub.f32 %v644, %v648
    %v653 = vsub.f32 %v645, %v651
    %v654 = vmul.f32 %v652, 1.442695
    %v655 = vpow.pop %v654
    %v656 = vmul.f32 %v653, 1.442695
    %v657 = vpow.pop %v656
    %v658 = vsel %vm455, %v655, 0.0
    %659 = vadd.xlane.f32.xlu0 %v658
    %v660 = vpop.xlane.xlu0 %659
    %v661 = vsel %vm455, %v657, 0.0
    %662 = vadd.xlane.f32.xlu0 %v661
    %v663 = vpop.xlane.xlu0 %662
    %v664 = vrcp.pop %v660
    %v665 = vrcp.pop %v663
    %v666 = vmul.f32 %v655, %v664
    %v667 = vmul.f32 %v657, %v665
    %669 = vrot.lane.b32.xlu0 %v450, 120
    %v670 = vpop.permute.xlu0 %669
    %v673 = vsel %vm455, %v666, 0
    %675 = vmatpush.msra.mxu0 0.0
    %676 = vmatpush.msra.mxu0 0.0
    %677 = vmatpush.msra.mxu0 0.0
    %678 = vmatpush.msra.mxu0 0.0
    %679 = vmatpush.msra.mxu0 0.0
    %680 = vmatpush.msra.mxu0 0.0
    %681 = vmatpush.msra.mxu0 0.0
    %682 = vmatpush.msra.mxu0 0.0
    %683 = vmatpush.msra.mxu0 0.0
    %684 = vmatpush.msra.mxu0 0.0
    %685 = vmatpush.msra.mxu0 0.0
    %686 = vmatpush.msra.mxu0 0.0
    %687 = vmatpush.msra.mxu0 0.0
    %688 = vmatpush.msra.mxu0 0.0
    %689 = vmatpush.msra.mxu0 0.0
    %690 = vmatpush.msra.mxu0 %v670
    %691 = vmatmul.f32.gmra.mxu0 %v673
    %v692 = vpop.f32.mrf.mxu0
    %v693 = vadd.f32 0.0, %v692
    %694 = vdwg.mxu0
    %696 = vrot.lane.b32.xlu0 %v453, 120
    %v697 = vpop.permute.xlu0 %696
    %v700 = vsel %vm455, %v667, 0
    %702 = vmatpush.msra.mxu0 0.0
    %703 = vmatpush.msra.mxu0 0.0
    %704 = vmatpush.msra.mxu0 0.0
    %705 = vmatpush.msra.mxu0 0.0
    %706 = vmatpush.msra.mxu0 0.0
    %707 = vmatpush.msra.mxu0 0.0
    %708 = vmatpush.msra.mxu0 0.0
    %709 = vmatpush.msra.mxu0 0.0
    %710 = vmatpush.msra.mxu0 0.0
    %711 = vmatpush.msra.mxu0 0.0
    %712 = vmatpush.msra.mxu0 0.0
    %713 = vmatpush.msra.mxu0 0.0
    %714 = vmatpush.msra.mxu0 0.0
    %715 = vmatpush.msra.mxu0 0.0
    %716 = vmatpush.msra.mxu0 0.0
    %717 = vmatpush.msra.mxu0 %v697
    %718 = vmatmul.f32.gmra.mxu0 %v700
    %v719 = vpop.f32.mrf.mxu0
    %v720 = vadd.f32 0.0, %v719
    %721 = vdwg.mxu0
    %v723 = vsel %vm455, %v693, 0
    %v726 = vsel %vm455, %v720, 0
    %728 = vmatpush.msra.mxu0 0.0
    %729 = vmatpush.msra.mxu0 0.0
    %730 = vmatpush.msra.mxu0 0.0
    %731 = vmatpush.msra.mxu0 0.0
    %732 = vmatpush.msra.mxu0 0.0
    %733 = vmatpush.msra.mxu0 0.0
    %734 = vmatpush.msra.mxu0 0.0
    %735 = vmatpush.msra.mxu0 0.0
    %736 = vmatpush.msra.mxu0 0.0
    %737 = vmatpush.msra.mxu0 0.0
    %738 = vmatpush.msra.mxu0 0.0
    %739 = vmatpush.msra.mxu0 0.0
    %740 = vmatpush.msra.mxu0 0.0
    %741 = vmatpush.msra.mxu0 0.0
    %742 = vmatpush.msra.mxu0 0.0
    %743 = vmatpush.msra.mxu0 %v341
    %744 = vmatmul.f32.gmra.mxu0 %v723
    %v745 = vpop.f32.mrf.mxu0
    %v746 = vadd.f32 0.0, %v745
    %747 = vmatmul.f32.gmra.mxu0 %v726
    %v748 = vpop.f32.mrf.mxu0
    %v749 = vadd.f32 0.0, %v748
    %750 = vdwg.mxu0
    %v752 = vsel %vm455, %v561, 0
    %v755 = vsel %vm455, %v584, 0
    %757 = vmatpush.msra.mxu0 0.0
    %758 = vmatpush.msra.mxu0 0.0
    %759 = vmatpush.msra.mxu0 0.0
    %760 = vmatpush.msra.mxu0 0.0
    %761 = vmatpush.msra.mxu0 0.0
    %762 = vmatpush.msra.mxu0 0.0
    %763 = vmatpush.msra.mxu0 0.0
    %764 = vmatpush.msra.mxu0 0.0
    %765 = vmatpush.msra.mxu0 0.0
    %766 = vmatpush.msra.mxu0 0.0
    %767 = vmatpush.msra.mxu0 0.0
    %768 = vmatpush.msra.mxu0 0.0
    %769 = vmatpush.msra.mxu0 0.0
    %770 = vmatpush.msra.mxu0 0.0
    %771 = vmatpush.msra.mxu0 0.0
    %772 = vmatpush.msra.mxu0 %v340
    %773 = vmatmul.f32.gmra.mxu0 %v752
    %v774 = vpop.f32.mrf.mxu0
    %v775 = vadd.f32 %v746, %v774
    %776 = vmatmul.f32.gmra.mxu0 %v755
    %v777 = vpop.f32.mrf.mxu0
    %v778 = vadd.f32 %v749, %v777
    %779 = vdwg.mxu0
    %780 = vrot.lane.b32.xlu0 %v398, 112
    %v781 = vpop.permute.xlu0 %780
    %782 = vrot.lane.b32.xlu0 %v424, 112
    %v783 = vpop.permute.xlu0 %782
    %v784 = vsel %vm455, %v781, 0
    %v786 = vsel %vm455, %v783, 0
    %788 = vmatpush.xpose.msra.mxu0 0.0
    %789 = vmatpush.xpose.msra.mxu0 0.0
    %790 = vmatpush.xpose.msra.mxu0 0.0
    %791 = vmatpush.xpose.msra.mxu0 0.0
    %792 = vmatpush.xpose.msra.mxu0 0.0
    %793 = vmatpush.xpose.msra.mxu0 0.0
    %794 = vmatpush.xpose.msra.mxu0 0.0
    %795 = vmatpush.xpose.msra.mxu0 0.0
    %796 = vmatpush.xpose.msra.mxu0 0.0
    %797 = vmatpush.xpose.msra.mxu0 0.0
    %798 = vmatpush.xpose.msra.mxu0 0.0
    %799 = vmatpush.xpose.msra.mxu0 0.0
    %800 = vmatpush.xpose.msra.mxu0 0.0
    %801 = vmatpush.xpose.msra.mxu0 0.0
    %802 = vmatpush.xpose.msra.mxu0 0.0
    %803 = vmatpush.xpose.msra.mxu0 %v786
    %804 = vmatmul.f32.gmra.mxu0 %v784
    %v805 = vpop.f32.mrf.mxu0
    %v806 = vadd.f32 0.0, %v805
    %807 = vdwg.mxu0
    %808 = vrot.lane.b32.xlu0 %v401, 112
    %v809 = vpop.permute.xlu0 %808
    %810 = vrot.lane.b32.xlu0 %v427, 112
    %v811 = vpop.permute.xlu0 %810
    %v812 = vsel %vm455, %v809, 0
    %v814 = vsel %vm455, %v811, 0
    %816 = vmatpush.xpose.msra.mxu0 0.0
    %817 = vmatpush.xpose.msra.mxu0 0.0
    %818 = vmatpush.xpose.msra.mxu0 0.0
    %819 = vmatpush.xpose.msra.mxu0 0.0
    %820 = vmatpush.xpose.msra.mxu0 0.0
    %821 = vmatpush.xpose.msra.mxu0 0.0
    %822 = vmatpush.xpose.msra.mxu0 0.0
    %823 = vmatpush.xpose.msra.mxu0 0.0
    %824 = vmatpush.xpose.msra.mxu0 0.0
    %825 = vmatpush.xpose.msra.mxu0 0.0
    %826 = vmatpush.xpose.msra.mxu0 0.0
    %827 = vmatpush.xpose.msra.mxu0 0.0
    %828 = vmatpush.xpose.msra.mxu0 0.0
    %829 = vmatpush.xpose.msra.mxu0 0.0
    %830 = vmatpush.xpose.msra.mxu0 0.0
    %831 = vmatpush.xpose.msra.mxu0 %v814
    %832 = vmatmul.f32.gmra.mxu0 %v812
    %v833 = vpop.f32.mrf.mxu0
    %v834 = vadd.f32 0.0, %v833
    %835 = vdwg.mxu0
    %v836 = vmul.f32 %v806, 0.35355338
    %v837 = vmul.f32 %v834, 0.35355338
    %v838 = vadd.f32 %v836, %v512
    %v839 = vadd.f32 %v837, %v513
    %v840 = vsel %vm455, %v838, -inf
    %841 = vmax.xlane.f32.xlu0 %v840
    %v842 = vpop.xlane.xlu0 %841
    %v843 = vsel %vm455, %v839, -inf
    %844 = vmax.xlane.f32.xlu0 %v843
    %v845 = vpop.xlane.xlu0 %844
    %v846 = vsub.f32 %v838, %v842
    %v847 = vsub.f32 %v839, %v845
    %v848 = vmul.f32 %v846, 1.442695
    %v849 = vpow.pop %v848
    %v850 = vmul.f32 %v847, 1.442695
    %v851 = vpow.pop %v850
    %v852 = vsel %vm455, %v849, 0.0
    %853 = vadd.xlane.f32.xlu0 %v852
    %v854 = vpop.xlane.xlu0 %853
    %v855 = vsel %vm455, %v851, 0.0
    %856 = vadd.xlane.f32.xlu0 %v855
    %v857 = vpop.xlane.xlu0 %856
    %v858 = vrcp.pop %v854
    %v859 = vrcp.pop %v857
    %v860 = vmul.f32 %v849, %v858
    %v861 = vmul.f32 %v851, %v859
    %862 = vrot.lane.b32.xlu0 %v450, 112
    %v863 = vpop.permute.xlu0 %862
    %v866 = vsel %vm455, %v860, 0
    %868 = vmatpush.msra.mxu0 0.0
    %869 = vmatpush.msra.mxu0 0.0
    %870 = vmatpush.msra.mxu0 0.0
    %871 = vmatpush.msra.mxu0 0.0
    %872 = vmatpush.msra.mxu0 0.0
    %873 = vmatpush.msra.mxu0 0.0
    %874 = vmatpush.msra.mxu0 0.0
    %875 = vmatpush.msra.mxu0 0.0
    %876 = vmatpush.msra.mxu0 0.0
    %877 = vmatpush.msra.mxu0 0.0
    %878 = vmatpush.msra.mxu0 0.0
    %879 = vmatpush.msra.mxu0 0.0
    %880 = vmatpush.msra.mxu0 0.0
    %881 = vmatpush.msra.mxu0 0.0
    %882 = vmatpush.msra.mxu0 0.0
    %883 = vmatpush.msra.mxu0 %v863
    %884 = vmatmul.f32.gmra.mxu0 %v866
    %v885 = vpop.f32.mrf.mxu0
    %v886 = vadd.f32 0.0, %v885
    %887 = vdwg.mxu0
    %888 = vrot.lane.b32.xlu0 %v453, 112
    %v889 = vpop.permute.xlu0 %888
    %v892 = vsel %vm455, %v861, 0
    %894 = vmatpush.msra.mxu0 0.0
    %895 = vmatpush.msra.mxu0 0.0
    %896 = vmatpush.msra.mxu0 0.0
    %897 = vmatpush.msra.mxu0 0.0
    %898 = vmatpush.msra.mxu0 0.0
    %899 = vmatpush.msra.mxu0 0.0
    %900 = vmatpush.msra.mxu0 0.0
    %901 = vmatpush.msra.mxu0 0.0
    %902 = vmatpush.msra.mxu0 0.0
    %903 = vmatpush.msra.mxu0 0.0
    %904 = vmatpush.msra.mxu0 0.0
    %905 = vmatpush.msra.mxu0 0.0
    %906 = vmatpush.msra.mxu0 0.0
    %907 = vmatpush.msra.mxu0 0.0
    %908 = vmatpush.msra.mxu0 0.0
    %909 = vmatpush.msra.mxu0 %v889
    %910 = vmatmul.f32.gmra.mxu0 %v892
    %v911 = vpop.f32.mrf.mxu0
    %v912 = vadd.f32 0.0, %v911
    %913 = vdwg.mxu0
    %v915 = vsel %vm455, %v886, 0
    %v918 = vsel %vm455, %v912, 0
    %920 = vmatpush.msra.mxu0 0.0
    %921 = vmatpush.msra.mxu0 0.0
    %922 = vmatpush.msra.mxu0 0.0
    %923 = vmatpush.msra.mxu0 0.0
    %924 = vmatpush.msra.mxu0 0.0
    %925 = vmatpush.msra.mxu0 0.0
    %926 = vmatpush.msra.mxu0 0.0
    %927 = vmatpush.msra.mxu0 0.0
    %928 = vmatpush.msra.mxu0 0.0
    %929 = vmatpush.msra.mxu0 0.0
    %930 = vmatpush.msra.mxu0 0.0
    %931 = vmatpush.msra.mxu0 0.0
    %932 = vmatpush.msra.mxu0 0.0
    %933 = vmatpush.msra.mxu0 0.0
    %934 = vmatpush.msra.mxu0 0.0
    %935 = vmatpush.msra.mxu0 %v342
    %936 = vmatmul.f32.gmra.mxu0 %v915
    %v937 = vpop.f32.mrf.mxu0
    %v938 = vadd.f32 0.0, %v937
    %939 = vmatmul.f32.gmra.mxu0 %v918
    %v940 = vpop.f32.mrf.mxu0
    %v941 = vadd.f32 0.0, %v940
    %942 = vdwg.mxu0
    %v943 = vadd.f32 %v775, %v938
    %v944 = vadd.f32 %v778, %v941
    %945 = vrot.lane.b32.xlu0 %v398, 104
    %v946 = vpop.permute.xlu0 %945
    %947 = vrot.lane.b32.xlu0 %v424, 104
    %v948 = vpop.permute.xlu0 %947
    %v949 = vsel %vm455, %v946, 0
    %v951 = vsel %vm455, %v948, 0
    %953 = vmatpush.xpose.msra.mxu0 0.0
    %954 = vmatpush.xpose.msra.mxu0 0.0
    %955 = vmatpush.xpose.msra.mxu0 0.0
    %956 = vmatpush.xpose.msra.mxu0 0.0
    %957 = vmatpush.xpose.msra.mxu0 0.0
    %958 = vmatpush.xpose.msra.mxu0 0.0
    %959 = vmatpush.xpose.msra.mxu0 0.0
    %960 = vmatpush.xpose.msra.mxu0 0.0
    %961 = vmatpush.xpose.msra.mxu0 0.0
    %962 = vmatpush.xpose.msra.mxu0 0.0
    %963 = vmatpush.xpose.msra.mxu0 0.0
    %964 = vmatpush.xpose.msra.mxu0 0.0
    %965 = vmatpush.xpose.msra.mxu0 0.0
    %966 = vmatpush.xpose.msra.mxu0 0.0
    %967 = vmatpush.xpose.msra.mxu0 0.0
    %968 = vmatpush.xpose.msra.mxu0 %v951
    %969 = vmatmul.f32.gmra.mxu0 %v949
    %v970 = vpop.f32.mrf.mxu0
    %v971 = vadd.f32 0.0, %v970
    %972 = vdwg.mxu0
    %973 = vrot.lane.b32.xlu0 %v401, 104
    %v974 = vpop.permute.xlu0 %973
    %975 = vrot.lane.b32.xlu0 %v427, 104
    %v976 = vpop.permute.xlu0 %975
    %v977 = vsel %vm455, %v974, 0
    %v979 = vsel %vm455, %v976, 0
    %981 = vmatpush.xpose.msra.mxu0 0.0
    %982 = vmatpush.xpose.msra.mxu0 0.0
    %983 = vmatpush.xpose.msra.mxu0 0.0
    %984 = vmatpush.xpose.msra.mxu0 0.0
    %985 = vmatpush.xpose.msra.mxu0 0.0
    %986 = vmatpush.xpose.msra.mxu0 0.0
    %987 = vmatpush.xpose.msra.mxu0 0.0
    %988 = vmatpush.xpose.msra.mxu0 0.0
    %989 = vmatpush.xpose.msra.mxu0 0.0
    %990 = vmatpush.xpose.msra.mxu0 0.0
    %991 = vmatpush.xpose.msra.mxu0 0.0
    %992 = vmatpush.xpose.msra.mxu0 0.0
    %993 = vmatpush.xpose.msra.mxu0 0.0
    %994 = vmatpush.xpose.msra.mxu0 0.0
    %995 = vmatpush.xpose.msra.mxu0 0.0
    %996 = vmatpush.xpose.msra.mxu0 %v979
    %997 = vmatmul.f32.gmra.mxu0 %v977
    %v998 = vpop.f32.mrf.mxu0
    %v999 = vadd.f32 0.0, %v998
    %1000 = vdwg.mxu0
    %v1001 = vmul.f32 %v971, 0.35355338
    %v1002 = vmul.f32 %v999, 0.35355338
    %v1003 = vadd.f32 %v1001, %v512
    %v1004 = vadd.f32 %v1002, %v513
    %v1005 = vsel %vm455, %v1003, -inf
    %1006 = vmax.xlane.f32.xlu0 %v1005
    %v1007 = vpop.xlane.xlu0 %1006
    %v1008 = vsel %vm455, %v1004, -inf
    %1009 = vmax.xlane.f32.xlu0 %v1008
    %v1010 = vpop.xlane.xlu0 %1009
    %v1011 = vsub.f32 %v1003, %v1007
    %v1012 = vsub.f32 %v1004, %v1010
    %v1013 = vmul.f32 %v1011, 1.442695
    %v1014 = vpow.pop %v1013
    %v1015 = vmul.f32 %v1012, 1.442695
    %v1016 = vpow.pop %v1015
    %v1017 = vsel %vm455, %v1014, 0.0
    %1018 = vadd.xlane.f32.xlu0 %v1017
    %v1019 = vpop.xlane.xlu0 %1018
    %v1020 = vsel %vm455, %v1016, 0.0
    %1021 = vadd.xlane.f32.xlu0 %v1020
    %v1022 = vpop.xlane.xlu0 %1021
    %v1023 = vrcp.pop %v1019
    %v1024 = vrcp.pop %v1022
    %v1025 = vmul.f32 %v1014, %v1023
    %v1026 = vmul.f32 %v1016, %v1024
    %1027 = vrot.lane.b32.xlu0 %v450, 104
    %v1028 = vpop.permute.xlu0 %1027
    %v1031 = vsel %vm455, %v1025, 0
    %1033 = vmatpush.msra.mxu0 0.0
    %1034 = vmatpush.msra.mxu0 0.0
    %1035 = vmatpush.msra.mxu0 0.0
    %1036 = vmatpush.msra.mxu0 0.0
    %1037 = vmatpush.msra.mxu0 0.0
    %1038 = vmatpush.msra.mxu0 0.0
    %1039 = vmatpush.msra.mxu0 0.0
    %1040 = vmatpush.msra.mxu0 0.0
    %1041 = vmatpush.msra.mxu0 0.0
    %1042 = vmatpush.msra.mxu0 0.0
    %1043 = vmatpush.msra.mxu0 0.0
    %1044 = vmatpush.msra.mxu0 0.0
    %1045 = vmatpush.msra.mxu0 0.0
    %1046 = vmatpush.msra.mxu0 0.0
    %1047 = vmatpush.msra.mxu0 0.0
    %1048 = vmatpush.msra.mxu0 %v1028
    %1049 = vmatmul.f32.gmra.mxu0 %v1031
    %v1050 = vpop.f32.mrf.mxu0
    %v1051 = vadd.f32 0.0, %v1050
    %1052 = vdwg.mxu0
    %1053 = vrot.lane.b32.xlu0 %v453, 104
    %v1054 = vpop.permute.xlu0 %1053
    %v1057 = vsel %vm455, %v1026, 0
    %1059 = vmatpush.msra.mxu0 0.0
    %1060 = vmatpush.msra.mxu0 0.0
    %1061 = vmatpush.msra.mxu0 0.0
    %1062 = vmatpush.msra.mxu0 0.0
    %1063 = vmatpush.msra.mxu0 0.0
    %1064 = vmatpush.msra.mxu0 0.0
    %1065 = vmatpush.msra.mxu0 0.0
    %1066 = vmatpush.msra.mxu0 0.0
    %1067 = vmatpush.msra.mxu0 0.0
    %1068 = vmatpush.msra.mxu0 0.0
    %1069 = vmatpush.msra.mxu0 0.0
    %1070 = vmatpush.msra.mxu0 0.0
    %1071 = vmatpush.msra.mxu0 0.0
    %1072 = vmatpush.msra.mxu0 0.0
    %1073 = vmatpush.msra.mxu0 0.0
    %1074 = vmatpush.msra.mxu0 %v1054
    %1075 = vmatmul.f32.gmra.mxu0 %v1057
    %v1076 = vpop.f32.mrf.mxu0
    %v1077 = vadd.f32 0.0, %v1076
    %1078 = vdwg.mxu0
    %v1080 = vsel %vm455, %v1051, 0
    %v1083 = vsel %vm455, %v1077, 0
    %1085 = vmatpush.msra.mxu0 0.0
    %1086 = vmatpush.msra.mxu0 0.0
    %1087 = vmatpush.msra.mxu0 0.0
    %1088 = vmatpush.msra.mxu0 0.0
    %1089 = vmatpush.msra.mxu0 0.0
    %1090 = vmatpush.msra.mxu0 0.0
    %1091 = vmatpush.msra.mxu0 0.0
    %1092 = vmatpush.msra.mxu0 0.0
    %1093 = vmatpush.msra.mxu0 0.0
    %1094 = vmatpush.msra.mxu0 0.0
    %1095 = vmatpush.msra.mxu0 0.0
    %1096 = vmatpush.msra.mxu0 0.0
    %1097 = vmatpush.msra.mxu0 0.0
    %1098 = vmatpush.msra.mxu0 0.0
    %1099 = vmatpush.msra.mxu0 0.0
    %1100 = vmatpush.msra.mxu0 %v343
    %1101 = vmatmul.f32.gmra.mxu0 %v1080
    %v1102 = vpop.f32.mrf.mxu0
    %v1103 = vadd.f32 0.0, %v1102
    %1104 = vmatmul.f32.gmra.mxu0 %v1083
    %v1105 = vpop.f32.mrf.mxu0
    %v1106 = vadd.f32 0.0, %v1105
    %1107 = vdwg.mxu0
    %v1108 = vadd.f32 %v943, %v1103
    %v1109 = vadd.f32 %v944, %v1106
    %v1111 = vperm.slane %v344, 0
    %v1113 = vadd.f32 %v1108, %v1111
    %v1114 = vadd.f32 %v1109, %v1111
    %v1115 = vadd.f32 %v1113, %v320
    %v1116 = vadd.f32 %v1114, %v321
    %v1117 = vsel %vm260, %v1115, 0.0
    %1118 = vadd.xlane.f32.xlu0 %v1117
    %v1119 = vpop.xlane.xlu0 %1118
    %v1120 = vsel %vm260, %v1116, 0.0
    %1121 = vadd.xlane.f32.xlu0 %v1120
    %v1122 = vpop.xlane.xlu0 %1121
    %v1123 = vmul.f32 %v1119, %v273
    %v1124 = vmul.f32 %v1122, %v273
    %v1125 = vsub.f32 %v1115, %v1123
    %v1126 = vsub.f32 %v1116, %v1124
    %v1127 = vmul.f32 %v1125, %v1125
    %v1128 = vmul.f32 %v1126, %v1126
    %v1129 = vsel %vm260, %v1127, 0.0
    %1130 = vadd.xlane.f32.xlu0 %v1129
    %v1131 = vpop.xlane.xlu0 %1130
    %v1132 = vsel %vm260, %v1128, 0.0
    %1133 = vadd.xlane.f32.xlu0 %v1132
    %v1134 = vpop.xlane.xlu0 %1133
    %v1135 = vmul.f32 %v1131, %v273
    %v1136 = vmul.f32 %v1134, %v273
    %v1137 = vadd.f32 %v1135, 1e-12
    %v1138 = vadd.f32 %v1136, 1e-12
    %v1139 = vrsqrt.pop %v1137
    %v1140 = vmul.f32 %v1139, %v1137
    %v1141 = vmul.f32 %v1140, %v1139
    %v1142 = vmul.f32 0.5, %v1141
    %v1143 = vsub.f32 1.5, %v1142
    %v1144 = vmul.f32 %v1139, %v1143
    %vm1145 = vweird.f32 %v1137
    %vm1146 = vweird.f32 %v1139
    %vm1147 = vmor %vm1145, %vm1146
    %v1148 = vsel %vm1147, %v1139, %v1144
    %v1149 = vrsqrt.pop %v1138
    %v1150 = vmul.f32 %v1149, %v1138
    %v1151 = vmul.f32 %v1150, %v1149
    %v1152 = vmul.f32 0.5, %v1151
    %v1153 = vsub.f32 1.5, %v1152
    %v1154 = vmul.f32 %v1149, %v1153
    %vm1155 = vweird.f32 %v1138
    %vm1156 = vweird.f32 %v1149
    %vm1157 = vmor %vm1155, %vm1156
    %v1158 = vsel %vm1157, %v1149, %v1154
    %v1159 = vmul.f32 %v1125, %v1148
    %v1160 = vmul.f32 %v1126, %v1158
    %v1162 = vperm.slane %v345, 0
    %v1164 = vmul.f32 %v1159, %v1162
    %v1165 = vmul.f32 %v1160, %v1162
    %v1167 = vperm.slane %v346, 0
    %v1169 = vadd.f32 %v1164, %v1167
    %v1170 = vadd.f32 %v1165, %v1167
    %v1172 = vperm.slane %v351, 0
    %v1175 = vsel %vm260, %v1169, 0
    %v1178 = vsel %vm260, %v1170, 0
    %1180 = vmatpush.msra.mxu0 0.0
    %1181 = vmatpush.msra.mxu0 0.0
    %1182 = vmatpush.msra.mxu0 0.0
    %1183 = vmatpush.msra.mxu0 0.0
    %1184 = vmatpush.msra.mxu0 0.0
    %1185 = vmatpush.msra.mxu0 0.0
    %1186 = vmatpush.msra.mxu0 0.0
    %1187 = vmatpush.msra.mxu0 0.0
    %1188 = vmatpush.msra.mxu0 0.0
    %1189 = vmatpush.msra.mxu0 0.0
    %1190 = vmatpush.msra.mxu0 0.0
    %1191 = vmatpush.msra.mxu0 0.0
    %1192 = vmatpush.msra.mxu0 %v350
    %1193 = vmatpush.msra.mxu0 %v349
    %1194 = vmatpush.msra.mxu0 %v348
    %1195 = vmatpush.msra.mxu0 %v347
    %1196 = vmatmul.f32.gmra.mxu0 %v1175
    %v1197 = vpop.f32.mrf.mxu0
    %v1198 = vadd.f32 %v1172, %v1197
    %1199 = vmatmul.f32.gmra.mxu0 %v1178
    %v1200 = vpop.f32.mrf.mxu0
    %v1201 = vadd.f32 %v1172, %v1200
    %1202 = vdwg.mxu0
    %v1203 = vmul.f32 %v1198, 0.5
    %v1204 = vmul.f32 %v1201, 0.5
    %v1205 = vmul.f32 %v1198, %v136
    %v1206 = vmul.f32 %v1201, %v136
    %vm1207 = vcmp.lt.f32.partialorder %v1205, 0.0
    %vm1208 = vcmp.lt.f32.partialorder %v1206, 0.0
    %v1209 = vsel %vm1207, -1.0, 1.0
    %v1210 = vsel %vm1208, -1.0, 1.0
    %v1211 = vand.u32 2147483647, %v1205
    %v1212 = vand.u32 2147483647, %v1206
    %v1213 = vmul.f32 %v1211, 0.3275911
    %v1214 = vmul.f32 %v1212, 0.3275911
    %v1215 = vadd.f32 %v1213, 1.0
    %v1216 = vadd.f32 %v1214, 1.0
    %v1217 = vrcp.pop %v1215
    %v1218 = vmul.f32 %v1215, %v1217
    %v1219 = vsub.f32 1.0, %v1218
    %v1220 = vmul.f32 %v1217, %v1219
    %v1221 = vadd.f32 %v1217, %v1220
    %vm1222 = vweird.f32 %v1215
    %vm1223 = vweird.f32 %v1217
    %vm1224 = vmor %vm1222, %vm1223
    %v1225 = vsel %vm1224, %v1217, %v1221
    %v1226 = vand.u32 2147483647, %v1215
    %vm1227 = vcmp.eq.f32.partialorder %v1226, 8.507059e+37
    %v1228 = vand.u32 %v1215, 2147483648
    %v1229 = vor.u32 1.1754944e-38, %v1228
    %v1230 = vsel %vm1227, %v1229, %v1225
    %v1231 = vmul.f32 1.0, %v1230
    %v1232 = vrcp.pop %v1216
    %v1233 = vmul.f32 %v1216, %v1232
    %v1234 = vsub.f32 1.0, %v1233
    %v1235 = vmul.f32 %v1232, %v1234
    %v1236 = vadd.f32 %v1232, %v1235
    %vm1237 = vweird.f32 %v1216
    %vm1238 = vweird.f32 %v1232
    %vm1239 = vmor %vm1237, %vm1238
    %v1240 = vsel %vm1239, %v1232, %v1236
    %v1241 = vand.u32 2147483647, %v1216
    %vm1242 = vcmp.eq.f32.partialorder %v1241, 8.507059e+37
    %v1243 = vand.u32 %v1216, 2147483648
    %v1244 = vor.u32 1.1754944e-38, %v1243
    %v1245 = vsel %vm1242, %v1244, %v1240
    %v1246 = vmul.f32 1.0, %v1245
    %v1247 = vmul.f32 %v1231, 1.0614054
    %v1248 = vmul.f32 %v1246, 1.0614054
    %v1249 = vadd.f32 %v1247, -1.4531521
    %v1250 = vadd.f32 %v1248, -1.4531521
    %v1251 = vmul.f32 %v1249, %v1231
    %v1252 = vmul.f32 %v1250, %v1246
    %v1253 = vadd.f32 %v1251, 1.4214138
    %v1254 = vadd.f32 %v1252, 1.4214138
    %v1255 = vmul.f32 %v1253, %v1231
    %v1256 = vmul.f32 %v1254, %v1246
    %v1257 = vadd.f32 %v1255, -0.28449672
    %v1258 = vadd.f32 %v1256, -0.28449672
    %v1259 = vmul.f32 %v1257, %v1231
    %v1260 = vmul.f32 %v1258, %v1246
    %v1261 = vadd.f32 %v1259, 0.2548296
    %v1262 = vadd.f32 %v1260, 0.2548296
    %v1263 = vmul.f32 %v1261, %v1231
    %v1264 = vmul.f32 %v1262, %v1246
    %v1265 = vsub.f32 0.0, %v1211
    %v1266 = vsub.f32 0.0, %v1212
    %v1267 = vmul.f32 %v1265, %v1211
    %v1268 = vmul.f32 %v1266, %v1212
    %v1269 = vmul.f32 %v1267, 1.442695
    %v1270 = vpow.pop %v1269
    %v1271 = vmul.f32 %v1268, 1.442695
    %v1272 = vpow.pop %v1271
    %v1273 = vmul.f32 %v1263, %v1270
    %v1274 = vmul.f32 %v1264, %v1272
    %v1275 = vsub.f32 1.0, %v1273
    %v1276 = vsub.f32 1.0, %v1274
    %v1277 = vmul.f32 %v1209, %v1275
    %v1278 = vmul.f32 %v1210, %v1276
    %v1279 = vadd.f32 %v1277, 1.0
    %v1280 = vadd.f32 %v1278, 1.0
    %v1281 = vmul.f32 %v1203, %v1279
    %v1282 = vmul.f32 %v1204, %v1280
    %v1284 = vperm.slane %v368, 0
    %1286 = vmatpush.msra.mxu0 %v367
    %1287 = vmatpush.msra.mxu0 %v366
    %1288 = vmatpush.msra.mxu0 %v365
    %1289 = vmatpush.msra.mxu0 %v364
    %1290 = vmatpush.msra.mxu0 %v363
    %1291 = vmatpush.msra.mxu0 %v362
    %1292 = vmatpush.msra.mxu0 %v361
    %1293 = vmatpush.msra.mxu0 %v360
    %1294 = vmatpush.msra.mxu0 %v359
    %1295 = vmatpush.msra.mxu0 %v358
    %1296 = vmatpush.msra.mxu0 %v357
    %1297 = vmatpush.msra.mxu0 %v356
    %1298 = vmatpush.msra.mxu0 %v355
    %1299 = vmatpush.msra.mxu0 %v354
    %1300 = vmatpush.msra.mxu0 %v353
    %1301 = vmatpush.msra.mxu0 %v352
    %1302 = vmatmul.f32.gmra.mxu0 %v1281
    %v1303 = vpop.f32.mrf.mxu0
    %v1304 = vadd.f32 %v1284, %v1303
    %1305 = vmatmul.f32.gmra.mxu0 %v1282
    %v1306 = vpop.f32.mrf.mxu0
    %v1307 = vadd.f32 %v1284, %v1306
    %1308 = vdwg.mxu0
    %v1309 = vadd.f32 %v1304, %v1169
    %v1310 = vadd.f32 %v1307, %v1170
    %v1311 = vsel %vm260, %v1309, 0.0
    %1312 = vadd.xlane.f32.xlu0 %v1311
    %v1313 = vpop.xlane.xlu0 %1312
    %v1314 = vsel %vm260, %v1310, 0.0
    %1315 = vadd.xlane.f32.xlu0 %v1314
    %v1316 = vpop.xlane.xlu0 %1315
    %v1317 = vmul.f32 %v1313, %v273
    %v1318 = vmul.f32 %v1316, %v273
    %v1319 = vsub.f32 %v1309, %v1317
    %v1320 = vsub.f32 %v1310, %v1318
    %v1321 = vmul.f32 %v1319, %v1319
    %v1322 = vmul.f32 %v1320, %v1320
    %v1323 = vsel %vm260, %v1321, 0.0
    %1324 = vadd.xlane.f32.xlu0 %v1323
    %v1325 = vpop.xlane.xlu0 %1324
    %v1326 = vsel %vm260, %v1322, 0.0
    %1327 = vadd.xlane.f32.xlu0 %v1326
    %v1328 = vpop.xlane.xlu0 %1327
    %v1329 = vmul.f32 %v1325, %v273
    %v1330 = vmul.f32 %v1328, %v273
    %v1331 = vadd.f32 %v1329, 1e-12
    %v1332 = vadd.f32 %v1330, 1e-12
    %v1333 = vrsqrt.pop %v1331
    %v1334 = vmul.f32 %v1333, %v1331
    %v1335 = vmul.f32 %v1334, %v1333
    %v1336 = vmul.f32 0.5, %v1335
    %v1337 = vsub.f32 1.5, %v1336
    %v1338 = vmul.f32 %v1333, %v1337
    %vm1339 = vweird.f32 %v1331
    %vm1340 = vweird.f32 %v1333
    %vm1341 = vmor %vm1339, %vm1340
    %v1342 = vsel %vm1341, %v1333, %v1338
    %v1343 = vrsqrt.pop %v1332
    %v1344 = vmul.f32 %v1343, %v1332
    %v1345 = vmul.f32 %v1344, %v1343
    %v1346 = vmul.f32 0.5, %v1345
    %v1347 = vsub.f32 1.5, %v1346
    %v1348 = vmul.f32 %v1343, %v1347
    %vm1349 = vweird.f32 %v1332
    %vm1350 = vweird.f32 %v1343
    %vm1351 = vmor %vm1349, %vm1350
    %v1352 = vsel %vm1351, %v1343, %v1348
    %v1353 = vmul.f32 %v1319, %v1342
    %v1354 = vmul.f32 %v1320, %v1352
    %v1356 = vperm.slane %v369, 0
    %v1358 = vmul.f32 %v1353, %v1356
    %v1359 = vmul.f32 %v1354, %v1356
    %v1361 = vperm.slane %v370, 0
    %v1363 = vadd.f32 %v1358, %v1361
    %v1364 = vadd.f32 %v1359, %v1361
    %s1365 = scalar_lea.vmem %s8, 32
    %v1366 = vld [vmem:[%s1365] sm:$0xff]
    %v1367 = vld [vmem:[%s1365 + $0x8] sm:$0xff]
    %v1368 = vld [vmem:[%s1365 + $0x10] sm:$0xff]
    %v1369 = vld [vmem:[%s1365 + $0x18] sm:$0xff]
    %s1370 = scalar_lea.vmem %s9, 1
    %v1371 = vld [vmem:[%s1370] sm:$0x1]
    %s1372 = scalar_lea.vmem %s10, 32
    %v1373 = vld [vmem:[%s1372] sm:$0xff]
    %v1374 = vld [vmem:[%s1372 + $0x8] sm:$0xff]
    %v1375 = vld [vmem:[%s1372 + $0x10] sm:$0xff]
    %v1376 = vld [vmem:[%s1372 + $0x18] sm:$0xff]
    %s1377 = scalar_lea.vmem %s11, 1
    %v1378 = vld [vmem:[%s1377] sm:$0x1]
    %s1379 = scalar_lea.vmem %s12, 32
    %v1380 = vld [vmem:[%s1379] sm:$0xff]
    %v1381 = vld [vmem:[%s1379 + $0x8] sm:$0xff]
    %v1382 = vld [vmem:[%s1379 + $0x10] sm:$0xff]
    %v1383 = vld [vmem:[%s1379 + $0x18] sm:$0xff]
    %s1384 = scalar_lea.vmem %s13, 1
    %v1385 = vld [vmem:[%s1384] sm:$0x1]
    %s1386 = scalar_lea.vmem %s14, 32
    %v1387 = vld [vmem:[%s1386] sm:$0xff]
    %v1388 = vld [vmem:[%s1386 + $0x8] sm:$0xff]
    %v1389 = vld [vmem:[%s1386 + $0x10] sm:$0xff]
    %v1390 = vld [vmem:[%s1386 + $0x18] sm:$0xff]
    %s1391 = scalar_lea.vmem %s15, 1
    %v1392 = vld [vmem:[%s1391] sm:$0x1]
    %s1393 = scalar_lea.vmem %s16, 1
    %v1394 = vld [vmem:[%s1393] sm:$0x1]
    %s1395 = scalar_lea.vmem %s17, 1
    %v1396 = vld [vmem:[%s1395] sm:$0x1]
    %s1397 = scalar_lea.vmem %s18, 32
    %v1398 = vld [vmem:[%s1397] sm:$0xff]
    %v1399 = vld [vmem:[%s1397 + $0x8] sm:$0xff]
    %v1400 = vld [vmem:[%s1397 + $0x10] sm:$0xff]
    %v1401 = vld [vmem:[%s1397 + $0x18] sm:$0xff]
    %s1402 = scalar_lea.vmem %s19, 1
    %v1403 = vld [vmem:[%s1402] sm:$0x1]
    %s1404 = scalar_lea.vmem %s20, 128
    %v1405 = vld [vmem:[%s1404] sm:$0xff]
    %v1406 = vld [vmem:[%s1404 + $0x8] sm:$0xff]
    %v1407 = vld [vmem:[%s1404 + $0x10] sm:$0xff]
    %v1408 = vld [vmem:[%s1404 + $0x18] sm:$0xff]
    %v1409 = vld [vmem:[%s1404 + $0x20] sm:$0xff]
    %v1410 = vld [vmem:[%s1404 + $0x28] sm:$0xff]
    %v1411 = vld [vmem:[%s1404 + $0x30] sm:$0xff]
    %v1412 = vld [vmem:[%s1404 + $0x38] sm:$0xff]
    %v1413 = vld [vmem:[%s1404 + $0x40] sm:$0xff]
    %v1414 = vld [vmem:[%s1404 + $0x48] sm:$0xff]
    %v1415 = vld [vmem:[%s1404 + $0x50] sm:$0xff]
    %v1416 = vld [vmem:[%s1404 + $0x58] sm:$0xff]
    %v1417 = vld [vmem:[%s1404 + $0x60] sm:$0xff]
    %v1418 = vld [vmem:[%s1404 + $0x68] sm:$0xff]
    %v1419 = vld [vmem:[%s1404 + $0x70] sm:$0xff]
    %v1420 = vld [vmem:[%s1404 + $0x78] sm:$0xff]
    %s1421 = scalar_lea.vmem %s21, 1
    %v1422 = vld [vmem:[%s1421] sm:$0x1]
    %s1423 = scalar_lea.vmem %s22, 1
    %v1424 = vld [vmem:[%s1423] sm:$0x1]
    %s1425 = scalar_lea.vmem %s23, 1
    %v1426 = vld [vmem:[%s1425] sm:$0x1]
    %v1428 = vperm.slane %v1371, 0
    %v1431 = vsel %vm260, %v1363, 0
    %v1434 = vsel %vm260, %v1364, 0
    %1436 = vmatpush.msra.mxu0 0.0
    %1437 = vmatpush.msra.mxu0 0.0
    %1438 = vmatpush.msra.mxu0 0.0
    %1439 = vmatpush.msra.mxu0 0.0
    %1440 = vmatpush.msra.mxu0 0.0
    %1441 = vmatpush.msra.mxu0 0.0
    %1442 = vmatpush.msra.mxu0 0.0
    %1443 = vmatpush.msra.mxu0 0.0
    %1444 = vmatpush.msra.mxu0 0.0
    %1445 = vmatpush.msra.mxu0 0.0
    %1446 = vmatpush.msra.mxu0 0.0
    %1447 = vmatpush.msra.mxu0 0.0
    %1448 = vmatpush.msra.mxu0 %v1369
    %1449 = vmatpush.msra.mxu0 %v1368
    %1450 = vmatpush.msra.mxu0 %v1367
    %1451 = vmatpush.msra.mxu0 %v1366
    %1452 = vmatmul.f32.gmra.mxu0 %v1431
    %v1453 = vpop.f32.mrf.mxu0
    %v1454 = vadd.f32 %v1428, %v1453
    %1455 = vmatmul.f32.gmra.mxu0 %v1434
    %v1456 = vpop.f32.mrf.mxu0
    %v1457 = vadd.f32 %v1428, %v1456
    %1458 = vdwg.mxu0
    %v1460 = vperm.slane %v1378, 0
    %1462 = vmatpush.msra.mxu0 0.0
    %1463 = vmatpush.msra.mxu0 0.0
    %1464 = vmatpush.msra.mxu0 0.0
    %1465 = vmatpush.msra.mxu0 0.0
    %1466 = vmatpush.msra.mxu0 0.0
    %1467 = vmatpush.msra.mxu0 0.0
    %1468 = vmatpush.msra.mxu0 0.0
    %1469 = vmatpush.msra.mxu0 0.0
    %1470 = vmatpush.msra.mxu0 0.0
    %1471 = vmatpush.msra.mxu0 0.0
    %1472 = vmatpush.msra.mxu0 0.0
    %1473 = vmatpush.msra.mxu0 0.0
    %1474 = vmatpush.msra.mxu0 %v1376
    %1475 = vmatpush.msra.mxu0 %v1375
    %1476 = vmatpush.msra.mxu0 %v1374
    %1477 = vmatpush.msra.mxu0 %v1373
    %1478 = vmatmul.f32.gmra.mxu0 %v1431
    %v1479 = vpop.f32.mrf.mxu0
    %v1480 = vadd.f32 %v1460, %v1479
    %1481 = vmatmul.f32.gmra.mxu0 %v1434
    %v1482 = vpop.f32.mrf.mxu0
    %v1483 = vadd.f32 %v1460, %v1482
    %1484 = vdwg.mxu0
    %v1486 = vperm.slane %v1385, 0
    %1488 = vmatpush.msra.mxu0 0.0
    %1489 = vmatpush.msra.mxu0 0.0
    %1490 = vmatpush.msra.mxu0 0.0
    %1491 = vmatpush.msra.mxu0 0.0
    %1492 = vmatpush.msra.mxu0 0.0
    %1493 = vmatpush.msra.mxu0 0.0
    %1494 = vmatpush.msra.mxu0 0.0
    %1495 = vmatpush.msra.mxu0 0.0
    %1496 = vmatpush.msra.mxu0 0.0
    %1497 = vmatpush.msra.mxu0 0.0
    %1498 = vmatpush.msra.mxu0 0.0
    %1499 = vmatpush.msra.mxu0 0.0
    %1500 = vmatpush.msra.mxu0 %v1383
    %1501 = vmatpush.msra.mxu0 %v1382
    %1502 = vmatpush.msra.mxu0 %v1381
    %1503 = vmatpush.msra.mxu0 %v1380
    %1504 = vmatmul.f32.gmra.mxu0 %v1431
    %v1505 = vpop.f32.mrf.mxu0
    %v1506 = vadd.f32 %v1486, %v1505
    %1507 = vmatmul.f32.gmra.mxu0 %v1434
    %v1508 = vpop.f32.mrf.mxu0
    %v1509 = vadd.f32 %v1486, %v1508
    %1510 = vdwg.mxu0
    %v1512 = vsel %vm455, %v1454, 0
    %v1515 = vsel %vm455, %v1480, 0
    %1517 = vmatpush.xpose.msra.mxu0 0.0
    %1518 = vmatpush.xpose.msra.mxu0 0.0
    %1519 = vmatpush.xpose.msra.mxu0 0.0
    %1520 = vmatpush.xpose.msra.mxu0 0.0
    %1521 = vmatpush.xpose.msra.mxu0 0.0
    %1522 = vmatpush.xpose.msra.mxu0 0.0
    %1523 = vmatpush.xpose.msra.mxu0 0.0
    %1524 = vmatpush.xpose.msra.mxu0 0.0
    %1525 = vmatpush.xpose.msra.mxu0 0.0
    %1526 = vmatpush.xpose.msra.mxu0 0.0
    %1527 = vmatpush.xpose.msra.mxu0 0.0
    %1528 = vmatpush.xpose.msra.mxu0 0.0
    %1529 = vmatpush.xpose.msra.mxu0 0.0
    %1530 = vmatpush.xpose.msra.mxu0 0.0
    %1531 = vmatpush.xpose.msra.mxu0 0.0
    %1532 = vmatpush.xpose.msra.mxu0 %v1515
    %1533 = vmatmul.f32.gmra.mxu0 %v1512
    %v1534 = vpop.f32.mrf.mxu0
    %v1535 = vadd.f32 0.0, %v1534
    %1536 = vdwg.mxu0
    %v1538 = vsel %vm455, %v1457, 0
    %v1541 = vsel %vm455, %v1483, 0
    %1543 = vmatpush.xpose.msra.mxu0 0.0
    %1544 = vmatpush.xpose.msra.mxu0 0.0
    %1545 = vmatpush.xpose.msra.mxu0 0.0
    %1546 = vmatpush.xpose.msra.mxu0 0.0
    %1547 = vmatpush.xpose.msra.mxu0 0.0
    %1548 = vmatpush.xpose.msra.mxu0 0.0
    %1549 = vmatpush.xpose.msra.mxu0 0.0
    %1550 = vmatpush.xpose.msra.mxu0 0.0
    %1551 = vmatpush.xpose.msra.mxu0 0.0
    %1552 = vmatpush.xpose.msra.mxu0 0.0
    %1553 = vmatpush.xpose.msra.mxu0 0.0
    %1554 = vmatpush.xpose.msra.mxu0 0.0
    %1555 = vmatpush.xpose.msra.mxu0 0.0
    %1556 = vmatpush.xpose.msra.mxu0 0.0
    %1557 = vmatpush.xpose.msra.mxu0 0.0
    %1558 = vmatpush.xpose.msra.mxu0 %v1541
    %1559 = vmatmul.f32.gmra.mxu0 %v1538
    %v1560 = vpop.f32.mrf.mxu0
    %v1561 = vadd.f32 0.0, %v1560
    %1562 = vdwg.mxu0
    %v1563 = vmul.f32 %v1535, 0.35355338
    %v1564 = vmul.f32 %v1561, 0.35355338
    %v1565 = vadd.f32 %v1563, %v512
    %v1566 = vadd.f32 %v1564, %v513
    %v1567 = vsel %vm455, %v1565, -inf
    %1568 = vmax.xlane.f32.xlu0 %v1567
    %v1569 = vpop.xlane.xlu0 %1568
    %v1570 = vsel %vm455, %v1566, -inf
    %1571 = vmax.xlane.f32.xlu0 %v1570
    %v1572 = vpop.xlane.xlu0 %1571
    %v1573 = vsub.f32 %v1565, %v1569
    %v1574 = vsub.f32 %v1566, %v1572
    %v1575 = vmul.f32 %v1573, 1.442695
    %v1576 = vpow.pop %v1575
    %v1577 = vmul.f32 %v1574, 1.442695
    %v1578 = vpow.pop %v1577
    %v1579 = vsel %vm455, %v1576, 0.0
    %1580 = vadd.xlane.f32.xlu0 %v1579
    %v1581 = vpop.xlane.xlu0 %1580
    %v1582 = vsel %vm455, %v1578, 0.0
    %1583 = vadd.xlane.f32.xlu0 %v1582
    %v1584 = vpop.xlane.xlu0 %1583
    %v1585 = vrcp.pop %v1581
    %v1586 = vrcp.pop %v1584
    %v1587 = vmul.f32 %v1576, %v1585
    %v1588 = vmul.f32 %v1578, %v1586
    %v1590 = vsel %vm455, %v1587, 0
    %1592 = vmatpush.msra.mxu0 0.0
    %1593 = vmatpush.msra.mxu0 0.0
    %1594 = vmatpush.msra.mxu0 0.0
    %1595 = vmatpush.msra.mxu0 0.0
    %1596 = vmatpush.msra.mxu0 0.0
    %1597 = vmatpush.msra.mxu0 0.0
    %1598 = vmatpush.msra.mxu0 0.0
    %1599 = vmatpush.msra.mxu0 0.0
    %1600 = vmatpush.msra.mxu0 0.0
    %1601 = vmatpush.msra.mxu0 0.0
    %1602 = vmatpush.msra.mxu0 0.0
    %1603 = vmatpush.msra.mxu0 0.0
    %1604 = vmatpush.msra.mxu0 0.0
    %1605 = vmatpush.msra.mxu0 0.0
    %1606 = vmatpush.msra.mxu0 0.0
    %1607 = vmatpush.msra.mxu0 %v1506
    %1608 = vmatmul.f32.gmra.mxu0 %v1590
    %v1609 = vpop.f32.mrf.mxu0
    %v1610 = vadd.f32 0.0, %v1609
    %1611 = vdwg.mxu0
    %v1613 = vsel %vm455, %v1588, 0
    %1615 = vmatpush.msra.mxu0 0.0
    %1616 = vmatpush.msra.mxu0 0.0
    %1617 = vmatpush.msra.mxu0 0.0
    %1618 = vmatpush.msra.mxu0 0.0
    %1619 = vmatpush.msra.mxu0 0.0
    %1620 = vmatpush.msra.mxu0 0.0
    %1621 = vmatpush.msra.mxu0 0.0
    %1622 = vmatpush.msra.mxu0 0.0
    %1623 = vmatpush.msra.mxu0 0.0
    %1624 = vmatpush.msra.mxu0 0.0
    %1625 = vmatpush.msra.mxu0 0.0
    %1626 = vmatpush.msra.mxu0 0.0
    %1627 = vmatpush.msra.mxu0 0.0
    %1628 = vmatpush.msra.mxu0 0.0
    %1629 = vmatpush.msra.mxu0 0.0
    %1630 = vmatpush.msra.mxu0 %v1509
    %1631 = vmatmul.f32.gmra.mxu0 %v1613
    %v1632 = vpop.f32.mrf.mxu0
    %v1633 = vadd.f32 0.0, %v1632
    %1634 = vdwg.mxu0
    %1635 = vrot.lane.b32.xlu0 %v1454, 120
    %v1636 = vpop.permute.xlu0 %1635
    %1637 = vrot.lane.b32.xlu0 %v1480, 120
    %v1638 = vpop.permute.xlu0 %1637
    %v1639 = vsel %vm455, %v1636, 0
    %v1641 = vsel %vm455, %v1638, 0
    %1643 = vmatpush.xpose.msra.mxu0 0.0
    %1644 = vmatpush.xpose.msra.mxu0 0.0
    %1645 = vmatpush.xpose.msra.mxu0 0.0
    %1646 = vmatpush.xpose.msra.mxu0 0.0
    %1647 = vmatpush.xpose.msra.mxu0 0.0
    %1648 = vmatpush.xpose.msra.mxu0 0.0
    %1649 = vmatpush.xpose.msra.mxu0 0.0
    %1650 = vmatpush.xpose.msra.mxu0 0.0
    %1651 = vmatpush.xpose.msra.mxu0 0.0
    %1652 = vmatpush.xpose.msra.mxu0 0.0
    %1653 = vmatpush.xpose.msra.mxu0 0.0
    %1654 = vmatpush.xpose.msra.mxu0 0.0
    %1655 = vmatpush.xpose.msra.mxu0 0.0
    %1656 = vmatpush.xpose.msra.mxu0 0.0
    %1657 = vmatpush.xpose.msra.mxu0 0.0
    %1658 = vmatpush.xpose.msra.mxu0 %v1641
    %1659 = vmatmul.f32.gmra.mxu0 %v1639
    %v1660 = vpop.f32.mrf.mxu0
    %v1661 = vadd.f32 0.0, %v1660
    %1662 = vdwg.mxu0
    %1663 = vrot.lane.b32.xlu0 %v1457, 120
    %v1664 = vpop.permute.xlu0 %1663
    %1665 = vrot.lane.b32.xlu0 %v1483, 120
    %v1666 = vpop.permute.xlu0 %1665
    %v1667 = vsel %vm455, %v1664, 0
    %v1669 = vsel %vm455, %v1666, 0
    %1671 = vmatpush.xpose.msra.mxu0 0.0
    %1672 = vmatpush.xpose.msra.mxu0 0.0
    %1673 = vmatpush.xpose.msra.mxu0 0.0
    %1674 = vmatpush.xpose.msra.mxu0 0.0
    %1675 = vmatpush.xpose.msra.mxu0 0.0
    %1676 = vmatpush.xpose.msra.mxu0 0.0
    %1677 = vmatpush.xpose.msra.mxu0 0.0
    %1678 = vmatpush.xpose.msra.mxu0 0.0
    %1679 = vmatpush.xpose.msra.mxu0 0.0
    %1680 = vmatpush.xpose.msra.mxu0 0.0
    %1681 = vmatpush.xpose.msra.mxu0 0.0
    %1682 = vmatpush.xpose.msra.mxu0 0.0
    %1683 = vmatpush.xpose.msra.mxu0 0.0
    %1684 = vmatpush.xpose.msra.mxu0 0.0
    %1685 = vmatpush.xpose.msra.mxu0 0.0
    %1686 = vmatpush.xpose.msra.mxu0 %v1669
    %1687 = vmatmul.f32.gmra.mxu0 %v1667
    %v1688 = vpop.f32.mrf.mxu0
    %v1689 = vadd.f32 0.0, %v1688
    %1690 = vdwg.mxu0
    %v1691 = vmul.f32 %v1661, 0.35355338
    %v1692 = vmul.f32 %v1689, 0.35355338
    %v1693 = vadd.f32 %v1691, %v512
    %v1694 = vadd.f32 %v1692, %v513
    %v1695 = vsel %vm455, %v1693, -inf
    %1696 = vmax.xlane.f32.xlu0 %v1695
    %v1697 = vpop.xlane.xlu0 %1696
    %v1698 = vsel %vm455, %v1694, -inf
    %1699 = vmax.xlane.f32.xlu0 %v1698
    %v1700 = vpop.xlane.xlu0 %1699
    %v1701 = vsub.f32 %v1693, %v1697
    %v1702 = vsub.f32 %v1694, %v1700
    %v1703 = vmul.f32 %v1701, 1.442695
    %v1704 = vpow.pop %v1703
    %v1705 = vmul.f32 %v1702, 1.442695
    %v1706 = vpow.pop %v1705
    %v1707 = vsel %vm455, %v1704, 0.0
    %1708 = vadd.xlane.f32.xlu0 %v1707
    %v1709 = vpop.xlane.xlu0 %1708
    %v1710 = vsel %vm455, %v1706, 0.0
    %1711 = vadd.xlane.f32.xlu0 %v1710
    %v1712 = vpop.xlane.xlu0 %1711
    %v1713 = vrcp.pop %v1709
    %v1714 = vrcp.pop %v1712
    %v1715 = vmul.f32 %v1704, %v1713
    %v1716 = vmul.f32 %v1706, %v1714
    %1718 = vrot.lane.b32.xlu0 %v1506, 120
    %v1719 = vpop.permute.xlu0 %1718
    %v1722 = vsel %vm455, %v1715, 0
    %1724 = vmatpush.msra.mxu0 0.0
    %1725 = vmatpush.msra.mxu0 0.0
    %1726 = vmatpush.msra.mxu0 0.0
    %1727 = vmatpush.msra.mxu0 0.0
    %1728 = vmatpush.msra.mxu0 0.0
    %1729 = vmatpush.msra.mxu0 0.0
    %1730 = vmatpush.msra.mxu0 0.0
    %1731 = vmatpush.msra.mxu0 0.0
    %1732 = vmatpush.msra.mxu0 0.0
    %1733 = vmatpush.msra.mxu0 0.0
    %1734 = vmatpush.msra.mxu0 0.0
    %1735 = vmatpush.msra.mxu0 0.0
    %1736 = vmatpush.msra.mxu0 0.0
    %1737 = vmatpush.msra.mxu0 0.0
    %1738 = vmatpush.msra.mxu0 0.0
    %1739 = vmatpush.msra.mxu0 %v1719
    %1740 = vmatmul.f32.gmra.mxu0 %v1722
    %v1741 = vpop.f32.mrf.mxu0
    %v1742 = vadd.f32 0.0, %v1741
    %1743 = vdwg.mxu0
    %1745 = vrot.lane.b32.xlu0 %v1509, 120
    %v1746 = vpop.permute.xlu0 %1745
    %v1749 = vsel %vm455, %v1716, 0
    %1751 = vmatpush.msra.mxu0 0.0
    %1752 = vmatpush.msra.mxu0 0.0
    %1753 = vmatpush.msra.mxu0 0.0
    %1754 = vmatpush.msra.mxu0 0.0
    %1755 = vmatpush.msra.mxu0 0.0
    %1756 = vmatpush.msra.mxu0 0.0
    %1757 = vmatpush.msra.mxu0 0.0
    %1758 = vmatpush.msra.mxu0 0.0
    %1759 = vmatpush.msra.mxu0 0.0
    %1760 = vmatpush.msra.mxu0 0.0
    %1761 = vmatpush.msra.mxu0 0.0
    %1762 = vmatpush.msra.mxu0 0.0
    %1763 = vmatpush.msra.mxu0 0.0
    %1764 = vmatpush.msra.mxu0 0.0
    %1765 = vmatpush.msra.mxu0 0.0
    %1766 = vmatpush.msra.mxu0 %v1746
    %1767 = vmatmul.f32.gmra.mxu0 %v1749
    %v1768 = vpop.f32.mrf.mxu0
    %v1769 = vadd.f32 0.0, %v1768
    %1770 = vdwg.mxu0
    %v1772 = vsel %vm455, %v1742, 0
    %v1775 = vsel %vm455, %v1769, 0
    %1777 = vmatpush.msra.mxu0 0.0
    %1778 = vmatpush.msra.mxu0 0.0
    %1779 = vmatpush.msra.mxu0 0.0
    %1780 = vmatpush.msra.mxu0 0.0
    %1781 = vmatpush.msra.mxu0 0.0
    %1782 = vmatpush.msra.mxu0 0.0
    %1783 = vmatpush.msra.mxu0 0.0
    %1784 = vmatpush.msra.mxu0 0.0
    %1785 = vmatpush.msra.mxu0 0.0
    %1786 = vmatpush.msra.mxu0 0.0
    %1787 = vmatpush.msra.mxu0 0.0
    %1788 = vmatpush.msra.mxu0 0.0
    %1789 = vmatpush.msra.mxu0 0.0
    %1790 = vmatpush.msra.mxu0 0.0
    %1791 = vmatpush.msra.mxu0 0.0
    %1792 = vmatpush.msra.mxu0 %v1388
    %1793 = vmatmul.f32.gmra.mxu0 %v1772
    %v1794 = vpop.f32.mrf.mxu0
    %v1795 = vadd.f32 0.0, %v1794
    %1796 = vmatmul.f32.gmra.mxu0 %v1775
    %v1797 = vpop.f32.mrf.mxu0
    %v1798 = vadd.f32 0.0, %v1797
    %1799 = vdwg.mxu0
    %v1801 = vsel %vm455, %v1610, 0
    %v1804 = vsel %vm455, %v1633, 0
    %1806 = vmatpush.msra.mxu0 0.0
    %1807 = vmatpush.msra.mxu0 0.0
    %1808 = vmatpush.msra.mxu0 0.0
    %1809 = vmatpush.msra.mxu0 0.0
    %1810 = vmatpush.msra.mxu0 0.0
    %1811 = vmatpush.msra.mxu0 0.0
    %1812 = vmatpush.msra.mxu0 0.0
    %1813 = vmatpush.msra.mxu0 0.0
    %1814 = vmatpush.msra.mxu0 0.0
    %1815 = vmatpush.msra.mxu0 0.0
    %1816 = vmatpush.msra.mxu0 0.0
    %1817 = vmatpush.msra.mxu0 0.0
    %1818 = vmatpush.msra.mxu0 0.0
    %1819 = vmatpush.msra.mxu0 0.0
    %1820 = vmatpush.msra.mxu0 0.0
    %1821 = vmatpush.msra.mxu0 %v1387
    %1822 = vmatmul.f32.gmra.mxu0 %v1801
    %v1823 = vpop.f32.mrf.mxu0
    %v1824 = vadd.f32 %v1795, %v1823
    %1825 = vmatmul.f32.gmra.mxu0 %v1804
    %v1826 = vpop.f32.mrf.mxu0
    %v1827 = vadd.f32 %v1798, %v1826
    %1828 = vdwg.mxu0
    %1829 = vrot.lane.b32.xlu0 %v1454, 112
    %v1830 = vpop.permute.xlu0 %1829
    %1831 = vrot.lane.b32.xlu0 %v1480, 112
    %v1832 = vpop.permute.xlu0 %1831
    %v1833 = vsel %vm455, %v1830, 0
    %v1835 = vsel %vm455, %v1832, 0
    %1837 = vmatpush.xpose.msra.mxu0 0.0
    %1838 = vmatpush.xpose.msra.mxu0 0.0
    %1839 = vmatpush.xpose.msra.mxu0 0.0
    %1840 = vmatpush.xpose.msra.mxu0 0.0
    %1841 = vmatpush.xpose.msra.mxu0 0.0
    %1842 = vmatpush.xpose.msra.mxu0 0.0
    %1843 = vmatpush.xpose.msra.mxu0 0.0
    %1844 = vmatpush.xpose.msra.mxu0 0.0
    %1845 = vmatpush.xpose.msra.mxu0 0.0
    %1846 = vmatpush.xpose.msra.mxu0 0.0
    %1847 = vmatpush.xpose.msra.mxu0 0.0
    %1848 = vmatpush.xpose.msra.mxu0 0.0
    %1849 = vmatpush.xpose.msra.mxu0 0.0
    %1850 = vmatpush.xpose.msra.mxu0 0.0
    %1851 = vmatpush.xpose.msra.mxu0 0.0
    %1852 = vmatpush.xpose.msra.mxu0 %v1835
    %1853 = vmatmul.f32.gmra.mxu0 %v1833
    %v1854 = vpop.f32.mrf.mxu0
    %v1855 = vadd.f32 0.0, %v1854
    %1856 = vdwg.mxu0
    %1857 = vrot.lane.b32.xlu0 %v1457, 112
    %v1858 = vpop.permute.xlu0 %1857
    %1859 = vrot.lane.b32.xlu0 %v1483, 112
    %v1860 = vpop.permute.xlu0 %1859
    %v1861 = vsel %vm455, %v1858, 0
    %v1863 = vsel %vm455, %v1860, 0
    %1865 = vmatpush.xpose.msra.mxu0 0.0
    %1866 = vmatpush.xpose.msra.mxu0 0.0
    %1867 = vmatpush.xpose.msra.mxu0 0.0
    %1868 = vmatpush.xpose.msra.mxu0 0.0
    %1869 = vmatpush.xpose.msra.mxu0 0.0
    %1870 = vmatpush.xpose.msra.mxu0 0.0
    %1871 = vmatpush.xpose.msra.mxu0 0.0
    %1872 = vmatpush.xpose.msra.mxu0 0.0
    %1873 = vmatpush.xpose.msra.mxu0 0.0
    %1874 = vmatpush.xpose.msra.mxu0 0.0
    %1875 = vmatpush.xpose.msra.mxu0 0.0
    %1876 = vmatpush.xpose.msra.mxu0 0.0
    %1877 = vmatpush.xpose.msra.mxu0 0.0
    %1878 = vmatpush.xpose.msra.mxu0 0.0
    %1879 = vmatpush.xpose.msra.mxu0 0.0
    %1880 = vmatpush.xpose.msra.mxu0 %v1863
    %1881 = vmatmul.f32.gmra.mxu0 %v1861
    %v1882 = vpop.f32.mrf.mxu0
    %v1883 = vadd.f32 0.0, %v1882
    %1884 = vdwg.mxu0
    %v1885 = vmul.f32 %v1855, 0.35355338
    %v1886 = vmul.f32 %v1883, 0.35355338
    %v1887 = vadd.f32 %v1885, %v512
    %v1888 = vadd.f32 %v1886, %v513
    %v1889 = vsel %vm455, %v1887, -inf
    %1890 = vmax.xlane.f32.xlu0 %v1889
    %v1891 = vpop.xlane.xlu0 %1890
    %v1892 = vsel %vm455, %v1888, -inf
    %1893 = vmax.xlane.f32.xlu0 %v1892
    %v1894 = vpop.xlane.xlu0 %1893
    %v1895 = vsub.f32 %v1887, %v1891
    %v1896 = vsub.f32 %v1888, %v1894
    %v1897 = vmul.f32 %v1895, 1.442695
    %v1898 = vpow.pop %v1897
    %v1899 = vmul.f32 %v1896, 1.442695
    %v1900 = vpow.pop %v1899
    %v1901 = vsel %vm455, %v1898, 0.0
    %1902 = vadd.xlane.f32.xlu0 %v1901
    %v1903 = vpop.xlane.xlu0 %1902
    %v1904 = vsel %vm455, %v1900, 0.0
    %1905 = vadd.xlane.f32.xlu0 %v1904
    %v1906 = vpop.xlane.xlu0 %1905
    %v1907 = vrcp.pop %v1903
    %v1908 = vrcp.pop %v1906
    %v1909 = vmul.f32 %v1898, %v1907
    %v1910 = vmul.f32 %v1900, %v1908
    %1911 = vrot.lane.b32.xlu0 %v1506, 112
    %v1912 = vpop.permute.xlu0 %1911
    %v1915 = vsel %vm455, %v1909, 0
    %1917 = vmatpush.msra.mxu0 0.0
    %1918 = vmatpush.msra.mxu0 0.0
    %1919 = vmatpush.msra.mxu0 0.0
    %1920 = vmatpush.msra.mxu0 0.0
    %1921 = vmatpush.msra.mxu0 0.0
    %1922 = vmatpush.msra.mxu0 0.0
    %1923 = vmatpush.msra.mxu0 0.0
    %1924 = vmatpush.msra.mxu0 0.0
    %1925 = vmatpush.msra.mxu0 0.0
    %1926 = vmatpush.msra.mxu0 0.0
    %1927 = vmatpush.msra.mxu0 0.0
    %1928 = vmatpush.msra.mxu0 0.0
    %1929 = vmatpush.msra.mxu0 0.0
    %1930 = vmatpush.msra.mxu0 0.0
    %1931 = vmatpush.msra.mxu0 0.0
    %1932 = vmatpush.msra.mxu0 %v1912
    %1933 = vmatmul.f32.gmra.mxu0 %v1915
    %v1934 = vpop.f32.mrf.mxu0
    %v1935 = vadd.f32 0.0, %v1934
    %1936 = vdwg.mxu0
    %1937 = vrot.lane.b32.xlu0 %v1509, 112
    %v1938 = vpop.permute.xlu0 %1937
    %v1941 = vsel %vm455, %v1910, 0
    %1943 = vmatpush.msra.mxu0 0.0
    %1944 = vmatpush.msra.mxu0 0.0
    %1945 = vmatpush.msra.mxu0 0.0
    %1946 = vmatpush.msra.mxu0 0.0
    %1947 = vmatpush.msra.mxu0 0.0
    %1948 = vmatpush.msra.mxu0 0.0
    %1949 = vmatpush.msra.mxu0 0.0
    %1950 = vmatpush.msra.mxu0 0.0
    %1951 = vmatpush.msra.mxu0 0.0
    %1952 = vmatpush.msra.mxu0 0.0
    %1953 = vmatpush.msra.mxu0 0.0
    %1954 = vmatpush.msra.mxu0 0.0
    %1955 = vmatpush.msra.mxu0 0.0
    %1956 = vmatpush.msra.mxu0 0.0
    %1957 = vmatpush.msra.mxu0 0.0
    %1958 = vmatpush.msra.mxu0 %v1938
    %1959 = vmatmul.f32.gmra.mxu0 %v1941
    %v1960 = vpop.f32.mrf.mxu0
    %v1961 = vadd.f32 0.0, %v1960
    %1962 = vdwg.mxu0
    %v1964 = vsel %vm455, %v1935, 0
    %v1967 = vsel %vm455, %v1961, 0
    %1969 = vmatpush.msra.mxu0 0.0
    %1970 = vmatpush.msra.mxu0 0.0
    %1971 = vmatpush.msra.mxu0 0.0
    %1972 = vmatpush.msra.mxu0 0.0
    %1973 = vmatpush.msra.mxu0 0.0
    %1974 = vmatpush.msra.mxu0 0.0
    %1975 = vmatpush.msra.mxu0 0.0
    %1976 = vmatpush.msra.mxu0 0.0
    %1977 = vmatpush.msra.mxu0 0.0
    %1978 = vmatpush.msra.mxu0 0.0
    %1979 = vmatpush.msra.mxu0 0.0
    %1980 = vmatpush.msra.mxu0 0.0
    %1981 = vmatpush.msra.mxu0 0.0
    %1982 = vmatpush.msra.mxu0 0.0
    %1983 = vmatpush.msra.mxu0 0.0
    %1984 = vmatpush.msra.mxu0 %v1389
    %1985 = vmatmul.f32.gmra.mxu0 %v1964
    %v1986 = vpop.f32.mrf.mxu0
    %v1987 = vadd.f32 0.0, %v1986
    %1988 = vmatmul.f32.gmra.mxu0 %v1967
    %v1989 = vpop.f32.mrf.mxu0
    %v1990 = vadd.f32 0.0, %v1989
    %1991 = vdwg.mxu0
    %v1992 = vadd.f32 %v1824, %v1987
    %v1993 = vadd.f32 %v1827, %v1990
    %1994 = vrot.lane.b32.xlu0 %v1454, 104
    %v1995 = vpop.permute.xlu0 %1994
    %1996 = vrot.lane.b32.xlu0 %v1480, 104
    %v1997 = vpop.permute.xlu0 %1996
    %v1998 = vsel %vm455, %v1995, 0
    %v2000 = vsel %vm455, %v1997, 0
    %2002 = vmatpush.xpose.msra.mxu0 0.0
    %2003 = vmatpush.xpose.msra.mxu0 0.0
    %2004 = vmatpush.xpose.msra.mxu0 0.0
    %2005 = vmatpush.xpose.msra.mxu0 0.0
    %2006 = vmatpush.xpose.msra.mxu0 0.0
    %2007 = vmatpush.xpose.msra.mxu0 0.0
    %2008 = vmatpush.xpose.msra.mxu0 0.0
    %2009 = vmatpush.xpose.msra.mxu0 0.0
    %2010 = vmatpush.xpose.msra.mxu0 0.0
    %2011 = vmatpush.xpose.msra.mxu0 0.0
    %2012 = vmatpush.xpose.msra.mxu0 0.0
    %2013 = vmatpush.xpose.msra.mxu0 0.0
    %2014 = vmatpush.xpose.msra.mxu0 0.0
    %2015 = vmatpush.xpose.msra.mxu0 0.0
    %2016 = vmatpush.xpose.msra.mxu0 0.0
    %2017 = vmatpush.xpose.msra.mxu0 %v2000
    %2018 = vmatmul.f32.gmra.mxu0 %v1998
    %v2019 = vpop.f32.mrf.mxu0
    %v2020 = vadd.f32 0.0, %v2019
    %2021 = vdwg.mxu0
    %2022 = vrot.lane.b32.xlu0 %v1457, 104
    %v2023 = vpop.permute.xlu0 %2022
    %2024 = vrot.lane.b32.xlu0 %v1483, 104
    %v2025 = vpop.permute.xlu0 %2024
    %v2026 = vsel %vm455, %v2023, 0
    %v2028 = vsel %vm455, %v2025, 0
    %2030 = vmatpush.xpose.msra.mxu0 0.0
    %2031 = vmatpush.xpose.msra.mxu0 0.0
    %2032 = vmatpush.xpose.msra.mxu0 0.0
    %2033 = vmatpush.xpose.msra.mxu0 0.0
    %2034 = vmatpush.xpose.msra.mxu0 0.0
    %2035 = vmatpush.xpose.msra.mxu0 0.0
    %2036 = vmatpush.xpose.msra.mxu0 0.0
    %2037 = vmatpush.xpose.msra.mxu0 0.0
    %2038 = vmatpush.xpose.msra.mxu0 0.0
    %2039 = vmatpush.xpose.msra.mxu0 0.0
    %2040 = vmatpush.xpose.msra.mxu0 0.0
    %2041 = vmatpush.xpose.msra.mxu0 0.0
    %2042 = vmatpush.xpose.msra.mxu0 0.0
    %2043 = vmatpush.xpose.msra.mxu0 0.0
    %2044 = vmatpush.xpose.msra.mxu0 0.0
    %2045 = vmatpush.xpose.msra.mxu0 %v2028
    %2046 = vmatmul.f32.gmra.mxu0 %v2026
    %v2047 = vpop.f32.mrf.mxu0
    %v2048 = vadd.f32 0.0, %v2047
    %2049 = vdwg.mxu0
    %v2050 = vmul.f32 %v2020, 0.35355338
    %v2051 = vmul.f32 %v2048, 0.35355338
    %v2052 = vadd.f32 %v2050, %v512
    %v2053 = vadd.f32 %v2051, %v513
    %v2054 = vsel %vm455, %v2052, -inf
    %2055 = vmax.xlane.f32.xlu0 %v2054
    %v2056 = vpop.xlane.xlu0 %2055
    %v2057 = vsel %vm455, %v2053, -inf
    %2058 = vmax.xlane.f32.xlu0 %v2057
    %v2059 = vpop.xlane.xlu0 %2058
    %v2060 = vsub.f32 %v2052, %v2056
    %v2061 = vsub.f32 %v2053, %v2059
    %v2062 = vmul.f32 %v2060, 1.442695
    %v2063 = vpow.pop %v2062
    %v2064 = vmul.f32 %v2061, 1.442695
    %v2065 = vpow.pop %v2064
    %v2066 = vsel %vm455, %v2063, 0.0
    %2067 = vadd.xlane.f32.xlu0 %v2066
    %v2068 = vpop.xlane.xlu0 %2067
    %v2069 = vsel %vm455, %v2065, 0.0
    %2070 = vadd.xlane.f32.xlu0 %v2069
    %v2071 = vpop.xlane.xlu0 %2070
    %v2072 = vrcp.pop %v2068
    %v2073 = vrcp.pop %v2071
    %v2074 = vmul.f32 %v2063, %v2072
    %v2075 = vmul.f32 %v2065, %v2073
    %2076 = vrot.lane.b32.xlu0 %v1506, 104
    %v2077 = vpop.permute.xlu0 %2076
    %v2080 = vsel %vm455, %v2074, 0
    %2082 = vmatpush.msra.mxu0 0.0
    %2083 = vmatpush.msra.mxu0 0.0
    %2084 = vmatpush.msra.mxu0 0.0
    %2085 = vmatpush.msra.mxu0 0.0
    %2086 = vmatpush.msra.mxu0 0.0
    %2087 = vmatpush.msra.mxu0 0.0
    %2088 = vmatpush.msra.mxu0 0.0
    %2089 = vmatpush.msra.mxu0 0.0
    %2090 = vmatpush.msra.mxu0 0.0
    %2091 = vmatpush.msra.mxu0 0.0
    %2092 = vmatpush.msra.mxu0 0.0
    %2093 = vmatpush.msra.mxu0 0.0
    %2094 = vmatpush.msra.mxu0 0.0
    %2095 = vmatpush.msra.mxu0 0.0
    %2096 = vmatpush.msra.mxu0 0.0
    %2097 = vmatpush.msra.mxu0 %v2077
    %2098 = vmatmul.f32.gmra.mxu0 %v2080
    %v2099 = vpop.f32.mrf.mxu0
    %v2100 = vadd.f32 0.0, %v2099
    %2101 = vdwg.mxu0
    %2102 = vrot.lane.b32.xlu0 %v1509, 104
    %v2103 = vpop.permute.xlu0 %2102
    %v2106 = vsel %vm455, %v2075, 0
    %2108 = vmatpush.msra.mxu0 0.0
    %2109 = vmatpush.msra.mxu0 0.0
    %2110 = vmatpush.msra.mxu0 0.0
    %2111 = vmatpush.msra.mxu0 0.0
    %2112 = vmatpush.msra.mxu0 0.0
    %2113 = vmatpush.msra.mxu0 0.0
    %2114 = vmatpush.msra.mxu0 0.0
    %2115 = vmatpush.msra.mxu0 0.0
    %2116 = vmatpush.msra.mxu0 0.0
    %2117 = vmatpush.msra.mxu0 0.0
    %2118 = vmatpush.msra.mxu0 0.0
    %2119 = vmatpush.msra.mxu0 0.0
    %2120 = vmatpush.msra.mxu0 0.0
    %2121 = vmatpush.msra.mxu0 0.0
    %2122 = vmatpush.msra.mxu0 0.0
    %2123 = vmatpush.msra.mxu0 %v2103
    %2124 = vmatmul.f32.gmra.mxu0 %v2106
    %v2125 = vpop.f32.mrf.mxu0
    %v2126 = vadd.f32 0.0, %v2125
    %2127 = vdwg.mxu0
    %v2129 = vsel %vm455, %v2100, 0
    %v2132 = vsel %vm455, %v2126, 0
    %2134 = vmatpush.msra.mxu0 0.0
    %2135 = vmatpush.msra.mxu0 0.0
    %2136 = vmatpush.msra.mxu0 0.0
    %2137 = vmatpush.msra.mxu0 0.0
    %2138 = vmatpush.msra.mxu0 0.0
    %2139 = vmatpush.msra.mxu0 0.0
    %2140 = vmatpush.msra.mxu0 0.0
    %2141 = vmatpush.msra.mxu0 0.0
    %2142 = vmatpush.msra.mxu0 0.0
    %2143 = vmatpush.msra.mxu0 0.0
    %2144 = vmatpush.msra.mxu0 0.0
    %2145 = vmatpush.msra.mxu0 0.0
    %2146 = vmatpush.msra.mxu0 0.0
    %2147 = vmatpush.msra.mxu0 0.0
    %2148 = vmatpush.msra.mxu0 0.0
    %2149 = vmatpush.msra.mxu0 %v1390
    %2150 = vmatmul.f32.gmra.mxu0 %v2129
    %v2151 = vpop.f32.mrf.mxu0
    %v2152 = vadd.f32 0.0, %v2151
    %2153 = vmatmul.f32.gmra.mxu0 %v2132
    %v2154 = vpop.f32.mrf.mxu0
    %v2155 = vadd.f32 0.0, %v2154
    %2156 = vdwg.mxu0
    %v2157 = vadd.f32 %v1992, %v2152
    %v2158 = vadd.f32 %v1993, %v2155
    %v2160 = vperm.slane %v1392, 0
    %v2162 = vadd.f32 %v2157, %v2160
    %v2163 = vadd.f32 %v2158, %v2160
    %v2164 = vadd.f32 %v2162, %v1363
    %v2165 = vadd.f32 %v2163, %v1364
    %v2166 = vsel %vm260, %v2164, 0.0
    %2167 = vadd.xlane.f32.xlu0 %v2166
    %v2168 = vpop.xlane.xlu0 %2167
    %v2169 = vsel %vm260, %v2165, 0.0
    %2170 = vadd.xlane.f32.xlu0 %v2169
    %v2171 = vpop.xlane.xlu0 %2170
    %v2172 = vmul.f32 %v2168, %v273
    %v2173 = vmul.f32 %v2171, %v273
    %v2174 = vsub.f32 %v2164, %v2172
    %v2175 = vsub.f32 %v2165, %v2173
    %v2176 = vmul.f32 %v2174, %v2174
    %v2177 = vmul.f32 %v2175, %v2175
    %v2178 = vsel %vm260, %v2176, 0.0
    %2179 = vadd.xlane.f32.xlu0 %v2178
    %v2180 = vpop.xlane.xlu0 %2179
    %v2181 = vsel %vm260, %v2177, 0.0
    %2182 = vadd.xlane.f32.xlu0 %v2181
    %v2183 = vpop.xlane.xlu0 %2182
    %v2184 = vmul.f32 %v2180, %v273
    %v2185 = vmul.f32 %v2183, %v273
    %v2186 = vadd.f32 %v2184, 1e-12
    %v2187 = vadd.f32 %v2185, 1e-12
    %v2188 = vrsqrt.pop %v2186
    %v2189 = vmul.f32 %v2188, %v2186
    %v2190 = vmul.f32 %v2189, %v2188
    %v2191 = vmul.f32 0.5, %v2190
    %v2192 = vsub.f32 1.5, %v2191
    %v2193 = vmul.f32 %v2188, %v2192
    %vm2194 = vweird.f32 %v2186
    %vm2195 = vweird.f32 %v2188
    %vm2196 = vmor %vm2194, %vm2195
    %v2197 = vsel %vm2196, %v2188, %v2193
    %v2198 = vrsqrt.pop %v2187
    %v2199 = vmul.f32 %v2198, %v2187
    %v2200 = vmul.f32 %v2199, %v2198
    %v2201 = vmul.f32 0.5, %v2200
    %v2202 = vsub.f32 1.5, %v2201
    %v2203 = vmul.f32 %v2198, %v2202
    %vm2204 = vweird.f32 %v2187
    %vm2205 = vweird.f32 %v2198
    %vm2206 = vmor %vm2204, %vm2205
    %v2207 = vsel %vm2206, %v2198, %v2203
    %v2208 = vmul.f32 %v2174, %v2197
    %v2209 = vmul.f32 %v2175, %v2207
    %v2211 = vperm.slane %v1394, 0
    %v2213 = vmul.f32 %v2208, %v2211
    %v2214 = vmul.f32 %v2209, %v2211
    %v2216 = vperm.slane %v1396, 0
    %v2218 = vadd.f32 %v2213, %v2216
    %v2219 = vadd.f32 %v2214, %v2216
    %v2221 = vperm.slane %v1403, 0
    %v2224 = vsel %vm260, %v2218, 0
    %v2227 = vsel %vm260, %v2219, 0
    %2229 = vmatpush.msra.mxu0 0.0
    %2230 = vmatpush.msra.mxu0 0.0
    %2231 = vmatpush.msra.mxu0 0.0
    %2232 = vmatpush.msra.mxu0 0.0
    %2233 = vmatpush.msra.mxu0 0.0
    %2234 = vmatpush.msra.mxu0 0.0
    %2235 = vmatpush.msra.mxu0 0.0
    %2236 = vmatpush.msra.mxu0 0.0
    %2237 = vmatpush.msra.mxu0 0.0
    %2238 = vmatpush.msra.mxu0 0.0
    %2239 = vmatpush.msra.mxu0 0.0
    %2240 = vmatpush.msra.mxu0 0.0
    %2241 = vmatpush.msra.mxu0 %v1401
    %2242 = vmatpush.msra.mxu0 %v1400
    %2243 = vmatpush.msra.mxu0 %v1399
    %2244 = vmatpush.msra.mxu0 %v1398
    %2245 = vmatmul.f32.gmra.mxu0 %v2224
    %v2246 = vpop.f32.mrf.mxu0
    %v2247 = vadd.f32 %v2221, %v2246
    %2248 = vmatmul.f32.gmra.mxu0 %v2227
    %v2249 = vpop.f32.mrf.mxu0
    %v2250 = vadd.f32 %v2221, %v2249
    %2251 = vdwg.mxu0
    %v2252 = vmul.f32 %v2247, 0.5
    %v2253 = vmul.f32 %v2250, 0.5
    %v2254 = vmul.f32 %v2247, %v136
    %v2255 = vmul.f32 %v2250, %v136
    %vm2256 = vcmp.lt.f32.partialorder %v2254, 0.0
    %vm2257 = vcmp.lt.f32.partialorder %v2255, 0.0
    %v2258 = vsel %vm2256, -1.0, 1.0
    %v2259 = vsel %vm2257, -1.0, 1.0
    %v2260 = vand.u32 2147483647, %v2254
    %v2261 = vand.u32 2147483647, %v2255
    %v2262 = vmul.f32 %v2260, 0.3275911
    %v2263 = vmul.f32 %v2261, 0.3275911
    %v2264 = vadd.f32 %v2262, 1.0
    %v2265 = vadd.f32 %v2263, 1.0
    %v2266 = vrcp.pop %v2264
    %v2267 = vmul.f32 %v2264, %v2266
    %v2268 = vsub.f32 1.0, %v2267
    %v2269 = vmul.f32 %v2266, %v2268
    %v2270 = vadd.f32 %v2266, %v2269
    %vm2271 = vweird.f32 %v2264
    %vm2272 = vweird.f32 %v2266
    %vm2273 = vmor %vm2271, %vm2272
    %v2274 = vsel %vm2273, %v2266, %v2270
    %v2275 = vand.u32 2147483647, %v2264
    %vm2276 = vcmp.eq.f32.partialorder %v2275, 8.507059e+37
    %v2277 = vand.u32 %v2264, 2147483648
    %v2278 = vor.u32 1.1754944e-38, %v2277
    %v2279 = vsel %vm2276, %v2278, %v2274
    %v2280 = vmul.f32 1.0, %v2279
    %v2281 = vrcp.pop %v2265
    %v2282 = vmul.f32 %v2265, %v2281
    %v2283 = vsub.f32 1.0, %v2282
    %v2284 = vmul.f32 %v2281, %v2283
    %v2285 = vadd.f32 %v2281, %v2284
    %vm2286 = vweird.f32 %v2265
    %vm2287 = vweird.f32 %v2281
    %vm2288 = vmor %vm2286, %vm2287
    %v2289 = vsel %vm2288, %v2281, %v2285
    %v2290 = vand.u32 2147483647, %v2265
    %vm2291 = vcmp.eq.f32.partialorder %v2290, 8.507059e+37
    %v2292 = vand.u32 %v2265, 2147483648
    %v2293 = vor.u32 1.1754944e-38, %v2292
    %v2294 = vsel %vm2291, %v2293, %v2289
    %v2295 = vmul.f32 1.0, %v2294
    %v2296 = vmul.f32 %v2280, 1.0614054
    %v2297 = vmul.f32 %v2295, 1.0614054
    %v2298 = vadd.f32 %v2296, -1.4531521
    %v2299 = vadd.f32 %v2297, -1.4531521
    %v2300 = vmul.f32 %v2298, %v2280
    %v2301 = vmul.f32 %v2299, %v2295
    %v2302 = vadd.f32 %v2300, 1.4214138
    %v2303 = vadd.f32 %v2301, 1.4214138
    %v2304 = vmul.f32 %v2302, %v2280
    %v2305 = vmul.f32 %v2303, %v2295
    %v2306 = vadd.f32 %v2304, -0.28449672
    %v2307 = vadd.f32 %v2305, -0.28449672
    %v2308 = vmul.f32 %v2306, %v2280
    %v2309 = vmul.f32 %v2307, %v2295
    %v2310 = vadd.f32 %v2308, 0.2548296
    %v2311 = vadd.f32 %v2309, 0.2548296
    %v2312 = vmul.f32 %v2310, %v2280
    %v2313 = vmul.f32 %v2311, %v2295
    %v2314 = vsub.f32 0.0, %v2260
    %v2315 = vsub.f32 0.0, %v2261
    %v2316 = vmul.f32 %v2314, %v2260
    %v2317 = vmul.f32 %v2315, %v2261
    %v2318 = vmul.f32 %v2316, 1.442695
    %v2319 = vpow.pop %v2318
    %v2320 = vmul.f32 %v2317, 1.442695
    %v2321 = vpow.pop %v2320
    %v2322 = vmul.f32 %v2312, %v2319
    %v2323 = vmul.f32 %v2313, %v2321
    %v2324 = vsub.f32 1.0, %v2322
    %v2325 = vsub.f32 1.0, %v2323
    %v2326 = vmul.f32 %v2258, %v2324
    %v2327 = vmul.f32 %v2259, %v2325
    %v2328 = vadd.f32 %v2326, 1.0
    %v2329 = vadd.f32 %v2327, 1.0
    %v2330 = vmul.f32 %v2252, %v2328
    %v2331 = vmul.f32 %v2253, %v2329
    %v2333 = vperm.slane %v1422, 0
    %2335 = vmatpush.msra.mxu0 %v1420
    %2336 = vmatpush.msra.mxu0 %v1419
    %2337 = vmatpush.msra.mxu0 %v1418
    %2338 = vmatpush.msra.mxu0 %v1417
    %2339 = vmatpush.msra.mxu0 %v1416
    %2340 = vmatpush.msra.mxu0 %v1415
    %2341 = vmatpush.msra.mxu0 %v1414
    %2342 = vmatpush.msra.mxu0 %v1413
    %2343 = vmatpush.msra.mxu0 %v1412
    %2344 = vmatpush.msra.mxu0 %v1411
    %2345 = vmatpush.msra.mxu0 %v1410
    %2346 = vmatpush.msra.mxu0 %v1409
    %2347 = vmatpush.msra.mxu0 %v1408
    %2348 = vmatpush.msra.mxu0 %v1407
    %2349 = vmatpush.msra.mxu0 %v1406
    %2350 = vmatpush.msra.mxu0 %v1405
    %2351 = vmatmul.f32.gmra.mxu0 %v2330
    %v2352 = vpop.f32.mrf.mxu0
    %v2353 = vadd.f32 %v2333, %v2352
    %2354 = vmatmul.f32.gmra.mxu0 %v2331
    %v2355 = vpop.f32.mrf.mxu0
    %v2356 = vadd.f32 %v2333, %v2355
    %2357 = vdwg.mxu0
    %v2358 = vadd.f32 %v2353, %v2218
    %v2359 = vadd.f32 %v2356, %v2219
    %v2360 = vsel %vm260, %v2358, 0.0
    %2361 = vadd.xlane.f32.xlu0 %v2360
    %v2362 = vpop.xlane.xlu0 %2361
    %v2363 = vsel %vm260, %v2359, 0.0
    %2364 = vadd.xlane.f32.xlu0 %v2363
    %v2365 = vpop.xlane.xlu0 %2364
    %v2366 = vmul.f32 %v2362, %v273
    %v2367 = vmul.f32 %v2365, %v273
    %v2368 = vsub.f32 %v2358, %v2366
    %v2369 = vsub.f32 %v2359, %v2367
    %v2370 = vmul.f32 %v2368, %v2368
    %v2371 = vmul.f32 %v2369, %v2369
    %v2372 = vsel %vm260, %v2370, 0.0
    %2373 = vadd.xlane.f32.xlu0 %v2372
    %v2374 = vpop.xlane.xlu0 %2373
    %v2375 = vsel %vm260, %v2371, 0.0
    %2376 = vadd.xlane.f32.xlu0 %v2375
    %v2377 = vpop.xlane.xlu0 %2376
    %v2378 = vmul.f32 %v2374, %v273
    %v2379 = vmul.f32 %v2377, %v273
    %v2380 = vadd.f32 %v2378, 1e-12
    %v2381 = vadd.f32 %v2379, 1e-12
    %v2382 = vrsqrt.pop %v2380
    %v2383 = vmul.f32 %v2382, %v2380
    %v2384 = vmul.f32 %v2383, %v2382
    %v2385 = vmul.f32 0.5, %v2384
    %v2386 = vsub.f32 1.5, %v2385
    %v2387 = vmul.f32 %v2382, %v2386
    %vm2388 = vweird.f32 %v2380
    %vm2389 = vweird.f32 %v2382
    %vm2390 = vmor %vm2388, %vm2389
    %v2391 = vsel %vm2390, %v2382, %v2387
    %v2392 = vrsqrt.pop %v2381
    %v2393 = vmul.f32 %v2392, %v2381
    %v2394 = vmul.f32 %v2393, %v2392
    %v2395 = vmul.f32 0.5, %v2394
    %v2396 = vsub.f32 1.5, %v2395
    %v2397 = vmul.f32 %v2392, %v2396
    %vm2398 = vweird.f32 %v2381
    %vm2399 = vweird.f32 %v2392
    %vm2400 = vmor %vm2398, %vm2399
    %v2401 = vsel %vm2400, %v2392, %v2397
    %v2402 = vmul.f32 %v2368, %v2391
    %v2403 = vmul.f32 %v2369, %v2401
    %v2405 = vperm.slane %v1424, 0
    %v2407 = vmul.f32 %v2402, %v2405
    %v2408 = vmul.f32 %v2403, %v2405
    %v2410 = vperm.slane %v1426, 0
    %v2412 = vadd.f32 %v2407, %v2410
    %v2413 = vadd.f32 %v2408, %v2410
    %v2414 = vld [vmem:[%s24] sm:$0xff]
    %v2415 = vld [vmem:[%s24 + $0x8] sm:$0xff]
    %v2416 = vld [vmem:[%s24 + $0x10] sm:$0xff]
    %v2417 = vld [vmem:[%s24 + $0x18] sm:$0xff]
    %v2418 = vld [vmem:[%s25] sm:$0x1]
    %v2420 = vperm.slane %v2418, 0
    %v2424 = vrot.slane %v2413, 7
    %vm2425 = vcmask 1041409
    %v2426 = vsel %vm2425, %v2424, %v2412
    %v2427 = vsel %vm260, %v2426, 0
    %2429 = vmatpush.msra.mxu0 0.0
    %2430 = vmatpush.msra.mxu0 0.0
    %2431 = vmatpush.msra.mxu0 0.0
    %2432 = vmatpush.msra.mxu0 0.0
    %2433 = vmatpush.msra.mxu0 0.0
    %2434 = vmatpush.msra.mxu0 0.0
    %2435 = vmatpush.msra.mxu0 0.0
    %2436 = vmatpush.msra.mxu0 0.0
    %2437 = vmatpush.msra.mxu0 0.0
    %2438 = vmatpush.msra.mxu0 0.0
    %2439 = vmatpush.msra.mxu0 0.0
    %2440 = vmatpush.msra.mxu0 0.0
    %2441 = vmatpush.msra.mxu0 %v2417
    %2442 = vmatpush.msra.mxu0 %v2416
    %2443 = vmatpush.msra.mxu0 %v2415
    %2444 = vmatpush.msra.mxu0 %v2414
    %2445 = vmatmul.f32.gmra.mxu0 %v2427
    %v2446 = vpop.f32.mrf.mxu0
    %v2447 = vadd.f32 %v2420, %v2446
    %2448 = vdwg.mxu0
    %v2449 = vtanh.pop %v2447
    %v2450 = vld [vmem:[%s26] sm:$0xff]
    %v2451 = vld [vmem:[%s26 + $0x8] sm:$0xff]
    %v2452 = vld [vmem:[%s26 + $0x10] sm:$0xff]
    %v2453 = vld [vmem:[%s26 + $0x18] sm:$0xff]
    %v2454 = vld [vmem:[%s27] sm:$0x1]
    %v2456 = vperm.slane %v2454, 0
    %v2459 = vsel %vm260, %v2449, 0
    %2461 = vmatpush.msra.mxu0 0.0
    %2462 = vmatpush.msra.mxu0 0.0
    %2463 = vmatpush.msra.mxu0 0.0
    %2464 = vmatpush.msra.mxu0 0.0
    %2465 = vmatpush.msra.mxu0 0.0
    %2466 = vmatpush.msra.mxu0 0.0
    %2467 = vmatpush.msra.mxu0 0.0
    %2468 = vmatpush.msra.mxu0 0.0
    %2469 = vmatpush.msra.mxu0 0.0
    %2470 = vmatpush.msra.mxu0 0.0
    %2471 = vmatpush.msra.mxu0 0.0
    %2472 = vmatpush.msra.mxu0 0.0
    %2473 = vmatpush.msra.mxu0 %v2453
    %2474 = vmatpush.msra.mxu0 %v2452
    %2475 = vmatpush.msra.mxu0 %v2451
    %2476 = vmatpush.msra.mxu0 %v2450
    %2477 = vmatmul.f32.gmra.mxu0 %v2459
    %v2478 = vpop.f32.mrf.mxu0
    %v2479 = vadd.f32 %v2456, %v2478
    %2480 = vdwg.mxu0
    %vm2481 = vcmask 17408
    %2482 = vst.msk [vmem:[#allocation2] sm:$0x3] %vm2481, %v2479
    // Predicated region
    $region114: #{tpu_custom_call.1} parent=1 // pred_check
      _
    $region115: #{tpu_custom_call.1} parent=1 // pred_check_branch
      %2484 = sbr.rel (0) target = $region117
    $region116: #{tpu_custom_call.1} parent=1 // pred_region
      %2486 = vsyncadd [#allocation3], 0
      %s2488 = sshll.u32 [#allocation2], 4
      %s2489 = int_to_ptr.vmem [resolvable:$true] %s2488
      %s2490 = sshll.u32 %s28, 4
      %s2491 = int_to_ptr.hbm [resolvable:$true] %s2490
      %2493 = dma.vmem_to_hbm [thread:$0]  %s2489, 32, %s2491, [#allocation3]
    $region117: #{tpu_custom_call.1} parent=1 // pred_fallthru
      _
    // Predicated region
    $region118: #{tpu_custom_call.1} parent=1 // pred_check
      _
    $region119: #{tpu_custom_call.1} parent=1 // pred_check_branch
      %2495 = sbr.rel (0) target = $region121
    $region120: #{tpu_custom_call.1} parent=1 // pred_region
      %2497 = dma.done [#allocation3], 32
    $region121: #{tpu_custom_call.1} parent=1 // pred_fallthru
      _
    %2498 = vsyncpa [#allocation3], 1

</llo_original>
